<compile_context>
chip_gen: v5e
topology: v5e:2x2
jax: 0.10.0
libtpu: 0.0.40
codegen_flags: <defaults>
</compile_context>

<pallas_src>
import jax
import jax.numpy as jnp
from jax.experimental import pallas as pl
from jax.experimental.pallas import tpu as pltpu

# --- module constants (from the PyTorch source) ------------------------------
digital_capslen = 16
filters = 32
ks = 5
neurons = 150
num_iterations = 3
primary_capslen = 4
stride = 2

NUM_CAPS = 2
NUM_ROUTES = (int((neurons - ks) / stride) + 1) * filters   # 73 * 32 = 2336
IN_CH = primary_capslen      # 4
OUT_CH = digital_capslen     # 16
B_TILE_MAX = 8               # batch samples processed per grid step (large-batch case)


def _squash(s):
    # squash along the out-channel axis (axis=2 here == PyTorch dim=-1 of (...,1,16))
    norm = jnp.sum(s * s, axis=2, keepdims=True)             # (BT, K, 1, 1)
    # (norm/(1+norm)) * s / sqrt(norm)  ==  s * sqrt(norm) / (1+norm)
    return s * (jnp.sqrt(norm) / (1.0 + norm))


def caps1d_kernel(u_ref, w_ref, out_ref):
    # u_ref   : (BT, IN_CH, R)                 routes R on the lane axis
    # w_ref   : (NUM_CAPS, IN_CH*OUT_CH, R)    row index = c*OUT_CH + o (dense sublanes)
    # out_ref : (BT, NUM_CAPS)                 one block per grid step
    u = u_ref[...]                                           # (BT, IN_CH, R)

    # u_ji[bt, k, o, r] = sum_c u[bt, c, r] * W[k, r, c, o]
    # unrolled over IN_CH: no (BT,K,16,4,R) temp, no extra sublane reduction, VPU only.
    u_ji = None
    for c in range(IN_CH):
        w_c = w_ref[:, c * OUT_CH:(c + 1) * OUT_CH, :]       # (K, OUT_CH, R)
        u_c = u[:, c, :][:, None, None, :]                   # (BT, 1, 1, R)
        term = w_c[None, :, :, :] * u_c                      # (BT, K, OUT_CH, R)
        u_ji = term if u_ji is None else u_ji + term

    inv_r = jnp.float32(1.0 / NUM_ROUTES)

    # --- routing iteration 0: b == 0  =>  c == 1/R exactly (softmax skipped)
    s = jnp.sum(u_ji, axis=-1, keepdims=True) * inv_r        # (BT, K, OUT_CH, 1)
    v = _squash(s)                                           # (BT, K, OUT_CH, 1)
    # routing logits kept collapsed: identical across OUT_CH in the PyTorch code
    b_log = jnp.sum(u_ji * v, axis=2, keepdims=True)         # (BT, K, 1, R)

    # --- routing iterations 1 .. num_iterations-1 (static unrolled loop)
    for it in range(1, num_iterations):
        m = jnp.max(b_log, axis=-1, keepdims=True)           # (BT, K, 1, 1)
        e = jnp.exp(b_log - m)                               # (BT, K, 1, R)
        c_route = e * (1.0 / jnp.sum(e, axis=-1, keepdims=True))
        s = jnp.sum(c_route * u_ji, axis=-1, keepdims=True)  # (BT, K, OUT_CH, 1)
        v = _squash(s)
        if it != num_iterations - 1:                         # last delta_b is unused
            b_log = b_log + jnp.sum(u_ji * v, axis=2, keepdims=True)

    # class scores: ||v|| over out-channels, softmax over the capsule axis (dim=1)
    v2 = v[..., 0]                                           # (BT, K, OUT_CH)
    lengths = jnp.sqrt(jnp.sum(v2 * v2, axis=-1))            # (BT, K)
    lmax = jnp.max(lengths, axis=-1, keepdims=True)
    le = jnp.exp(lengths - lmax)
    out_ref[...] = le / jnp.sum(le, axis=-1, keepdims=True)  # (BT, K)


def caps1d_prepare_weights(W):
    """W: (NUM_CAPS, NUM_ROUTES, IN_CH, OUT_CH) -> kernel layout (K, IN_CH*OUT_CH, R).
    Done once (weights are static), not per forward call."""
    w = jnp.transpose(W.astype(jnp.float32), (0, 2, 3, 1))   # (K, IN_CH, OUT_CH, R)
    return w.reshape(NUM_CAPS, IN_CH * OUT_CH, NUM_ROUTES)


def caps1d_forward(u, w_t):
    """u: (B, NUM_ROUTES, IN_CH) f32; w_t: pre-laid-out weights (K, IN_CH*OUT_CH, R).
    Returns class probabilities of shape (B, NUM_CAPS)."""
    B = u.shape[0]
    # adaptive batch tile: big batches amortize per-step overhead, tiny batches
    # (like the demo) avoid padded-compute waste.  Leading dim has no (8,128) rule.
    bt = B if B < B_TILE_MAX else B_TILE_MAX
    u_t = jnp.transpose(u.astype(jnp.float32), (0, 2, 1))    # (B, IN_CH, R)
    pad = (-B) % bt
    if pad:  # pad batch to a multiple of bt (padded rows are discarded)
        u_t = jnp.pad(u_t, ((0, pad), (0, 0), (0, 0)), constant_values=1.0)
    bp = B + pad

    out = pl.pallas_call(
        caps1d_kernel,
        out_shape=jax.ShapeDtypeStruct((bp, NUM_CAPS), jnp.float32),
        grid_spec=pltpu.PrefetchScalarGridSpec(
            num_scalar_prefetch=0,
            grid=(bp // bt,),
            in_specs=[
                pl.BlockSpec((bt, IN_CH, NUM_ROUTES), lambda b: (b, 0, 0)),
                # constant block index -> W DMA'd once, stays resident across the grid
                pl.BlockSpec((NUM_CAPS, IN_CH * OUT_CH, NUM_ROUTES),
                             lambda b: (0, 0, 0)),
            ],
            out_specs=pl.BlockSpec((bt, NUM_CAPS), lambda b: (b, 0)),
        ),
        compiler_params=pltpu.CompilerParams(
            dimension_semantics=("parallel",),   # batch tiles independent -> megacore on v7x
            vmem_limit_bytes=32 << 20,           # ~10 MB actual; must stay <= 64 MiB (v7x)
        ),
    )(u_t, w_t)
    return out[:B]


def caps1d_reference(u, W):
    """Pure-JAX replica of the PyTorch forward (correctness check only)."""
    u_ji = jnp.einsum('brc,krco->bkro', u.astype(jnp.float32),
                      W.astype(jnp.float32))                 # (B, K, R, OUT_CH)
    b = jnp.zeros_like(u_ji)
    v = None
    for i in range(num_iterations):
        c = jax.nn.softmax(b, axis=2)
        s = jnp.sum(c * u_ji, axis=2, keepdims=True)         # (B, K, 1, OUT_CH)
        norm = jnp.sum(s * s, axis=-1, keepdims=True)
        v = (norm / (1.0 + norm)) * s / jnp.sqrt(norm)
        if i != num_iterations - 1:
            b = b + jnp.sum(u_ji * v, axis=-1, keepdims=True)
    lengths = jnp.sqrt(jnp.sum(v[:, :, 0, :] ** 2, axis=-1)) # (B, K)
    return jax.nn.softmax(lengths, axis=1)


if __name__ == "__main__":
    key = jax.random.PRNGKey(0)
    k_w, k_u = jax.random.split(key)
    # deterministic stand-in for nn.Parameter(torch.randn(...))
    W = jax.random.normal(k_w, (NUM_CAPS, NUM_ROUTES, IN_CH, OUT_CH), jnp.float32)
    # input implied by the forward: (batch, num_routes, primary_capslen)
    u = jax.random.normal(k_u, (2, NUM_ROUTES, IN_CH), jnp.float32)

    w_t = jax.block_until_ready(caps1d_prepare_weights(W))   # hoisted: once, not per call
    fwd = jax.jit(caps1d_forward)
    out = jax.block_until_ready(fwd(u, w_t))

    assert out.shape == (2, NUM_CAPS)
    assert bool(jnp.all(jnp.isfinite(out)))
    # rows are softmax probabilities over the 2 capsules
    assert bool(jnp.allclose(jnp.sum(out, axis=-1), 1.0, atol=1e-5))
    # cross-check against a pure-JAX replica of the PyTorch math
    ref = caps1d_reference(u, W)
    assert bool(jnp.allclose(out, ref, atol=1e-4, rtol=1e-4))
    print("KERNEL_OK")
</pallas_src>

<mosaic_0001>
module attributes {stable_mosaic.version = 11 : i64} {
  func.func @caps1d_kernel(%arg0: i32, %arg1: memref<2x4x2336xf32, #tpu.memory_space<vmem>>, %arg2: memref<2x64x2336xf32, #tpu.memory_space<vmem>>, %arg3: memref<2x2xf32, #tpu.memory_space<vmem>>) attributes {dimension_semantics = [#tpu.dimension_semantics<parallel>], iteration_bounds = array<i64: 1>, scalar_prefetch = 0 : i64, scratch_operands = 0 : i64, tpu.core_type = #tpu.core_type<tc>, window_params = [{transform_indices = @transform_0, window_bounds = array<i64: 2, 4, 2336>}, {pipeline_mode = #tpu.pipeline_mode<synchronous>, transform_indices = @transform_1, window_bounds = array<i64: 2, 64, 2336>}, {transform_indices = @transform_2, window_bounds = array<i64: 2, 2>}]} {
    %c0 = arith.constant 0 : index
    %c0_0 = arith.constant 0 : index
    %c0_1 = arith.constant 0 : index
    %0 = vector.load %arg1[%c0, %c0_0, %c0_1] : memref<2x4x2336xf32, #tpu.memory_space<vmem>>, vector<2x4x2336xf32>
    %c0_2 = arith.constant 0 : index
    %c0_3 = arith.constant 0 : index
    %c0_4 = arith.constant 0 : index
    %1 = vector.load %arg2[%c0_2, %c0_3, %c0_4] : memref<2x64x2336xf32, #tpu.memory_space<vmem>>, vector<2x16x2336xf32>
    %2 = vector.extract_strided_slice %0 {offsets = [0, 0, 0], sizes = [2, 1, 2336], strides = [1, 1, 1]} : vector<2x4x2336xf32> to vector<2x1x2336xf32>
    %3 = vector.shape_cast %2 : vector<2x1x2336xf32> to vector<2x2336xf32>
    %4 = vector.shape_cast %3 : vector<2x2336xf32> to vector<2x1x1x2336xf32>
    %5 = vector.shape_cast %1 : vector<2x16x2336xf32> to vector<1x2x16x2336xf32>
    %6 = vector.broadcast %5 : vector<1x2x16x2336xf32> to vector<2x2x16x2336xf32>
    %7 = vector.broadcast %4 : vector<2x1x1x2336xf32> to vector<2x2x16x2336xf32>
    %8 = arith.mulf %6, %7 : vector<2x2x16x2336xf32>
    %c0_5 = arith.constant 0 : index
    %c16 = arith.constant 16 : index
    %c0_6 = arith.constant 0 : index
    %9 = vector.load %arg2[%c0_5, %c16, %c0_6] : memref<2x64x2336xf32, #tpu.memory_space<vmem>>, vector<2x16x2336xf32>
    %10 = vector.extract_strided_slice %0 {offsets = [0, 1, 0], sizes = [2, 1, 2336], strides = [1, 1, 1]} : vector<2x4x2336xf32> to vector<2x1x2336xf32>
    %11 = vector.shape_cast %10 : vector<2x1x2336xf32> to vector<2x2336xf32>
    %12 = vector.shape_cast %11 : vector<2x2336xf32> to vector<2x1x1x2336xf32>
    %13 = vector.shape_cast %9 : vector<2x16x2336xf32> to vector<1x2x16x2336xf32>
    %14 = vector.broadcast %13 : vector<1x2x16x2336xf32> to vector<2x2x16x2336xf32>
    %15 = vector.broadcast %12 : vector<2x1x1x2336xf32> to vector<2x2x16x2336xf32>
    %16 = arith.mulf %14, %15 : vector<2x2x16x2336xf32>
    %17 = arith.addf %8, %16 : vector<2x2x16x2336xf32>
    %c0_7 = arith.constant 0 : index
    %c32 = arith.constant 32 : index
    %c0_8 = arith.constant 0 : index
    %18 = vector.load %arg2[%c0_7, %c32, %c0_8] : memref<2x64x2336xf32, #tpu.memory_space<vmem>>, vector<2x16x2336xf32>
    %19 = vector.extract_strided_slice %0 {offsets = [0, 2, 0], sizes = [2, 1, 2336], strides = [1, 1, 1]} : vector<2x4x2336xf32> to vector<2x1x2336xf32>
    %20 = vector.shape_cast %19 : vector<2x1x2336xf32> to vector<2x2336xf32>
    %21 = vector.shape_cast %20 : vector<2x2336xf32> to vector<2x1x1x2336xf32>
    %22 = vector.shape_cast %18 : vector<2x16x2336xf32> to vector<1x2x16x2336xf32>
    %23 = vector.broadcast %22 : vector<1x2x16x2336xf32> to vector<2x2x16x2336xf32>
    %24 = vector.broadcast %21 : vector<2x1x1x2336xf32> to vector<2x2x16x2336xf32>
    %25 = arith.mulf %23, %24 : vector<2x2x16x2336xf32>
    %26 = arith.addf %17, %25 : vector<2x2x16x2336xf32>
    %c0_9 = arith.constant 0 : index
    %c48 = arith.constant 48 : index
    %c0_10 = arith.constant 0 : index
    %27 = vector.load %arg2[%c0_9, %c48, %c0_10] : memref<2x64x2336xf32, #tpu.memory_space<vmem>>, vector<2x16x2336xf32>
    %28 = vector.extract_strided_slice %0 {offsets = [0, 3, 0], sizes = [2, 1, 2336], strides = [1, 1, 1]} : vector<2x4x2336xf32> to vector<2x1x2336xf32>
    %29 = vector.shape_cast %28 : vector<2x1x2336xf32> to vector<2x2336xf32>
    %30 = vector.shape_cast %29 : vector<2x2336xf32> to vector<2x1x1x2336xf32>
    %31 = vector.shape_cast %27 : vector<2x16x2336xf32> to vector<1x2x16x2336xf32>
    %32 = vector.broadcast %31 : vector<1x2x16x2336xf32> to vector<2x2x16x2336xf32>
    %33 = vector.broadcast %30 : vector<2x1x1x2336xf32> to vector<2x2x16x2336xf32>
    %34 = arith.mulf %32, %33 : vector<2x2x16x2336xf32>
    %35 = arith.addf %26, %34 : vector<2x2x16x2336xf32>
    %cst = arith.constant dense<0.000000e+00> : vector<2x2x16xf32>
    %36 = vector.multi_reduction <add>, %35, %cst [3] : vector<2x2x16x2336xf32> to vector<2x2x16xf32>
    %37 = vector.shape_cast %36 : vector<2x2x16xf32> to vector<2x2x16x1xf32>
    %cst_11 = arith.constant 4.28082189E-4 : f32
    %38 = vector.broadcast %cst_11 : f32 to vector<2x2x16x1xf32>
    %39 = arith.mulf %37, %38 : vector<2x2x16x1xf32>
    %40 = arith.mulf %39, %39 : vector<2x2x16x1xf32>
    %cst_12 = arith.constant dense<0.000000e+00> : vector<2x2x1xf32>
    %41 = vector.multi_reduction <add>, %40, %cst_12 [2] : vector<2x2x16x1xf32> to vector<2x2x1xf32>
    %42 = vector.shape_cast %41 : vector<2x2x1xf32> to vector<2x2x1x1xf32>
    %43 = math.sqrt %42 : vector<2x2x1x1xf32>
    %cst_13 = arith.constant 1.000000e+00 : f32
    %44 = vector.broadcast %cst_13 : f32 to vector<2x2x1x1xf32>
    %45 = arith.addf %44, %42 : vector<2x2x1x1xf32>
    %46 = arith.divf %43, %45 : vector<2x2x1x1xf32>
    %47 = vector.broadcast %46 : vector<2x2x1x1xf32> to vector<2x2x16x1xf32>
    %48 = arith.mulf %39, %47 : vector<2x2x16x1xf32>
    %49 = vector.broadcast %48 : vector<2x2x16x1xf32> to vector<2x2x16x2336xf32>
    %50 = arith.mulf %35, %49 : vector<2x2x16x2336xf32>
    %cst_14 = arith.constant dense<0.000000e+00> : vector<2x2x2336xf32>
    %51 = vector.multi_reduction <add>, %50, %cst_14 [2] : vector<2x2x16x2336xf32> to vector<2x2x2336xf32>
    %52 = vector.shape_cast %51 : vector<2x2x2336xf32> to vector<2x2x1x2336xf32>
    %cst_15 = arith.constant dense<0xFF800000> : vector<2x2x1xf32>
    %53 = vector.multi_reduction <maximumf>, %52, %cst_15 [3] : vector<2x2x1x2336xf32> to vector<2x2x1xf32>
    %54 = vector.shape_cast %53 : vector<2x2x1xf32> to vector<2x2x1x1xf32>
    %55 = vector.broadcast %54 : vector<2x2x1x1xf32> to vector<2x2x1x2336xf32>
    %56 = arith.subf %52, %55 : vector<2x2x1x2336xf32>
    %57 = math.exp %56 : vector<2x2x1x2336xf32>
    %cst_16 = arith.constant dense<0.000000e+00> : vector<2x2x1xf32>
    %58 = vector.multi_reduction <add>, %57, %cst_16 [3] : vector<2x2x1x2336xf32> to vector<2x2x1xf32>
    %59 = vector.shape_cast %58 : vector<2x2x1xf32> to vector<2x2x1x1xf32>
    %cst_17 = arith.constant 1.000000e+00 : f32
    %60 = vector.broadcast %cst_17 : f32 to vector<2x2x1x1xf32>
    %61 = arith.divf %60, %59 : vector<2x2x1x1xf32>
    %62 = vector.broadcast %61 : vector<2x2x1x1xf32> to vector<2x2x1x2336xf32>
    %63 = arith.mulf %57, %62 : vector<2x2x1x2336xf32>
    %64 = vector.broadcast %63 : vector<2x2x1x2336xf32> to vector<2x2x16x2336xf32>
    %65 = arith.mulf %64, %35 : vector<2x2x16x2336xf32>
    %cst_18 = arith.constant dense<0.000000e+00> : vector<2x2x16xf32>
    %66 = vector.multi_reduction <add>, %65, %cst_18 [3] : vector<2x2x16x2336xf32> to vector<2x2x16xf32>
    %67 = vector.shape_cast %66 : vector<2x2x16xf32> to vector<2x2x16x1xf32>
    %68 = arith.mulf %67, %67 : vector<2x2x16x1xf32>
    %cst_19 = arith.constant dense<0.000000e+00> : vector<2x2x1xf32>
    %69 = vector.multi_reduction <add>, %68, %cst_19 [2] : vector<2x2x16x1xf32> to vector<2x2x1xf32>
    %70 = vector.shape_cast %69 : vector<2x2x1xf32> to vector<2x2x1x1xf32>
    %71 = math.sqrt %70 : vector<2x2x1x1xf32>
    %cst_20 = arith.constant 1.000000e+00 : f32
    %72 = vector.broadcast %cst_20 : f32 to vector<2x2x1x1xf32>
    %73 = arith.addf %72, %70 : vector<2x2x1x1xf32>
    %74 = arith.divf %71, %73 : vector<2x2x1x1xf32>
    %75 = vector.broadcast %74 : vector<2x2x1x1xf32> to vector<2x2x16x1xf32>
    %76 = arith.mulf %67, %75 : vector<2x2x16x1xf32>
    %77 = vector.broadcast %76 : vector<2x2x16x1xf32> to vector<2x2x16x2336xf32>
    %78 = arith.mulf %35, %77 : vector<2x2x16x2336xf32>
    %cst_21 = arith.constant dense<0.000000e+00> : vector<2x2x2336xf32>
    %79 = vector.multi_reduction <add>, %78, %cst_21 [2] : vector<2x2x16x2336xf32> to vector<2x2x2336xf32>
    %80 = vector.shape_cast %79 : vector<2x2x2336xf32> to vector<2x2x1x2336xf32>
    %81 = arith.addf %52, %80 : vector<2x2x1x2336xf32>
    %cst_22 = arith.constant dense<0xFF800000> : vector<2x2x1xf32>
    %82 = vector.multi_reduction <maximumf>, %81, %cst_22 [3] : vector<2x2x1x2336xf32> to vector<2x2x1xf32>
    %83 = vector.shape_cast %82 : vector<2x2x1xf32> to vector<2x2x1x1xf32>
    %84 = vector.broadcast %83 : vector<2x2x1x1xf32> to vector<2x2x1x2336xf32>
    %85 = arith.subf %81, %84 : vector<2x2x1x2336xf32>
    %86 = math.exp %85 : vector<2x2x1x2336xf32>
    %cst_23 = arith.constant dense<0.000000e+00> : vector<2x2x1xf32>
    %87 = vector.multi_reduction <add>, %86, %cst_23 [3] : vector<2x2x1x2336xf32> to vector<2x2x1xf32>
    %88 = vector.shape_cast %87 : vector<2x2x1xf32> to vector<2x2x1x1xf32>
    %cst_24 = arith.constant 1.000000e+00 : f32
    %89 = vector.broadcast %cst_24 : f32 to vector<2x2x1x1xf32>
    %90 = arith.divf %89, %88 : vector<2x2x1x1xf32>
    %91 = vector.broadcast %90 : vector<2x2x1x1xf32> to vector<2x2x1x2336xf32>
    %92 = arith.mulf %86, %91 : vector<2x2x1x2336xf32>
    %93 = vector.broadcast %92 : vector<2x2x1x2336xf32> to vector<2x2x16x2336xf32>
    %94 = arith.mulf %93, %35 : vector<2x2x16x2336xf32>
    %cst_25 = arith.constant dense<0.000000e+00> : vector<2x2x16xf32>
    %95 = vector.multi_reduction <add>, %94, %cst_25 [3] : vector<2x2x16x2336xf32> to vector<2x2x16xf32>
    %96 = vector.shape_cast %95 : vector<2x2x16xf32> to vector<2x2x16x1xf32>
    %97 = arith.mulf %96, %96 : vector<2x2x16x1xf32>
    %cst_26 = arith.constant dense<0.000000e+00> : vector<2x2x1xf32>
    %98 = vector.multi_reduction <add>, %97, %cst_26 [2] : vector<2x2x16x1xf32> to vector<2x2x1xf32>
    %99 = vector.shape_cast %98 : vector<2x2x1xf32> to vector<2x2x1x1xf32>
    %100 = math.sqrt %99 : vector<2x2x1x1xf32>
    %cst_27 = arith.constant 1.000000e+00 : f32
    %101 = vector.broadcast %cst_27 : f32 to vector<2x2x1x1xf32>
    %102 = arith.addf %101, %99 : vector<2x2x1x1xf32>
    %103 = arith.divf %100, %102 : vector<2x2x1x1xf32>
    %104 = vector.broadcast %103 : vector<2x2x1x1xf32> to vector<2x2x16x1xf32>
    %105 = arith.mulf %96, %104 : vector<2x2x16x1xf32>
    %106 = vector.shape_cast %105 : vector<2x2x16x1xf32> to vector<2x2x16xf32>
    %107 = arith.mulf %106, %106 : vector<2x2x16xf32>
    %cst_28 = arith.constant dense<0.000000e+00> : vector<2x2xf32>
    %108 = vector.multi_reduction <add>, %107, %cst_28 [2] : vector<2x2x16xf32> to vector<2x2xf32>
    %109 = math.sqrt %108 : vector<2x2xf32>
    %cst_29 = arith.constant dense<0xFF800000> : vector<2xf32>
    %110 = vector.multi_reduction <maximumf>, %109, %cst_29 [1] : vector<2x2xf32> to vector<2xf32>
    %111 = vector.shape_cast %110 : vector<2xf32> to vector<2x1xf32>
    %112 = vector.broadcast %111 : vector<2x1xf32> to vector<2x2xf32>
    %113 = arith.subf %109, %112 : vector<2x2xf32>
    %114 = math.exp %113 : vector<2x2xf32>
    %cst_30 = arith.constant dense<0.000000e+00> : vector<2xf32>
    %115 = vector.multi_reduction <add>, %114, %cst_30 [1] : vector<2x2xf32> to vector<2xf32>
    %116 = vector.shape_cast %115 : vector<2xf32> to vector<2x1xf32>
    %117 = vector.broadcast %116 : vector<2x1xf32> to vector<2x2xf32>
    %118 = arith.divf %114, %117 : vector<2x2xf32>
    %c0_31 = arith.constant 0 : index
    %c0_32 = arith.constant 0 : index
    %119 = vector.load %arg3[%c0_31, %c0_32] : memref<2x2xf32, #tpu.memory_space<vmem>>, vector<2x2xf32>
    tpu.vector_store %arg3[%c0_31, %c0_32], %118 {strides = array<i32>} : memref<2x2xf32, #tpu.memory_space<vmem>>, vector<2x2xf32>,
    return
  }
  func.func @transform_0(%arg0: i32) -> (i32, i32, i32) {
    %c0_i32 = arith.constant 0 : i32
    %c0_i32_0 = arith.constant 0 : i32
    %c0_i32_1 = arith.constant 0 : i32
    return %arg0, %c0_i32, %c0_i32_0 : i32, i32, i32
  }
  func.func @transform_1(%arg0: i32) -> (i32, i32, i32) {
    %c0_i32 = arith.constant 0 : i32
    %c0_i32_0 = arith.constant 0 : i32
    %c0_i32_1 = arith.constant 0 : i32
    %c0_i32_2 = arith.constant 0 : i32
    return %c0_i32, %c0_i32_0, %c0_i32_1 : i32, i32, i32
  }
  func.func @transform_2(%arg0: i32) -> (i32, i32) {
    %c0_i32 = arith.constant 0 : i32
    %c0_i32_0 = arith.constant 0 : i32
    return %arg0, %c0_i32 : i32, i32
  }
}

</mosaic_0001>

<llo_original>
// kernel: caps1d_forward.1
$region0: #{caps1d_forward.1}
  #allocation0 [shape = 'u32[]', space=smem, size = 0x4, offset = 0x4, fixed_abs, tag = 'smem constant byte address 0x4 - core index']
  #allocation1 [shape = 'u32[72,128]{1,0:T(1,128)}', space=vmem, size = 0x9000, scoped, tag = 'internal scratch']
  %s0 = inlined_call_operand.hbm [shape: f32[2,4,2336], index: 0, kind: input, shape index: {}]
  %s1 = inlined_call_operand.hbm [shape: f32[2,64,2336], index: 1, kind: input, shape index: {}]
  %s2 = inlined_call_operand.hbm [shape: f32[2,2], index: 2, kind: output, shape index: {}]
  %s3 = sld [smem:[#allocation0]]
  $region26: #{caps1d_forward.1} parent=0
    _
  %s5 = ssub.s32 1, %s3
  %s6 = scalar_select 0, %s5, %s3
  $region1: #{caps1d_forward.1} parent=0
    #allocation2 [shape = 'u8[77824]{0}', space=vmem, size = 0x13000, scoped, tag = 'input window, operand 0, single buffered']
    #allocation3 [shape = 's32[1]{0}', space=sflag, size = 0x4, scoped, tag = 'scoped memory for caps1d_forward.1']
    #allocation4 [shape = 's32[1]{0}', space=sflag, size = 0x4, scoped, tag = 'scoped memory for caps1d_forward.1']
    #allocation5 [shape = 'u8[1245184]{0}', space=vmem, size = 0x130000, scoped, tag = 'input window, operand 1, single buffered']
    #allocation6 [shape = 's32[1]{0}', space=sflag, size = 0x4, scoped, tag = 'scoped memory for caps1d_forward.1']
    #allocation7 [shape = 'u8[1024]{0}', space=vmem, size = 0x400, scoped, tag = 'output window, operand 0, single buffered']
    %7 = vsyncpa [#allocation3], 0
    %8 = vsyncpa [#allocation6], 0
    %9 = vsyncpa [#allocation4], 0
    // Predicated region
    $region2: #{caps1d_forward.1} parent=1 // pred_check
      _
    $region3: #{caps1d_forward.1} parent=1 // pred_check_branch
      %11 = sbr.rel (0) target = $region5
    $region4: #{caps1d_forward.1} parent=1 // pred_region
      %13 = vsyncadd [#allocation3], 0
      %s14 = sshll.u32 %s0, 4
      %s15 = int_to_ptr.hbm [resolvable:$true] %s14
      %s16 = sshll.u32 [#allocation2], 4
      %s17 = int_to_ptr.vmem [resolvable:$true] %s16
      %22 = dma.hbm_to_vmem [thread:$0]  %s15, 2432, %s17, [#allocation3], 1216, 1216, 76
    $region5: #{caps1d_forward.1} parent=1 // pred_fallthru
      _
    // Predicated region
    $region6: #{caps1d_forward.1} parent=1 // pred_check
      _
    $region7: #{caps1d_forward.1} parent=1 // pred_check_branch
      %24 = sbr.rel (0) target = $region9
    $region8: #{caps1d_forward.1} parent=1 // pred_region
      %26 = vsyncadd [#allocation6], 0
      %s27 = sshll.u32 %s1, 4
      %s28 = int_to_ptr.hbm [resolvable:$true] %s27
      %s29 = sshll.u32 [#allocation5], 4
      %s30 = int_to_ptr.vmem [resolvable:$true] %s29
      %35 = dma.hbm_to_vmem [thread:$0]  %s28, 38912, %s30, [#allocation6], 2432, 2432, 152
    $region9: #{caps1d_forward.1} parent=1 // pred_fallthru
      _
    // Predicated region
    $region10: #{caps1d_forward.1} parent=1 // pred_check
      _
    $region11: #{caps1d_forward.1} parent=1 // pred_check_branch
      %37 = sbr.rel (0) target = $region13
    $region12: #{caps1d_forward.1} parent=1 // pred_region
      %39 = dma.done [#allocation3], 2432
    $region13: #{caps1d_forward.1} parent=1 // pred_fallthru
      _
    // Predicated region
    $region14: #{caps1d_forward.1} parent=1 // pred_check
      _
    $region15: #{caps1d_forward.1} parent=1 // pred_check_branch
      %41 = sbr.rel (0) target = $region17
    $region16: #{caps1d_forward.1} parent=1 // pred_region
      %43 = dma.done [#allocation6], 38912
    $region17: #{caps1d_forward.1} parent=1 // pred_fallthru
      _
    %v44 = vld [vmem:[#allocation2] sm:$0xff]
    %v45 = vld [vmem:[#allocation2 + $0x8] sm:$0xff]
    %v46 = vld [vmem:[#allocation2 + $0x10] sm:$0xff]
    %v47 = vld [vmem:[#allocation2 + $0x18] sm:$0xff]
    %v48 = vld [vmem:[#allocation2 + $0x20] sm:$0xff]
    %v49 = vld [vmem:[#allocation2 + $0x28] sm:$0xff]
    %v50 = vld [vmem:[#allocation2 + $0x30] sm:$0xff]
    %v51 = vld [vmem:[#allocation2 + $0x38] sm:$0xff]
    %v52 = vld [vmem:[#allocation2 + $0x40] sm:$0xff]
    %v53 = vld [vmem:[#allocation2 + $0x48] sm:$0xf]
    %v54 = vld [vmem:[#allocation2 + $0x4c] sm:$0xff]
    %v55 = vld [vmem:[#allocation2 + $0x54] sm:$0xff]
    %v56 = vld [vmem:[#allocation2 + $0x5c] sm:$0xff]
    %v57 = vld [vmem:[#allocation2 + $0x64] sm:$0xff]
    %v58 = vld [vmem:[#allocation2 + $0x6c] sm:$0xff]
    %v59 = vld [vmem:[#allocation2 + $0x74] sm:$0xff]
    %v60 = vld [vmem:[#allocation2 + $0x7c] sm:$0xff]
    %v61 = vld [vmem:[#allocation2 + $0x84] sm:$0xff]
    %v62 = vld [vmem:[#allocation2 + $0x8c] sm:$0xff]
    %v63 = vld [vmem:[#allocation2 + $0x94] sm:$0xf]
    %v64 = vld [vmem:[#allocation5] sm:$0xff]
    %v65 = vld [vmem:[#allocation5 + $0x8] sm:$0xff]
    %v66 = vld [vmem:[#allocation5 + $0x10] sm:$0xff]
    %v67 = vld [vmem:[#allocation5 + $0x18] sm:$0xff]
    %v68 = vld [vmem:[#allocation5 + $0x20] sm:$0xff]
    %v69 = vld [vmem:[#allocation5 + $0x28] sm:$0xff]
    %v70 = vld [vmem:[#allocation5 + $0x30] sm:$0xff]
    %v71 = vld [vmem:[#allocation5 + $0x38] sm:$0xff]
    %v72 = vld [vmem:[#allocation5 + $0x40] sm:$0xff]
    %v73 = vld [vmem:[#allocation5 + $0x48] sm:$0xff]
    %v74 = vld [vmem:[#allocation5 + $0x50] sm:$0xff]
    %v75 = vld [vmem:[#allocation5 + $0x58] sm:$0xff]
    %v76 = vld [vmem:[#allocation5 + $0x60] sm:$0xff]
    %v77 = vld [vmem:[#allocation5 + $0x68] sm:$0xff]
    %v78 = vld [vmem:[#allocation5 + $0x70] sm:$0xff]
    %v79 = vld [vmem:[#allocation5 + $0x78] sm:$0xff]
    %v80 = vld [vmem:[#allocation5 + $0x80] sm:$0xff]
    %v81 = vld [vmem:[#allocation5 + $0x88] sm:$0xff]
    %v82 = vld [vmem:[#allocation5 + $0x90] sm:$0xff]
    %v83 = vld [vmem:[#allocation5 + $0x98] sm:$0xff]
    %v84 = vld [vmem:[#allocation5 + $0xa0] sm:$0xff]
    %v85 = vld [vmem:[#allocation5 + $0xa8] sm:$0xff]
    %v86 = vld [vmem:[#allocation5 + $0xb0] sm:$0xff]
    %v87 = vld [vmem:[#allocation5 + $0xb8] sm:$0xff]
    %v88 = vld [vmem:[#allocation5 + $0xc0] sm:$0xff]
    %v89 = vld [vmem:[#allocation5 + $0xc8] sm:$0xff]
    %v90 = vld [vmem:[#allocation5 + $0xd0] sm:$0xff]
    %v91 = vld [vmem:[#allocation5 + $0xd8] sm:$0xff]
    %v92 = vld [vmem:[#allocation5 + $0xe0] sm:$0xff]
    %v93 = vld [vmem:[#allocation5 + $0xe8] sm:$0xff]
    %v94 = vld [vmem:[#allocation5 + $0xf0] sm:$0xff]
    %v95 = vld [vmem:[#allocation5 + $0xf8] sm:$0xff]
    %v96 = vld [vmem:[#allocation5 + $0x100] sm:$0xff]
    %v97 = vld [vmem:[#allocation5 + $0x108] sm:$0xff]
    %v98 = vld [vmem:[#allocation5 + $0x110] sm:$0xff]
    %v99 = vld [vmem:[#allocation5 + $0x118] sm:$0xff]
    %v100 = vld [vmem:[#allocation5 + $0x120] sm:$0xff]
    %v101 = vld [vmem:[#allocation5 + $0x128] sm:$0xff]
    %v102 = vld [vmem:[#allocation5 + $0x4c0] sm:$0xff]
    %v103 = vld [vmem:[#allocation5 + $0x4c8] sm:$0xff]
    %v104 = vld [vmem:[#allocation5 + $0x4d0] sm:$0xff]
    %v105 = vld [vmem:[#allocation5 + $0x4d8] sm:$0xff]
    %v106 = vld [vmem:[#allocation5 + $0x4e0] sm:$0xff]
    %v107 = vld [vmem:[#allocation5 + $0x4e8] sm:$0xff]
    %v108 = vld [vmem:[#allocation5 + $0x4f0] sm:$0xff]
    %v109 = vld [vmem:[#allocation5 + $0x4f8] sm:$0xff]
    %v110 = vld [vmem:[#allocation5 + $0x500] sm:$0xff]
    %v111 = vld [vmem:[#allocation5 + $0x508] sm:$0xff]
    %v112 = vld [vmem:[#allocation5 + $0x510] sm:$0xff]
    %v113 = vld [vmem:[#allocation5 + $0x518] sm:$0xff]
    %v114 = vld [vmem:[#allocation5 + $0x520] sm:$0xff]
    %v115 = vld [vmem:[#allocation5 + $0x528] sm:$0xff]
    %v116 = vld [vmem:[#allocation5 + $0x530] sm:$0xff]
    %v117 = vld [vmem:[#allocation5 + $0x538] sm:$0xff]
    %v118 = vld [vmem:[#allocation5 + $0x540] sm:$0xff]
    %v119 = vld [vmem:[#allocation5 + $0x548] sm:$0xff]
    %v120 = vld [vmem:[#allocation5 + $0x550] sm:$0xff]
    %v121 = vld [vmem:[#allocation5 + $0x558] sm:$0xff]
    %v122 = vld [vmem:[#allocation5 + $0x560] sm:$0xff]
    %v123 = vld [vmem:[#allocation5 + $0x568] sm:$0xff]
    %v124 = vld [vmem:[#allocation5 + $0x570] sm:$0xff]
    %v125 = vld [vmem:[#allocation5 + $0x578] sm:$0xff]
    %v126 = vld [vmem:[#allocation5 + $0x580] sm:$0xff]
    %v127 = vld [vmem:[#allocation5 + $0x588] sm:$0xff]
    %v128 = vld [vmem:[#allocation5 + $0x590] sm:$0xff]
    %v129 = vld [vmem:[#allocation5 + $0x598] sm:$0xff]
    %v130 = vld [vmem:[#allocation5 + $0x5a0] sm:$0xff]
    %v131 = vld [vmem:[#allocation5 + $0x5a8] sm:$0xff]
    %v132 = vld [vmem:[#allocation5 + $0x5b0] sm:$0xff]
    %v133 = vld [vmem:[#allocation5 + $0x5b8] sm:$0xff]
    %v134 = vld [vmem:[#allocation5 + $0x5c0] sm:$0xff]
    %v135 = vld [vmem:[#allocation5 + $0x5c8] sm:$0xff]
    %v136 = vld [vmem:[#allocation5 + $0x5d0] sm:$0xff]
    %v137 = vld [vmem:[#allocation5 + $0x5d8] sm:$0xff]
    %v138 = vld [vmem:[#allocation5 + $0x5e0] sm:$0xff]
    %v139 = vld [vmem:[#allocation5 + $0x5e8] sm:$0xff]
    %v160 = vperm.slane %v44, 0
    %v161 = vperm.slane %v44, 4
    %v162 = vperm.slane %v45, 0
    %v163 = vperm.slane %v45, 4
    %v164 = vperm.slane %v46, 0
    %v165 = vperm.slane %v46, 4
    %v166 = vperm.slane %v47, 0
    %v167 = vperm.slane %v47, 4
    %v168 = vperm.slane %v48, 0
    %v169 = vperm.slane %v48, 4
    %v170 = vperm.slane %v49, 0
    %v171 = vperm.slane %v49, 4
    %v172 = vperm.slane %v50, 0
    %v173 = vperm.slane %v50, 4
    %v174 = vperm.slane %v51, 0
    %v175 = vperm.slane %v51, 4
    %v176 = vperm.slane %v52, 0
    %v177 = vperm.slane %v52, 4
    %v178 = vperm.slane %v53, 0
    %v179 = vperm.slane %v54, 0
    %v180 = vperm.slane %v54, 4
    %v181 = vperm.slane %v55, 0
    %v182 = vperm.slane %v55, 4
    %v183 = vperm.slane %v56, 0
    %v184 = vperm.slane %v56, 4
    %v185 = vperm.slane %v57, 0
    %v186 = vperm.slane %v57, 4
    %v187 = vperm.slane %v58, 0
    %v188 = vperm.slane %v58, 4
    %v189 = vperm.slane %v59, 0
    %v190 = vperm.slane %v59, 4
    %v191 = vperm.slane %v60, 0
    %v192 = vperm.slane %v60, 4
    %v193 = vperm.slane %v61, 0
    %v194 = vperm.slane %v61, 4
    %v195 = vperm.slane %v62, 0
    %v196 = vperm.slane %v62, 4
    %v197 = vperm.slane %v63, 0
    %v236 = vperm.slane %v160, 0
    %v237 = vperm.slane %v161, 0
    %v238 = vperm.slane %v162, 0
    %v239 = vperm.slane %v163, 0
    %v240 = vperm.slane %v164, 0
    %v241 = vperm.slane %v165, 0
    %v242 = vperm.slane %v166, 0
    %v243 = vperm.slane %v167, 0
    %v244 = vperm.slane %v168, 0
    %v245 = vperm.slane %v169, 0
    %v246 = vperm.slane %v170, 0
    %v247 = vperm.slane %v171, 0
    %v248 = vperm.slane %v172, 0
    %v249 = vperm.slane %v173, 0
    %v250 = vperm.slane %v174, 0
    %v251 = vperm.slane %v175, 0
    %v252 = vperm.slane %v176, 0
    %v253 = vperm.slane %v177, 0
    %v254 = vperm.slane %v178, 0
    %v255 = vperm.slane %v179, 0
    %v256 = vperm.slane %v180, 0
    %v257 = vperm.slane %v181, 0
    %v258 = vperm.slane %v182, 0
    %v259 = vperm.slane %v183, 0
    %v260 = vperm.slane %v184, 0
    %v261 = vperm.slane %v185, 0
    %v262 = vperm.slane %v186, 0
    %v263 = vperm.slane %v187, 0
    %v264 = vperm.slane %v188, 0
    %v265 = vperm.slane %v189, 0
    %v266 = vperm.slane %v190, 0
    %v267 = vperm.slane %v191, 0
    %v268 = vperm.slane %v192, 0
    %v269 = vperm.slane %v193, 0
    %v270 = vperm.slane %v194, 0
    %v271 = vperm.slane %v195, 0
    %v272 = vperm.slane %v196, 0
    %v273 = vperm.slane %v197, 0
    %v274 = vmul.f32 %v64, %v236
    %v275 = vmul.f32 %v65, %v237
    %v276 = vmul.f32 %v66, %v238
    %v277 = vmul.f32 %v67, %v239
    %v278 = vmul.f32 %v68, %v240
    %v279 = vmul.f32 %v69, %v241
    %v280 = vmul.f32 %v70, %v242
    %v281 = vmul.f32 %v71, %v243
    %v282 = vmul.f32 %v72, %v244
    %v283 = vmul.f32 %v73, %v245
    %v284 = vmul.f32 %v74, %v246
    %v285 = vmul.f32 %v75, %v247
    %v286 = vmul.f32 %v76, %v248
    %v287 = vmul.f32 %v77, %v249
    %v288 = vmul.f32 %v78, %v250
    %v289 = vmul.f32 %v79, %v251
    %v290 = vmul.f32 %v80, %v252
    %v291 = vmul.f32 %v81, %v253
    %v292 = vmul.f32 %v82, %v254
    %v293 = vmul.f32 %v83, %v236
    %v294 = vmul.f32 %v84, %v237
    %v295 = vmul.f32 %v85, %v238
    %v296 = vmul.f32 %v86, %v239
    %v297 = vmul.f32 %v87, %v240
    %v298 = vmul.f32 %v88, %v241
    %v299 = vmul.f32 %v89, %v242
    %v300 = vmul.f32 %v90, %v243
    %v301 = vmul.f32 %v91, %v244
    %v302 = vmul.f32 %v92, %v245
    %v303 = vmul.f32 %v93, %v246
    %v304 = vmul.f32 %v94, %v247
    %v305 = vmul.f32 %v95, %v248
    %v306 = vmul.f32 %v96, %v249
    %v307 = vmul.f32 %v97, %v250
    %v308 = vmul.f32 %v98, %v251
    %v309 = vmul.f32 %v99, %v252
    %v310 = vmul.f32 %v100, %v253
    %v311 = vmul.f32 %v101, %v254
    %v312 = vmul.f32 %v102, %v236
    %v313 = vmul.f32 %v103, %v237
    %v314 = vmul.f32 %v104, %v238
    %v315 = vmul.f32 %v105, %v239
    %v316 = vmul.f32 %v106, %v240
    %v317 = vmul.f32 %v107, %v241
    %v318 = vmul.f32 %v108, %v242
    %v319 = vmul.f32 %v109, %v243
    %v320 = vmul.f32 %v110, %v244
    %v321 = vmul.f32 %v111, %v245
    %v322 = vmul.f32 %v112, %v246
    %v323 = vmul.f32 %v113, %v247
    %v324 = vmul.f32 %v114, %v248
    %v325 = vmul.f32 %v115, %v249
    %v326 = vmul.f32 %v116, %v250
    %v327 = vmul.f32 %v117, %v251
    %v328 = vmul.f32 %v118, %v252
    %v329 = vmul.f32 %v119, %v253
    %v330 = vmul.f32 %v120, %v254
    %v331 = vmul.f32 %v121, %v236
    %v332 = vmul.f32 %v122, %v237
    %v333 = vmul.f32 %v123, %v238
    %v334 = vmul.f32 %v124, %v239
    %v335 = vmul.f32 %v125, %v240
    %v336 = vmul.f32 %v126, %v241
    %v337 = vmul.f32 %v127, %v242
    %v338 = vmul.f32 %v128, %v243
    %v339 = vmul.f32 %v129, %v244
    %v340 = vmul.f32 %v130, %v245
    %v341 = vmul.f32 %v131, %v246
    %v342 = vmul.f32 %v132, %v247
    %v343 = vmul.f32 %v133, %v248
    %v344 = vmul.f32 %v134, %v249
    %v345 = vmul.f32 %v135, %v250
    %v346 = vmul.f32 %v136, %v251
    %v347 = vmul.f32 %v137, %v252
    %v348 = vmul.f32 %v138, %v253
    %v349 = vmul.f32 %v139, %v254
    %v350 = vmul.f32 %v64, %v255
    %v351 = vmul.f32 %v65, %v256
    %v352 = vmul.f32 %v66, %v257
    %v353 = vmul.f32 %v67, %v258
    %v354 = vmul.f32 %v68, %v259
    %v355 = vmul.f32 %v69, %v260
    %v356 = vmul.f32 %v70, %v261
    %v357 = vmul.f32 %v71, %v262
    %v358 = vmul.f32 %v72, %v263
    %v359 = vmul.f32 %v73, %v264
    %v360 = vmul.f32 %v74, %v265
    %v361 = vmul.f32 %v75, %v266
    %v362 = vmul.f32 %v76, %v267
    %v363 = vmul.f32 %v77, %v268
    %v364 = vmul.f32 %v78, %v269
    %v365 = vmul.f32 %v79, %v270
    %v366 = vmul.f32 %v80, %v271
    %v367 = vmul.f32 %v81, %v272
    %v368 = vmul.f32 %v82, %v273
    %v369 = vmul.f32 %v83, %v255
    %v370 = vmul.f32 %v84, %v256
    %v371 = vmul.f32 %v85, %v257
    %v372 = vmul.f32 %v86, %v258
    %v373 = vmul.f32 %v87, %v259
    %v374 = vmul.f32 %v88, %v260
    %v375 = vmul.f32 %v89, %v261
    %v376 = vmul.f32 %v90, %v262
    %v377 = vmul.f32 %v91, %v263
    %v378 = vmul.f32 %v92, %v264
    %v379 = vmul.f32 %v93, %v265
    %v380 = vmul.f32 %v94, %v266
    %v381 = vmul.f32 %v95, %v267
    %v382 = vmul.f32 %v96, %v268
    %v383 = vmul.f32 %v97, %v269
    %v384 = vmul.f32 %v98, %v270
    %v385 = vmul.f32 %v99, %v271
    %v386 = vmul.f32 %v100, %v272
    %v387 = vmul.f32 %v101, %v273
    %v388 = vmul.f32 %v102, %v255
    %v389 = vmul.f32 %v103, %v256
    %v390 = vmul.f32 %v104, %v257
    %v391 = vmul.f32 %v105, %v258
    %v392 = vmul.f32 %v106, %v259
    %v393 = vmul.f32 %v107, %v260
    %v394 = vmul.f32 %v108, %v261
    %v395 = vmul.f32 %v109, %v262
    %v396 = vmul.f32 %v110, %v263
    %v397 = vmul.f32 %v111, %v264
    %v398 = vmul.f32 %v112, %v265
    %v399 = vmul.f32 %v113, %v266
    %v400 = vmul.f32 %v114, %v267
    %v401 = vmul.f32 %v115, %v268
    %v402 = vmul.f32 %v116, %v269
    %v403 = vmul.f32 %v117, %v270
    %v404 = vmul.f32 %v118, %v271
    %v405 = vmul.f32 %v119, %v272
    %v406 = vmul.f32 %v120, %v273
    %v407 = vmul.f32 %v121, %v255
    %v408 = vmul.f32 %v122, %v256
    %v409 = vmul.f32 %v123, %v257
    %v410 = vmul.f32 %v124, %v258
    %v411 = vmul.f32 %v125, %v259
    %v412 = vmul.f32 %v126, %v260
    %v413 = vmul.f32 %v127, %v261
    %v414 = vmul.f32 %v128, %v262
    %v415 = vmul.f32 %v129, %v263
    %v416 = vmul.f32 %v130, %v264
    %v417 = vmul.f32 %v131, %v265
    %v418 = vmul.f32 %v132, %v266
    %v419 = vmul.f32 %v133, %v267
    %v420 = vmul.f32 %v134, %v268
    %v421 = vmul.f32 %v135, %v269
    %v422 = vmul.f32 %v136, %v270
    %v423 = vmul.f32 %v137, %v271
    %v424 = vmul.f32 %v138, %v272
    %v425 = vmul.f32 %v139, %v273
    %v426 = vld [vmem:[#allocation5 + $0x130] sm:$0xff]
    %v427 = vld [vmem:[#allocation5 + $0x138] sm:$0xff]
    %v428 = vld [vmem:[#allocation5 + $0x140] sm:$0xff]
    %v429 = vld [vmem:[#allocation5 + $0x148] sm:$0xff]
    %v430 = vld [vmem:[#allocation5 + $0x150] sm:$0xff]
    %v431 = vld [vmem:[#allocation5 + $0x158] sm:$0xff]
    %v432 = vld [vmem:[#allocation5 + $0x160] sm:$0xff]
    %v433 = vld [vmem:[#allocation5 + $0x168] sm:$0xff]
    %v434 = vld [vmem:[#allocation5 + $0x170] sm:$0xff]
    %v435 = vld [vmem:[#allocation5 + $0x178] sm:$0xff]
    %v436 = vld [vmem:[#allocation5 + $0x180] sm:$0xff]
    %v437 = vld [vmem:[#allocation5 + $0x188] sm:$0xff]
    %v438 = vld [vmem:[#allocation5 + $0x190] sm:$0xff]
    %v439 = vld [vmem:[#allocation5 + $0x198] sm:$0xff]
    %v440 = vld [vmem:[#allocation5 + $0x1a0] sm:$0xff]
    %v441 = vld [vmem:[#allocation5 + $0x1a8] sm:$0xff]
    %v442 = vld [vmem:[#allocation5 + $0x1b0] sm:$0xff]
    %v443 = vld [vmem:[#allocation5 + $0x1b8] sm:$0xff]
    %v444 = vld [vmem:[#allocation5 + $0x1c0] sm:$0xff]
    %v445 = vld [vmem:[#allocation5 + $0x1c8] sm:$0xff]
    %v446 = vld [vmem:[#allocation5 + $0x1d0] sm:$0xff]
    %v447 = vld [vmem:[#allocation5 + $0x1d8] sm:$0xff]
    %v448 = vld [vmem:[#allocation5 + $0x1e0] sm:$0xff]
    %v449 = vld [vmem:[#allocation5 + $0x1e8] sm:$0xff]
    %v450 = vld [vmem:[#allocation5 + $0x1f0] sm:$0xff]
    %v451 = vld [vmem:[#allocation5 + $0x1f8] sm:$0xff]
    %v452 = vld [vmem:[#allocation5 + $0x200] sm:$0xff]
    %v453 = vld [vmem:[#allocation5 + $0x208] sm:$0xff]
    %v454 = vld [vmem:[#allocation5 + $0x210] sm:$0xff]
    %v455 = vld [vmem:[#allocation5 + $0x218] sm:$0xff]
    %v456 = vld [vmem:[#allocation5 + $0x220] sm:$0xff]
    %v457 = vld [vmem:[#allocation5 + $0x228] sm:$0xff]
    %v458 = vld [vmem:[#allocation5 + $0x230] sm:$0xff]
    %v459 = vld [vmem:[#allocation5 + $0x238] sm:$0xff]
    %v460 = vld [vmem:[#allocation5 + $0x240] sm:$0xff]
    %v461 = vld [vmem:[#allocation5 + $0x248] sm:$0xff]
    %v462 = vld [vmem:[#allocation5 + $0x250] sm:$0xff]
    %v463 = vld [vmem:[#allocation5 + $0x258] sm:$0xff]
    %v464 = vld [vmem:[#allocation5 + $0x5f0] sm:$0xff]
    %v465 = vld [vmem:[#allocation5 + $0x5f8] sm:$0xff]
    %v466 = vld [vmem:[#allocation5 + $0x600] sm:$0xff]
    %v467 = vld [vmem:[#allocation5 + $0x608] sm:$0xff]
    %v468 = vld [vmem:[#allocation5 + $0x610] sm:$0xff]
    %v469 = vld [vmem:[#allocation5 + $0x618] sm:$0xff]
    %v470 = vld [vmem:[#allocation5 + $0x620] sm:$0xff]
    %v471 = vld [vmem:[#allocation5 + $0x628] sm:$0xff]
    %v472 = vld [vmem:[#allocation5 + $0x630] sm:$0xff]
    %v473 = vld [vmem:[#allocation5 + $0x638] sm:$0xff]
    %v474 = vld [vmem:[#allocation5 + $0x640] sm:$0xff]
    %v475 = vld [vmem:[#allocation5 + $0x648] sm:$0xff]
    %v476 = vld [vmem:[#allocation5 + $0x650] sm:$0xff]
    %v477 = vld [vmem:[#allocation5 + $0x658] sm:$0xff]
    %v478 = vld [vmem:[#allocation5 + $0x660] sm:$0xff]
    %v479 = vld [vmem:[#allocation5 + $0x668] sm:$0xff]
    %v480 = vld [vmem:[#allocation5 + $0x670] sm:$0xff]
    %v481 = vld [vmem:[#allocation5 + $0x678] sm:$0xff]
    %v482 = vld [vmem:[#allocation5 + $0x680] sm:$0xff]
    %v483 = vld [vmem:[#allocation5 + $0x688] sm:$0xff]
    %v484 = vld [vmem:[#allocation5 + $0x690] sm:$0xff]
    %v485 = vld [vmem:[#allocation5 + $0x698] sm:$0xff]
    %v486 = vld [vmem:[#allocation5 + $0x6a0] sm:$0xff]
    %v487 = vld [vmem:[#allocation5 + $0x6a8] sm:$0xff]
    %v488 = vld [vmem:[#allocation5 + $0x6b0] sm:$0xff]
    %v489 = vld [vmem:[#allocation5 + $0x6b8] sm:$0xff]
    %v490 = vld [vmem:[#allocation5 + $0x6c0] sm:$0xff]
    %v491 = vld [vmem:[#allocation5 + $0x6c8] sm:$0xff]
    %v492 = vld [vmem:[#allocation5 + $0x6d0] sm:$0xff]
    %v493 = vld [vmem:[#allocation5 + $0x6d8] sm:$0xff]
    %v494 = vld [vmem:[#allocation5 + $0x6e0] sm:$0xff]
    %v495 = vld [vmem:[#allocation5 + $0x6e8] sm:$0xff]
    %v496 = vld [vmem:[#allocation5 + $0x6f0] sm:$0xff]
    %v497 = vld [vmem:[#allocation5 + $0x6f8] sm:$0xff]
    %v498 = vld [vmem:[#allocation5 + $0x700] sm:$0xff]
    %v499 = vld [vmem:[#allocation5 + $0x708] sm:$0xff]
    %v500 = vld [vmem:[#allocation5 + $0x710] sm:$0xff]
    %v501 = vld [vmem:[#allocation5 + $0x718] sm:$0xff]
    %v502 = vperm.slane %v44, 1
    %v503 = vperm.slane %v44, 5
    %v504 = vperm.slane %v45, 1
    %v505 = vperm.slane %v45, 5
    %v506 = vperm.slane %v46, 1
    %v507 = vperm.slane %v46, 5
    %v508 = vperm.slane %v47, 1
    %v509 = vperm.slane %v47, 5
    %v510 = vperm.slane %v48, 1
    %v511 = vperm.slane %v48, 5
    %v512 = vperm.slane %v49, 1
    %v513 = vperm.slane %v49, 5
    %v514 = vperm.slane %v50, 1
    %v515 = vperm.slane %v50, 5
    %v516 = vperm.slane %v51, 1
    %v517 = vperm.slane %v51, 5
    %v518 = vperm.slane %v52, 1
    %v519 = vperm.slane %v52, 5
    %v520 = vperm.slane %v53, 1
    %v521 = vperm.slane %v54, 1
    %v522 = vperm.slane %v54, 5
    %v523 = vperm.slane %v55, 1
    %v524 = vperm.slane %v55, 5
    %v525 = vperm.slane %v56, 1
    %v526 = vperm.slane %v56, 5
    %v527 = vperm.slane %v57, 1
    %v528 = vperm.slane %v57, 5
    %v529 = vperm.slane %v58, 1
    %v530 = vperm.slane %v58, 5
    %v531 = vperm.slane %v59, 1
    %v532 = vperm.slane %v59, 5
    %v533 = vperm.slane %v60, 1
    %v534 = vperm.slane %v60, 5
    %v535 = vperm.slane %v61, 1
    %v536 = vperm.slane %v61, 5
    %v537 = vperm.slane %v62, 1
    %v538 = vperm.slane %v62, 5
    %v539 = vperm.slane %v63, 1
    %v578 = vperm.slane %v502, 1
    %v579 = vperm.slane %v503, 1
    %v580 = vperm.slane %v504, 1
    %v581 = vperm.slane %v505, 1
    %v582 = vperm.slane %v506, 1
    %v583 = vperm.slane %v507, 1
    %v584 = vperm.slane %v508, 1
    %v585 = vperm.slane %v509, 1
    %v586 = vperm.slane %v510, 1
    %v587 = vperm.slane %v511, 1
    %v588 = vperm.slane %v512, 1
    %v589 = vperm.slane %v513, 1
    %v590 = vperm.slane %v514, 1
    %v591 = vperm.slane %v515, 1
    %v592 = vperm.slane %v516, 1
    %v593 = vperm.slane %v517, 1
    %v594 = vperm.slane %v518, 1
    %v595 = vperm.slane %v519, 1
    %v596 = vperm.slane %v520, 1
    %v597 = vperm.slane %v521, 1
    %v598 = vperm.slane %v522, 1
    %v599 = vperm.slane %v523, 1
    %v600 = vperm.slane %v524, 1
    %v601 = vperm.slane %v525, 1
    %v602 = vperm.slane %v526, 1
    %v603 = vperm.slane %v527, 1
    %v604 = vperm.slane %v528, 1
    %v605 = vperm.slane %v529, 1
    %v606 = vperm.slane %v530, 1
    %v607 = vperm.slane %v531, 1
    %v608 = vperm.slane %v532, 1
    %v609 = vperm.slane %v533, 1
    %v610 = vperm.slane %v534, 1
    %v611 = vperm.slane %v535, 1
    %v612 = vperm.slane %v536, 1
    %v613 = vperm.slane %v537, 1
    %v614 = vperm.slane %v538, 1
    %v615 = vperm.slane %v539, 1
    %v616 = vmul.f32 %v426, %v578
    %v617 = vmul.f32 %v427, %v579
    %v618 = vmul.f32 %v428, %v580
    %v619 = vmul.f32 %v429, %v581
    %v620 = vmul.f32 %v430, %v582
    %v621 = vmul.f32 %v431, %v583
    %v622 = vmul.f32 %v432, %v584
    %v623 = vmul.f32 %v433, %v585
    %v624 = vmul.f32 %v434, %v586
    %v625 = vmul.f32 %v435, %v587
    %v626 = vmul.f32 %v436, %v588
    %v627 = vmul.f32 %v437, %v589
    %v628 = vmul.f32 %v438, %v590
    %v629 = vmul.f32 %v439, %v591
    %v630 = vmul.f32 %v440, %v592
    %v631 = vmul.f32 %v441, %v593
    %v632 = vmul.f32 %v442, %v594
    %v633 = vmul.f32 %v443, %v595
    %v634 = vmul.f32 %v444, %v596
    %v635 = vmul.f32 %v445, %v578
    %v636 = vmul.f32 %v446, %v579
    %v637 = vmul.f32 %v447, %v580
    %v638 = vmul.f32 %v448, %v581
    %v639 = vmul.f32 %v449, %v582
    %v640 = vmul.f32 %v450, %v583
    %v641 = vmul.f32 %v451, %v584
    %v642 = vmul.f32 %v452, %v585
    %v643 = vmul.f32 %v453, %v586
    %v644 = vmul.f32 %v454, %v587
    %v645 = vmul.f32 %v455, %v588
    %v646 = vmul.f32 %v456, %v589
    %v647 = vmul.f32 %v457, %v590
    %v648 = vmul.f32 %v458, %v591
    %v649 = vmul.f32 %v459, %v592
    %v650 = vmul.f32 %v460, %v593
    %v651 = vmul.f32 %v461, %v594
    %v652 = vmul.f32 %v462, %v595
    %v653 = vmul.f32 %v463, %v596
    %v654 = vmul.f32 %v464, %v578
    %v655 = vmul.f32 %v465, %v579
    %v656 = vmul.f32 %v466, %v580
    %v657 = vmul.f32 %v467, %v581
    %v658 = vmul.f32 %v468, %v582
    %v659 = vmul.f32 %v469, %v583
    %v660 = vmul.f32 %v470, %v584
    %v661 = vmul.f32 %v471, %v585
    %v662 = vmul.f32 %v472, %v586
    %v663 = vmul.f32 %v473, %v587
    %v664 = vmul.f32 %v474, %v588
    %v665 = vmul.f32 %v475, %v589
    %v666 = vmul.f32 %v476, %v590
    %v667 = vmul.f32 %v477, %v591
    %v668 = vmul.f32 %v478, %v592
    %v669 = vmul.f32 %v479, %v593
    %v670 = vmul.f32 %v480, %v594
    %v671 = vmul.f32 %v481, %v595
    %v672 = vmul.f32 %v482, %v596
    %v673 = vmul.f32 %v483, %v578
    %v674 = vmul.f32 %v484, %v579
    %v675 = vmul.f32 %v485, %v580
    %v676 = vmul.f32 %v486, %v581
    %v677 = vmul.f32 %v487, %v582
    %v678 = vmul.f32 %v488, %v583
    %v679 = vmul.f32 %v489, %v584
    %v680 = vmul.f32 %v490, %v585
    %v681 = vmul.f32 %v491, %v586
    %v682 = vmul.f32 %v492, %v587
    %v683 = vmul.f32 %v493, %v588
    %v684 = vmul.f32 %v494, %v589
    %v685 = vmul.f32 %v495, %v590
    %v686 = vmul.f32 %v496, %v591
    %v687 = vmul.f32 %v497, %v592
    %v688 = vmul.f32 %v498, %v593
    %v689 = vmul.f32 %v499, %v594
    %v690 = vmul.f32 %v500, %v595
    %v691 = vmul.f32 %v501, %v596
    %v692 = vmul.f32 %v426, %v597
    %v693 = vmul.f32 %v427, %v598
    %v694 = vmul.f32 %v428, %v599
    %v695 = vmul.f32 %v429, %v600
    %v696 = vmul.f32 %v430, %v601
    %v697 = vmul.f32 %v431, %v602
    %v698 = vmul.f32 %v432, %v603
    %v699 = vmul.f32 %v433, %v604
    %v700 = vmul.f32 %v434, %v605
    %v701 = vmul.f32 %v435, %v606
    %v702 = vmul.f32 %v436, %v607
    %v703 = vmul.f32 %v437, %v608
    %v704 = vmul.f32 %v438, %v609
    %v705 = vmul.f32 %v439, %v610
    %v706 = vmul.f32 %v440, %v611
    %v707 = vmul.f32 %v441, %v612
    %v708 = vmul.f32 %v442, %v613
    %v709 = vmul.f32 %v443, %v614
    %v710 = vmul.f32 %v444, %v615
    %v711 = vmul.f32 %v445, %v597
    %v712 = vmul.f32 %v446, %v598
    %v713 = vmul.f32 %v447, %v599
    %v714 = vmul.f32 %v448, %v600
    %v715 = vmul.f32 %v449, %v601
    %v716 = vmul.f32 %v450, %v602
    %v717 = vmul.f32 %v451, %v603
    %v718 = vmul.f32 %v452, %v604
    %v719 = vmul.f32 %v453, %v605
    %v720 = vmul.f32 %v454, %v606
    %v721 = vmul.f32 %v455, %v607
    %v722 = vmul.f32 %v456, %v608
    %v723 = vmul.f32 %v457, %v609
    %v724 = vmul.f32 %v458, %v610
    %v725 = vmul.f32 %v459, %v611
    %v726 = vmul.f32 %v460, %v612
    %v727 = vmul.f32 %v461, %v613
    %v728 = vmul.f32 %v462, %v614
    %v729 = vmul.f32 %v463, %v615
    %v730 = vmul.f32 %v464, %v597
    %v731 = vmul.f32 %v465, %v598
    %v732 = vmul.f32 %v466, %v599
    %v733 = vmul.f32 %v467, %v600
    %v734 = vmul.f32 %v468, %v601
    %v735 = vmul.f32 %v469, %v602
    %v736 = vmul.f32 %v470, %v603
    %v737 = vmul.f32 %v471, %v604
    %v738 = vmul.f32 %v472, %v605
    %v739 = vmul.f32 %v473, %v606
    %v740 = vmul.f32 %v474, %v607
    %v741 = vmul.f32 %v475, %v608
    %v742 = vmul.f32 %v476, %v609
    %v743 = vmul.f32 %v477, %v610
    %v744 = vmul.f32 %v478, %v611
    %v745 = vmul.f32 %v479, %v612
    %v746 = vmul.f32 %v480, %v613
    %v747 = vmul.f32 %v481, %v614
    %v748 = vmul.f32 %v482, %v615
    %v749 = vmul.f32 %v483, %v597
    %v750 = vmul.f32 %v484, %v598
    %v751 = vmul.f32 %v485, %v599
    %v752 = vmul.f32 %v486, %v600
    %v753 = vmul.f32 %v487, %v601
    %v754 = vmul.f32 %v488, %v602
    %v755 = vmul.f32 %v489, %v603
    %v756 = vmul.f32 %v490, %v604
    %v757 = vmul.f32 %v491, %v605
    %v758 = vmul.f32 %v492, %v606
    %v759 = vmul.f32 %v493, %v607
    %v760 = vmul.f32 %v494, %v608
    %v761 = vmul.f32 %v495, %v609
    %v762 = vmul.f32 %v496, %v610
    %v763 = vmul.f32 %v497, %v611
    %v764 = vmul.f32 %v498, %v612
    %v765 = vmul.f32 %v499, %v613
    %v766 = vmul.f32 %v500, %v614
    %v767 = vmul.f32 %v501, %v615
    %v768 = vadd.f32 %v274, %v616
    %v769 = vadd.f32 %v275, %v617
    %v770 = vadd.f32 %v276, %v618
    %v771 = vadd.f32 %v277, %v619
    %v772 = vadd.f32 %v278, %v620
    %v773 = vadd.f32 %v279, %v621
    %v774 = vadd.f32 %v280, %v622
    %v775 = vadd.f32 %v281, %v623
    %v776 = vadd.f32 %v282, %v624
    %v777 = vadd.f32 %v283, %v625
    %v778 = vadd.f32 %v284, %v626
    %v779 = vadd.f32 %v285, %v627
    %v780 = vadd.f32 %v286, %v628
    %v781 = vadd.f32 %v287, %v629
    %v782 = vadd.f32 %v288, %v630
    %v783 = vadd.f32 %v289, %v631
    %v784 = vadd.f32 %v290, %v632
    %v785 = vadd.f32 %v291, %v633
    %v786 = vadd.f32 %v292, %v634
    %v787 = vadd.f32 %v293, %v635
    %v788 = vadd.f32 %v294, %v636
    %v789 = vadd.f32 %v295, %v637
    %v790 = vadd.f32 %v296, %v638
    %v791 = vadd.f32 %v297, %v639
    %v792 = vadd.f32 %v298, %v640
    %v793 = vadd.f32 %v299, %v641
    %v794 = vadd.f32 %v300, %v642
    %v795 = vadd.f32 %v301, %v643
    %v796 = vadd.f32 %v302, %v644
    %v797 = vadd.f32 %v303, %v645
    %v798 = vadd.f32 %v304, %v646
    %v799 = vadd.f32 %v305, %v647
    %v800 = vadd.f32 %v306, %v648
    %v801 = vadd.f32 %v307, %v649
    %v802 = vadd.f32 %v308, %v650
    %v803 = vadd.f32 %v309, %v651
    %v804 = vadd.f32 %v310, %v652
    %v805 = vadd.f32 %v311, %v653
    %v806 = vadd.f32 %v312, %v654
    %v807 = vadd.f32 %v313, %v655
    %v808 = vadd.f32 %v314, %v656
    %v809 = vadd.f32 %v315, %v657
    %v810 = vadd.f32 %v316, %v658
    %v811 = vadd.f32 %v317, %v659
    %v812 = vadd.f32 %v318, %v660
    %v813 = vadd.f32 %v319, %v661
    %v814 = vadd.f32 %v320, %v662
    %v815 = vadd.f32 %v321, %v663
    %v816 = vadd.f32 %v322, %v664
    %v817 = vadd.f32 %v323, %v665
    %v818 = vadd.f32 %v324, %v666
    %v819 = vadd.f32 %v325, %v667
    %v820 = vadd.f32 %v326, %v668
    %v821 = vadd.f32 %v327, %v669
    %v822 = vadd.f32 %v328, %v670
    %v823 = vadd.f32 %v329, %v671
    %v824 = vadd.f32 %v330, %v672
    %v825 = vadd.f32 %v331, %v673
    %v826 = vadd.f32 %v332, %v674
    %v827 = vadd.f32 %v333, %v675
    %v828 = vadd.f32 %v334, %v676
    %v829 = vadd.f32 %v335, %v677
    %v830 = vadd.f32 %v336, %v678
    %v831 = vadd.f32 %v337, %v679
    %v832 = vadd.f32 %v338, %v680
    %v833 = vadd.f32 %v339, %v681
    %v834 = vadd.f32 %v340, %v682
    %v835 = vadd.f32 %v341, %v683
    %v836 = vadd.f32 %v342, %v684
    %v837 = vadd.f32 %v343, %v685
    %v838 = vadd.f32 %v344, %v686
    %v839 = vadd.f32 %v345, %v687
    %v840 = vadd.f32 %v346, %v688
    %v841 = vadd.f32 %v347, %v689
    %v842 = vadd.f32 %v348, %v690
    %v843 = vadd.f32 %v349, %v691
    %v844 = vadd.f32 %v350, %v692
    %v845 = vadd.f32 %v351, %v693
    %v846 = vadd.f32 %v352, %v694
    %v847 = vadd.f32 %v353, %v695
    %v848 = vadd.f32 %v354, %v696
    %v849 = vadd.f32 %v355, %v697
    %v850 = vadd.f32 %v356, %v698
    %v851 = vadd.f32 %v357, %v699
    %v852 = vadd.f32 %v358, %v700
    %v853 = vadd.f32 %v359, %v701
    %v854 = vadd.f32 %v360, %v702
    %v855 = vadd.f32 %v361, %v703
    %v856 = vadd.f32 %v362, %v704
    %v857 = vadd.f32 %v363, %v705
    %v858 = vadd.f32 %v364, %v706
    %v859 = vadd.f32 %v365, %v707
    %v860 = vadd.f32 %v366, %v708
    %v861 = vadd.f32 %v367, %v709
    %v862 = vadd.f32 %v368, %v710
    %v863 = vadd.f32 %v369, %v711
    %v864 = vadd.f32 %v370, %v712
    %v865 = vadd.f32 %v371, %v713
    %v866 = vadd.f32 %v372, %v714
    %v867 = vadd.f32 %v373, %v715
    %v868 = vadd.f32 %v374, %v716
    %v869 = vadd.f32 %v375, %v717
    %v870 = vadd.f32 %v376, %v718
    %v871 = vadd.f32 %v377, %v719
    %v872 = vadd.f32 %v378, %v720
    %v873 = vadd.f32 %v379, %v721
    %v874 = vadd.f32 %v380, %v722
    %v875 = vadd.f32 %v381, %v723
    %v876 = vadd.f32 %v382, %v724
    %v877 = vadd.f32 %v383, %v725
    %v878 = vadd.f32 %v384, %v726
    %v879 = vadd.f32 %v385, %v727
    %v880 = vadd.f32 %v386, %v728
    %v881 = vadd.f32 %v387, %v729
    %v882 = vadd.f32 %v388, %v730
    %v883 = vadd.f32 %v389, %v731
    %v884 = vadd.f32 %v390, %v732
    %v885 = vadd.f32 %v391, %v733
    %v886 = vadd.f32 %v392, %v734
    %v887 = vadd.f32 %v393, %v735
    %v888 = vadd.f32 %v394, %v736
    %v889 = vadd.f32 %v395, %v737
    %v890 = vadd.f32 %v396, %v738
    %v891 = vadd.f32 %v397, %v739
    %v892 = vadd.f32 %v398, %v740
    %v893 = vadd.f32 %v399, %v741
    %v894 = vadd.f32 %v400, %v742
    %v895 = vadd.f32 %v401, %v743
    %v896 = vadd.f32 %v402, %v744
    %v897 = vadd.f32 %v403, %v745
    %v898 = vadd.f32 %v404, %v746
    %v899 = vadd.f32 %v405, %v747
    %v900 = vadd.f32 %v406, %v748
    %v901 = vadd.f32 %v407, %v749
    %v902 = vadd.f32 %v408, %v750
    %v903 = vadd.f32 %v409, %v751
    %v904 = vadd.f32 %v410, %v752
    %v905 = vadd.f32 %v411, %v753
    %v906 = vadd.f32 %v412, %v754
    %v907 = vadd.f32 %v413, %v755
    %v908 = vadd.f32 %v414, %v756
    %v909 = vadd.f32 %v415, %v757
    %v910 = vadd.f32 %v416, %v758
    %v911 = vadd.f32 %v417, %v759
    %v912 = vadd.f32 %v418, %v760
    %v913 = vadd.f32 %v419, %v761
    %v914 = vadd.f32 %v420, %v762
    %v915 = vadd.f32 %v421, %v763
    %v916 = vadd.f32 %v422, %v764
    %v917 = vadd.f32 %v423, %v765
    %v918 = vadd.f32 %v424, %v766
    %v919 = vadd.f32 %v425, %v767
    %v920 = vld [vmem:[#allocation5 + $0x260] sm:$0xff]
    %v921 = vld [vmem:[#allocation5 + $0x268] sm:$0xff]
    %v922 = vld [vmem:[#allocation5 + $0x270] sm:$0xff]
    %v923 = vld [vmem:[#allocation5 + $0x278] sm:$0xff]
    %v924 = vld [vmem:[#allocation5 + $0x280] sm:$0xff]
    %v925 = vld [vmem:[#allocation5 + $0x288] sm:$0xff]
    %v926 = vld [vmem:[#allocation5 + $0x290] sm:$0xff]
    %v927 = vld [vmem:[#allocation5 + $0x298] sm:$0xff]
    %v928 = vld [vmem:[#allocation5 + $0x2a0] sm:$0xff]
    %v929 = vld [vmem:[#allocation5 + $0x2a8] sm:$0xff]
    %v930 = vld [vmem:[#allocation5 + $0x2b0] sm:$0xff]
    %v931 = vld [vmem:[#allocation5 + $0x2b8] sm:$0xff]
    %v932 = vld [vmem:[#allocation5 + $0x2c0] sm:$0xff]
    %v933 = vld [vmem:[#allocation5 + $0x2c8] sm:$0xff]
    %v934 = vld [vmem:[#allocation5 + $0x2d0] sm:$0xff]
    %v935 = vld [vmem:[#allocation5 + $0x2d8] sm:$0xff]
    %v936 = vld [vmem:[#allocation5 + $0x2e0] sm:$0xff]
    %v937 = vld [vmem:[#allocation5 + $0x2e8] sm:$0xff]
    %v938 = vld [vmem:[#allocation5 + $0x2f0] sm:$0xff]
    %v939 = vld [vmem:[#allocation5 + $0x2f8] sm:$0xff]
    %v940 = vld [vmem:[#allocation5 + $0x300] sm:$0xff]
    %v941 = vld [vmem:[#allocation5 + $0x308] sm:$0xff]
    %v942 = vld [vmem:[#allocation5 + $0x310] sm:$0xff]
    %v943 = vld [vmem:[#allocation5 + $0x318] sm:$0xff]
    %v944 = vld [vmem:[#allocation5 + $0x320] sm:$0xff]
    %v945 = vld [vmem:[#allocation5 + $0x328] sm:$0xff]
    %v946 = vld [vmem:[#allocation5 + $0x330] sm:$0xff]
    %v947 = vld [vmem:[#allocation5 + $0x338] sm:$0xff]
    %v948 = vld [vmem:[#allocation5 + $0x340] sm:$0xff]
    %v949 = vld [vmem:[#allocation5 + $0x348] sm:$0xff]
    %v950 = vld [vmem:[#allocation5 + $0x350] sm:$0xff]
    %v951 = vld [vmem:[#allocation5 + $0x358] sm:$0xff]
    %v952 = vld [vmem:[#allocation5 + $0x360] sm:$0xff]
    %v953 = vld [vmem:[#allocation5 + $0x368] sm:$0xff]
    %v954 = vld [vmem:[#allocation5 + $0x370] sm:$0xff]
    %v955 = vld [vmem:[#allocation5 + $0x378] sm:$0xff]
    %v956 = vld [vmem:[#allocation5 + $0x380] sm:$0xff]
    %v957 = vld [vmem:[#allocation5 + $0x388] sm:$0xff]
    %v958 = vld [vmem:[#allocation5 + $0x720] sm:$0xff]
    %v959 = vld [vmem:[#allocation5 + $0x728] sm:$0xff]
    %v960 = vld [vmem:[#allocation5 + $0x730] sm:$0xff]
    %v961 = vld [vmem:[#allocation5 + $0x738] sm:$0xff]
    %v962 = vld [vmem:[#allocation5 + $0x740] sm:$0xff]
    %v963 = vld [vmem:[#allocation5 + $0x748] sm:$0xff]
    %v964 = vld [vmem:[#allocation5 + $0x750] sm:$0xff]
    %v965 = vld [vmem:[#allocation5 + $0x758] sm:$0xff]
    %v966 = vld [vmem:[#allocation5 + $0x760] sm:$0xff]
    %v967 = vld [vmem:[#allocation5 + $0x768] sm:$0xff]
    %v968 = vld [vmem:[#allocation5 + $0x770] sm:$0xff]
    %v969 = vld [vmem:[#allocation5 + $0x778] sm:$0xff]
    %v970 = vld [vmem:[#allocation5 + $0x780] sm:$0xff]
    %v971 = vld [vmem:[#allocation5 + $0x788] sm:$0xff]
    %v972 = vld [vmem:[#allocation5 + $0x790] sm:$0xff]
    %v973 = vld [vmem:[#allocation5 + $0x798] sm:$0xff]
    %v974 = vld [vmem:[#allocation5 + $0x7a0] sm:$0xff]
    %v975 = vld [vmem:[#allocation5 + $0x7a8] sm:$0xff]
    %v976 = vld [vmem:[#allocation5 + $0x7b0] sm:$0xff]
    %v977 = vld [vmem:[#allocation5 + $0x7b8] sm:$0xff]
    %v978 = vld [vmem:[#allocation5 + $0x7c0] sm:$0xff]
    %v979 = vld [vmem:[#allocation5 + $0x7c8] sm:$0xff]
    %v980 = vld [vmem:[#allocation5 + $0x7d0] sm:$0xff]
    %v981 = vld [vmem:[#allocation5 + $0x7d8] sm:$0xff]
    %v982 = vld [vmem:[#allocation5 + $0x7e0] sm:$0xff]
    %v983 = vld [vmem:[#allocation5 + $0x7e8] sm:$0xff]
    %v984 = vld [vmem:[#allocation5 + $0x7f0] sm:$0xff]
    %v985 = vld [vmem:[#allocation5 + $0x7f8] sm:$0xff]
    %v986 = vld [vmem:[#allocation5 + $0x800] sm:$0xff]
    %v987 = vld [vmem:[#allocation5 + $0x808] sm:$0xff]
    %v988 = vld [vmem:[#allocation5 + $0x810] sm:$0xff]
    %v989 = vld [vmem:[#allocation5 + $0x818] sm:$0xff]
    %v990 = vld [vmem:[#allocation5 + $0x820] sm:$0xff]
    %v991 = vld [vmem:[#allocation5 + $0x828] sm:$0xff]
    %v992 = vld [vmem:[#allocation5 + $0x830] sm:$0xff]
    %v993 = vld [vmem:[#allocation5 + $0x838] sm:$0xff]
    %v994 = vld [vmem:[#allocation5 + $0x840] sm:$0xff]
    %v995 = vld [vmem:[#allocation5 + $0x848] sm:$0xff]
    %v996 = vperm.slane %v44, 2
    %v997 = vperm.slane %v44, 6
    %v998 = vperm.slane %v45, 2
    %v999 = vperm.slane %v45, 6
    %v1000 = vperm.slane %v46, 2
    %v1001 = vperm.slane %v46, 6
    %v1002 = vperm.slane %v47, 2
    %v1003 = vperm.slane %v47, 6
    %v1004 = vperm.slane %v48, 2
    %v1005 = vperm.slane %v48, 6
    %v1006 = vperm.slane %v49, 2
    %v1007 = vperm.slane %v49, 6
    %v1008 = vperm.slane %v50, 2
    %v1009 = vperm.slane %v50, 6
    %v1010 = vperm.slane %v51, 2
    %v1011 = vperm.slane %v51, 6
    %v1012 = vperm.slane %v52, 2
    %v1013 = vperm.slane %v52, 6
    %v1014 = vperm.slane %v53, 2
    %v1015 = vperm.slane %v54, 2
    %v1016 = vperm.slane %v54, 6
    %v1017 = vperm.slane %v55, 2
    %v1018 = vperm.slane %v55, 6
    %v1019 = vperm.slane %v56, 2
    %v1020 = vperm.slane %v56, 6
    %v1021 = vperm.slane %v57, 2
    %v1022 = vperm.slane %v57, 6
    %v1023 = vperm.slane %v58, 2
    %v1024 = vperm.slane %v58, 6
    %v1025 = vperm.slane %v59, 2
    %v1026 = vperm.slane %v59, 6
    %v1027 = vperm.slane %v60, 2
    %v1028 = vperm.slane %v60, 6
    %v1029 = vperm.slane %v61, 2
    %v1030 = vperm.slane %v61, 6
    %v1031 = vperm.slane %v62, 2
    %v1032 = vperm.slane %v62, 6
    %v1033 = vperm.slane %v63, 2
    %v1072 = vperm.slane %v996, 2
    %v1073 = vperm.slane %v997, 2
    %v1074 = vperm.slane %v998, 2
    %v1075 = vperm.slane %v999, 2
    %v1076 = vperm.slane %v1000, 2
    %v1077 = vperm.slane %v1001, 2
    %v1078 = vperm.slane %v1002, 2
    %v1079 = vperm.slane %v1003, 2
    %v1080 = vperm.slane %v1004, 2
    %v1081 = vperm.slane %v1005, 2
    %v1082 = vperm.slane %v1006, 2
    %v1083 = vperm.slane %v1007, 2
    %v1084 = vperm.slane %v1008, 2
    %v1085 = vperm.slane %v1009, 2
    %v1086 = vperm.slane %v1010, 2
    %v1087 = vperm.slane %v1011, 2
    %v1088 = vperm.slane %v1012, 2
    %v1089 = vperm.slane %v1013, 2
    %v1090 = vperm.slane %v1014, 2
    %v1091 = vperm.slane %v1015, 2
    %v1092 = vperm.slane %v1016, 2
    %v1093 = vperm.slane %v1017, 2
    %v1094 = vperm.slane %v1018, 2
    %v1095 = vperm.slane %v1019, 2
    %v1096 = vperm.slane %v1020, 2
    %v1097 = vperm.slane %v1021, 2
    %v1098 = vperm.slane %v1022, 2
    %v1099 = vperm.slane %v1023, 2
    %v1100 = vperm.slane %v1024, 2
    %v1101 = vperm.slane %v1025, 2
    %v1102 = vperm.slane %v1026, 2
    %v1103 = vperm.slane %v1027, 2
    %v1104 = vperm.slane %v1028, 2
    %v1105 = vperm.slane %v1029, 2
    %v1106 = vperm.slane %v1030, 2
    %v1107 = vperm.slane %v1031, 2
    %v1108 = vperm.slane %v1032, 2
    %v1109 = vperm.slane %v1033, 2
    %v1110 = vmul.f32 %v920, %v1072
    %v1111 = vmul.f32 %v921, %v1073
    %v1112 = vmul.f32 %v922, %v1074
    %v1113 = vmul.f32 %v923, %v1075
    %v1114 = vmul.f32 %v924, %v1076
    %v1115 = vmul.f32 %v925, %v1077
    %v1116 = vmul.f32 %v926, %v1078
    %v1117 = vmul.f32 %v927, %v1079
    %v1118 = vmul.f32 %v928, %v1080
    %v1119 = vmul.f32 %v929, %v1081
    %v1120 = vmul.f32 %v930, %v1082
    %v1121 = vmul.f32 %v931, %v1083
    %v1122 = vmul.f32 %v932, %v1084
    %v1123 = vmul.f32 %v933, %v1085
    %v1124 = vmul.f32 %v934, %v1086
    %v1125 = vmul.f32 %v935, %v1087
    %v1126 = vmul.f32 %v936, %v1088
    %v1127 = vmul.f32 %v937, %v1089
    %v1128 = vmul.f32 %v938, %v1090
    %v1129 = vmul.f32 %v939, %v1072
    %v1130 = vmul.f32 %v940, %v1073
    %v1131 = vmul.f32 %v941, %v1074
    %v1132 = vmul.f32 %v942, %v1075
    %v1133 = vmul.f32 %v943, %v1076
    %v1134 = vmul.f32 %v944, %v1077
    %v1135 = vmul.f32 %v945, %v1078
    %v1136 = vmul.f32 %v946, %v1079
    %v1137 = vmul.f32 %v947, %v1080
    %v1138 = vmul.f32 %v948, %v1081
    %v1139 = vmul.f32 %v949, %v1082
    %v1140 = vmul.f32 %v950, %v1083
    %v1141 = vmul.f32 %v951, %v1084
    %v1142 = vmul.f32 %v952, %v1085
    %v1143 = vmul.f32 %v953, %v1086
    %v1144 = vmul.f32 %v954, %v1087
    %v1145 = vmul.f32 %v955, %v1088
    %v1146 = vmul.f32 %v956, %v1089
    %v1147 = vmul.f32 %v957, %v1090
    %v1148 = vmul.f32 %v958, %v1072
    %v1149 = vmul.f32 %v959, %v1073
    %v1150 = vmul.f32 %v960, %v1074
    %v1151 = vmul.f32 %v961, %v1075
    %v1152 = vmul.f32 %v962, %v1076
    %v1153 = vmul.f32 %v963, %v1077
    %v1154 = vmul.f32 %v964, %v1078
    %v1155 = vmul.f32 %v965, %v1079
    %v1156 = vmul.f32 %v966, %v1080
    %v1157 = vmul.f32 %v967, %v1081
    %v1158 = vmul.f32 %v968, %v1082
    %v1159 = vmul.f32 %v969, %v1083
    %v1160 = vmul.f32 %v970, %v1084
    %v1161 = vmul.f32 %v971, %v1085
    %v1162 = vmul.f32 %v972, %v1086
    %v1163 = vmul.f32 %v973, %v1087
    %v1164 = vmul.f32 %v974, %v1088
    %v1165 = vmul.f32 %v975, %v1089
    %v1166 = vmul.f32 %v976, %v1090
    %v1167 = vmul.f32 %v977, %v1072
    %v1168 = vmul.f32 %v978, %v1073
    %v1169 = vmul.f32 %v979, %v1074
    %v1170 = vmul.f32 %v980, %v1075
    %v1171 = vmul.f32 %v981, %v1076
    %v1172 = vmul.f32 %v982, %v1077
    %v1173 = vmul.f32 %v983, %v1078
    %v1174 = vmul.f32 %v984, %v1079
    %v1175 = vmul.f32 %v985, %v1080
    %v1176 = vmul.f32 %v986, %v1081
    %v1177 = vmul.f32 %v987, %v1082
    %v1178 = vmul.f32 %v988, %v1083
    %v1179 = vmul.f32 %v989, %v1084
    %v1180 = vmul.f32 %v990, %v1085
    %v1181 = vmul.f32 %v991, %v1086
    %v1182 = vmul.f32 %v992, %v1087
    %v1183 = vmul.f32 %v993, %v1088
    %v1184 = vmul.f32 %v994, %v1089
    %v1185 = vmul.f32 %v995, %v1090
    %v1186 = vmul.f32 %v920, %v1091
    %v1187 = vmul.f32 %v921, %v1092
    %v1188 = vmul.f32 %v922, %v1093
    %v1189 = vmul.f32 %v923, %v1094
    %v1190 = vmul.f32 %v924, %v1095
    %v1191 = vmul.f32 %v925, %v1096
    %v1192 = vmul.f32 %v926, %v1097
    %v1193 = vmul.f32 %v927, %v1098
    %v1194 = vmul.f32 %v928, %v1099
    %v1195 = vmul.f32 %v929, %v1100
    %v1196 = vmul.f32 %v930, %v1101
    %v1197 = vmul.f32 %v931, %v1102
    %v1198 = vmul.f32 %v932, %v1103
    %v1199 = vmul.f32 %v933, %v1104
    %v1200 = vmul.f32 %v934, %v1105
    %v1201 = vmul.f32 %v935, %v1106
    %v1202 = vmul.f32 %v936, %v1107
    %v1203 = vmul.f32 %v937, %v1108
    %v1204 = vmul.f32 %v938, %v1109
    %v1205 = vmul.f32 %v939, %v1091
    %v1206 = vmul.f32 %v940, %v1092
    %v1207 = vmul.f32 %v941, %v1093
    %v1208 = vmul.f32 %v942, %v1094
    %v1209 = vmul.f32 %v943, %v1095
    %v1210 = vmul.f32 %v944, %v1096
    %v1211 = vmul.f32 %v945, %v1097
    %v1212 = vmul.f32 %v946, %v1098
    %v1213 = vmul.f32 %v947, %v1099
    %v1214 = vmul.f32 %v948, %v1100
    %v1215 = vmul.f32 %v949, %v1101
    %v1216 = vmul.f32 %v950, %v1102
    %v1217 = vmul.f32 %v951, %v1103
    %v1218 = vmul.f32 %v952, %v1104
    %v1219 = vmul.f32 %v953, %v1105
    %v1220 = vmul.f32 %v954, %v1106
    %v1221 = vmul.f32 %v955, %v1107
    %v1222 = vmul.f32 %v956, %v1108
    %v1223 = vmul.f32 %v957, %v1109
    %v1224 = vmul.f32 %v958, %v1091
    %v1225 = vmul.f32 %v959, %v1092
    %v1226 = vmul.f32 %v960, %v1093
    %v1227 = vmul.f32 %v961, %v1094
    %v1228 = vmul.f32 %v962, %v1095
    %v1229 = vmul.f32 %v963, %v1096
    %v1230 = vmul.f32 %v964, %v1097
    %v1231 = vmul.f32 %v965, %v1098
    %v1232 = vmul.f32 %v966, %v1099
    %v1233 = vmul.f32 %v967, %v1100
    %v1234 = vmul.f32 %v968, %v1101
    %v1235 = vmul.f32 %v969, %v1102
    %v1236 = vmul.f32 %v970, %v1103
    %v1237 = vmul.f32 %v971, %v1104
    %v1238 = vmul.f32 %v972, %v1105
    %v1239 = vmul.f32 %v973, %v1106
    %v1240 = vmul.f32 %v974, %v1107
    %v1241 = vmul.f32 %v975, %v1108
    %v1242 = vmul.f32 %v976, %v1109
    %v1243 = vmul.f32 %v977, %v1091
    %v1244 = vmul.f32 %v978, %v1092
    %v1245 = vmul.f32 %v979, %v1093
    %v1246 = vmul.f32 %v980, %v1094
    %v1247 = vmul.f32 %v981, %v1095
    %v1248 = vmul.f32 %v982, %v1096
    %v1249 = vmul.f32 %v983, %v1097
    %v1250 = vmul.f32 %v984, %v1098
    %v1251 = vmul.f32 %v985, %v1099
    %v1252 = vmul.f32 %v986, %v1100
    %v1253 = vmul.f32 %v987, %v1101
    %v1254 = vmul.f32 %v988, %v1102
    %v1255 = vmul.f32 %v989, %v1103
    %v1256 = vmul.f32 %v990, %v1104
    %v1257 = vmul.f32 %v991, %v1105
    %v1258 = vmul.f32 %v992, %v1106
    %v1259 = vmul.f32 %v993, %v1107
    %v1260 = vmul.f32 %v994, %v1108
    %v1261 = vmul.f32 %v995, %v1109
    %v1262 = vadd.f32 %v768, %v1110
    %v1263 = vadd.f32 %v769, %v1111
    %v1264 = vadd.f32 %v770, %v1112
    %v1265 = vadd.f32 %v771, %v1113
    %v1266 = vadd.f32 %v772, %v1114
    %v1267 = vadd.f32 %v773, %v1115
    %v1268 = vadd.f32 %v774, %v1116
    %v1269 = vadd.f32 %v775, %v1117
    %v1270 = vadd.f32 %v776, %v1118
    %v1271 = vadd.f32 %v777, %v1119
    %v1272 = vadd.f32 %v778, %v1120
    %v1273 = vadd.f32 %v779, %v1121
    %v1274 = vadd.f32 %v780, %v1122
    %v1275 = vadd.f32 %v781, %v1123
    %v1276 = vadd.f32 %v782, %v1124
    %v1277 = vadd.f32 %v783, %v1125
    %v1278 = vadd.f32 %v784, %v1126
    %v1279 = vadd.f32 %v785, %v1127
    %v1280 = vadd.f32 %v786, %v1128
    %v1281 = vadd.f32 %v787, %v1129
    %v1282 = vadd.f32 %v788, %v1130
    %v1283 = vadd.f32 %v789, %v1131
    %v1284 = vadd.f32 %v790, %v1132
    %v1285 = vadd.f32 %v791, %v1133
    %v1286 = vadd.f32 %v792, %v1134
    %v1287 = vadd.f32 %v793, %v1135
    %v1288 = vadd.f32 %v794, %v1136
    %v1289 = vadd.f32 %v795, %v1137
    %v1290 = vadd.f32 %v796, %v1138
    %v1291 = vadd.f32 %v797, %v1139
    %v1292 = vadd.f32 %v798, %v1140
    %v1293 = vadd.f32 %v799, %v1141
    %v1294 = vadd.f32 %v800, %v1142
    %v1295 = vadd.f32 %v801, %v1143
    %v1296 = vadd.f32 %v802, %v1144
    %v1297 = vadd.f32 %v803, %v1145
    %v1298 = vadd.f32 %v804, %v1146
    %v1299 = vadd.f32 %v805, %v1147
    %v1300 = vadd.f32 %v806, %v1148
    %v1301 = vadd.f32 %v807, %v1149
    %v1302 = vadd.f32 %v808, %v1150
    %v1303 = vadd.f32 %v809, %v1151
    %v1304 = vadd.f32 %v810, %v1152
    %v1305 = vadd.f32 %v811, %v1153
    %v1306 = vadd.f32 %v812, %v1154
    %v1307 = vadd.f32 %v813, %v1155
    %v1308 = vadd.f32 %v814, %v1156
    %v1309 = vadd.f32 %v815, %v1157
    %v1310 = vadd.f32 %v816, %v1158
    %v1311 = vadd.f32 %v817, %v1159
    %v1312 = vadd.f32 %v818, %v1160
    %v1313 = vadd.f32 %v819, %v1161
    %v1314 = vadd.f32 %v820, %v1162
    %v1315 = vadd.f32 %v821, %v1163
    %v1316 = vadd.f32 %v822, %v1164
    %v1317 = vadd.f32 %v823, %v1165
    %v1318 = vadd.f32 %v824, %v1166
    %v1319 = vadd.f32 %v825, %v1167
    %v1320 = vadd.f32 %v826, %v1168
    %v1321 = vadd.f32 %v827, %v1169
    %v1322 = vadd.f32 %v828, %v1170
    %v1323 = vadd.f32 %v829, %v1171
    %v1324 = vadd.f32 %v830, %v1172
    %v1325 = vadd.f32 %v831, %v1173
    %v1326 = vadd.f32 %v832, %v1174
    %v1327 = vadd.f32 %v833, %v1175
    %v1328 = vadd.f32 %v834, %v1176
    %v1329 = vadd.f32 %v835, %v1177
    %v1330 = vadd.f32 %v836, %v1178
    %v1331 = vadd.f32 %v837, %v1179
    %v1332 = vadd.f32 %v838, %v1180
    %v1333 = vadd.f32 %v839, %v1181
    %v1334 = vadd.f32 %v840, %v1182
    %v1335 = vadd.f32 %v841, %v1183
    %v1336 = vadd.f32 %v842, %v1184
    %v1337 = vadd.f32 %v843, %v1185
    %v1338 = vadd.f32 %v844, %v1186
    %v1339 = vadd.f32 %v845, %v1187
    %v1340 = vadd.f32 %v846, %v1188
    %v1341 = vadd.f32 %v847, %v1189
    %v1342 = vadd.f32 %v848, %v1190
    %v1343 = vadd.f32 %v849, %v1191
    %v1344 = vadd.f32 %v850, %v1192
    %v1345 = vadd.f32 %v851, %v1193
    %v1346 = vadd.f32 %v852, %v1194
    %v1347 = vadd.f32 %v853, %v1195
    %v1348 = vadd.f32 %v854, %v1196
    %v1349 = vadd.f32 %v855, %v1197
    %v1350 = vadd.f32 %v856, %v1198
    %v1351 = vadd.f32 %v857, %v1199
    %v1352 = vadd.f32 %v858, %v1200
    %v1353 = vadd.f32 %v859, %v1201
    %v1354 = vadd.f32 %v860, %v1202
    %v1355 = vadd.f32 %v861, %v1203
    %v1356 = vadd.f32 %v862, %v1204
    %v1357 = vadd.f32 %v863, %v1205
    %v1358 = vadd.f32 %v864, %v1206
    %v1359 = vadd.f32 %v865, %v1207
    %v1360 = vadd.f32 %v866, %v1208
    %v1361 = vadd.f32 %v867, %v1209
    %v1362 = vadd.f32 %v868, %v1210
    %v1363 = vadd.f32 %v869, %v1211
    %v1364 = vadd.f32 %v870, %v1212
    %v1365 = vadd.f32 %v871, %v1213
    %v1366 = vadd.f32 %v872, %v1214
    %v1367 = vadd.f32 %v873, %v1215
    %v1368 = vadd.f32 %v874, %v1216
    %v1369 = vadd.f32 %v875, %v1217
    %v1370 = vadd.f32 %v876, %v1218
    %v1371 = vadd.f32 %v877, %v1219
    %v1372 = vadd.f32 %v878, %v1220
    %v1373 = vadd.f32 %v879, %v1221
    %v1374 = vadd.f32 %v880, %v1222
    %v1375 = vadd.f32 %v881, %v1223
    %v1376 = vadd.f32 %v882, %v1224
    %v1377 = vadd.f32 %v883, %v1225
    %v1378 = vadd.f32 %v884, %v1226
    %v1379 = vadd.f32 %v885, %v1227
    %v1380 = vadd.f32 %v886, %v1228
    %v1381 = vadd.f32 %v887, %v1229
    %v1382 = vadd.f32 %v888, %v1230
    %v1383 = vadd.f32 %v889, %v1231
    %v1384 = vadd.f32 %v890, %v1232
    %v1385 = vadd.f32 %v891, %v1233
    %v1386 = vadd.f32 %v892, %v1234
    %v1387 = vadd.f32 %v893, %v1235
    %v1388 = vadd.f32 %v894, %v1236
    %v1389 = vadd.f32 %v895, %v1237
    %v1390 = vadd.f32 %v896, %v1238
    %v1391 = vadd.f32 %v897, %v1239
    %v1392 = vadd.f32 %v898, %v1240
    %v1393 = vadd.f32 %v899, %v1241
    %v1394 = vadd.f32 %v900, %v1242
    %v1395 = vadd.f32 %v901, %v1243
    %v1396 = vadd.f32 %v902, %v1244
    %v1397 = vadd.f32 %v903, %v1245
    %v1398 = vadd.f32 %v904, %v1246
    %v1399 = vadd.f32 %v905, %v1247
    %v1400 = vadd.f32 %v906, %v1248
    %v1401 = vadd.f32 %v907, %v1249
    %v1402 = vadd.f32 %v908, %v1250
    %v1403 = vadd.f32 %v909, %v1251
    %v1404 = vadd.f32 %v910, %v1252
    %v1405 = vadd.f32 %v911, %v1253
    %v1406 = vadd.f32 %v912, %v1254
    %v1407 = vadd.f32 %v913, %v1255
    %v1408 = vadd.f32 %v914, %v1256
    %v1409 = vadd.f32 %v915, %v1257
    %v1410 = vadd.f32 %v916, %v1258
    %v1411 = vadd.f32 %v917, %v1259
    %v1412 = vadd.f32 %v918, %v1260
    %v1413 = vadd.f32 %v919, %v1261
    %v1414 = vld [vmem:[#allocation5 + $0x390] sm:$0xff]
    %v1415 = vld [vmem:[#allocation5 + $0x398] sm:$0xff]
    %v1416 = vld [vmem:[#allocation5 + $0x3a0] sm:$0xff]
    %v1417 = vld [vmem:[#allocation5 + $0x3a8] sm:$0xff]
    %v1418 = vld [vmem:[#allocation5 + $0x3b0] sm:$0xff]
    %v1419 = vld [vmem:[#allocation5 + $0x3b8] sm:$0xff]
    %v1420 = vld [vmem:[#allocation5 + $0x3c0] sm:$0xff]
    %v1421 = vld [vmem:[#allocation5 + $0x3c8] sm:$0xff]
    %v1422 = vld [vmem:[#allocation5 + $0x3d0] sm:$0xff]
    %v1423 = vld [vmem:[#allocation5 + $0x3d8] sm:$0xff]
    %v1424 = vld [vmem:[#allocation5 + $0x3e0] sm:$0xff]
    %v1425 = vld [vmem:[#allocation5 + $0x3e8] sm:$0xff]
    %v1426 = vld [vmem:[#allocation5 + $0x3f0] sm:$0xff]
    %v1427 = vld [vmem:[#allocation5 + $0x3f8] sm:$0xff]
    %v1428 = vld [vmem:[#allocation5 + $0x400] sm:$0xff]
    %v1429 = vld [vmem:[#allocation5 + $0x408] sm:$0xff]
    %v1430 = vld [vmem:[#allocation5 + $0x410] sm:$0xff]
    %v1431 = vld [vmem:[#allocation5 + $0x418] sm:$0xff]
    %v1432 = vld [vmem:[#allocation5 + $0x420] sm:$0xff]
    %v1433 = vld [vmem:[#allocation5 + $0x428] sm:$0xff]
    %v1434 = vld [vmem:[#allocation5 + $0x430] sm:$0xff]
    %v1435 = vld [vmem:[#allocation5 + $0x438] sm:$0xff]
    %v1436 = vld [vmem:[#allocation5 + $0x440] sm:$0xff]
    %v1437 = vld [vmem:[#allocation5 + $0x448] sm:$0xff]
    %v1438 = vld [vmem:[#allocation5 + $0x450] sm:$0xff]
    %v1439 = vld [vmem:[#allocation5 + $0x458] sm:$0xff]
    %v1440 = vld [vmem:[#allocation5 + $0x460] sm:$0xff]
    %v1441 = vld [vmem:[#allocation5 + $0x468] sm:$0xff]
    %v1442 = vld [vmem:[#allocation5 + $0x470] sm:$0xff]
    %v1443 = vld [vmem:[#allocation5 + $0x478] sm:$0xff]
    %v1444 = vld [vmem:[#allocation5 + $0x480] sm:$0xff]
    %v1445 = vld [vmem:[#allocation5 + $0x488] sm:$0xff]
    %v1446 = vld [vmem:[#allocation5 + $0x490] sm:$0xff]
    %v1447 = vld [vmem:[#allocation5 + $0x498] sm:$0xff]
    %v1448 = vld [vmem:[#allocation5 + $0x4a0] sm:$0xff]
    %v1449 = vld [vmem:[#allocation5 + $0x4a8] sm:$0xff]
    %v1450 = vld [vmem:[#allocation5 + $0x4b0] sm:$0xff]
    %v1451 = vld [vmem:[#allocation5 + $0x4b8] sm:$0xff]
    %v1452 = vld [vmem:[#allocation5 + $0x850] sm:$0xff]
    %v1453 = vld [vmem:[#allocation5 + $0x858] sm:$0xff]
    %v1454 = vld [vmem:[#allocation5 + $0x860] sm:$0xff]
    %v1455 = vld [vmem:[#allocation5 + $0x868] sm:$0xff]
    %v1456 = vld [vmem:[#allocation5 + $0x870] sm:$0xff]
    %v1457 = vld [vmem:[#allocation5 + $0x878] sm:$0xff]
    %v1458 = vld [vmem:[#allocation5 + $0x880] sm:$0xff]
    %v1459 = vld [vmem:[#allocation5 + $0x888] sm:$0xff]
    %v1460 = vld [vmem:[#allocation5 + $0x890] sm:$0xff]
    %v1461 = vld [vmem:[#allocation5 + $0x898] sm:$0xff]
    %v1462 = vld [vmem:[#allocation5 + $0x8a0] sm:$0xff]
    %v1463 = vld [vmem:[#allocation5 + $0x8a8] sm:$0xff]
    %v1464 = vld [vmem:[#allocation5 + $0x8b0] sm:$0xff]
    %v1465 = vld [vmem:[#allocation5 + $0x8b8] sm:$0xff]
    %v1466 = vld [vmem:[#allocation5 + $0x8c0] sm:$0xff]
    %v1467 = vld [vmem:[#allocation5 + $0x8c8] sm:$0xff]
    %v1468 = vld [vmem:[#allocation5 + $0x8d0] sm:$0xff]
    %v1469 = vld [vmem:[#allocation5 + $0x8d8] sm:$0xff]
    %v1470 = vld [vmem:[#allocation5 + $0x8e0] sm:$0xff]
    %v1471 = vld [vmem:[#allocation5 + $0x8e8] sm:$0xff]
    %v1472 = vld [vmem:[#allocation5 + $0x8f0] sm:$0xff]
    %v1473 = vld [vmem:[#allocation5 + $0x8f8] sm:$0xff]
    %v1474 = vld [vmem:[#allocation5 + $0x900] sm:$0xff]
    %v1475 = vld [vmem:[#allocation5 + $0x908] sm:$0xff]
    %v1476 = vld [vmem:[#allocation5 + $0x910] sm:$0xff]
    %v1477 = vld [vmem:[#allocation5 + $0x918] sm:$0xff]
    %v1478 = vld [vmem:[#allocation5 + $0x920] sm:$0xff]
    %v1479 = vld [vmem:[#allocation5 + $0x928] sm:$0xff]
    %v1480 = vld [vmem:[#allocation5 + $0x930] sm:$0xff]
    %v1481 = vld [vmem:[#allocation5 + $0x938] sm:$0xff]
    %v1482 = vld [vmem:[#allocation5 + $0x940] sm:$0xff]
    %v1483 = vld [vmem:[#allocation5 + $0x948] sm:$0xff]
    %v1484 = vld [vmem:[#allocation5 + $0x950] sm:$0xff]
    %v1485 = vld [vmem:[#allocation5 + $0x958] sm:$0xff]
    %v1486 = vld [vmem:[#allocation5 + $0x960] sm:$0xff]
    %v1487 = vld [vmem:[#allocation5 + $0x968] sm:$0xff]
    %v1488 = vld [vmem:[#allocation5 + $0x970] sm:$0xff]
    %v1489 = vld [vmem:[#allocation5 + $0x978] sm:$0xff]
    %v1490 = vperm.slane %v44, 3
    %v1491 = vperm.slane %v44, 7
    %v1492 = vperm.slane %v45, 3
    %v1493 = vperm.slane %v45, 7
    %v1494 = vperm.slane %v46, 3
    %v1495 = vperm.slane %v46, 7
    %v1496 = vperm.slane %v47, 3
    %v1497 = vperm.slane %v47, 7
    %v1498 = vperm.slane %v48, 3
    %v1499 = vperm.slane %v48, 7
    %v1500 = vperm.slane %v49, 3
    %v1501 = vperm.slane %v49, 7
    %v1502 = vperm.slane %v50, 3
    %v1503 = vperm.slane %v50, 7
    %v1504 = vperm.slane %v51, 3
    %v1505 = vperm.slane %v51, 7
    %v1506 = vperm.slane %v52, 3
    %v1507 = vperm.slane %v52, 7
    %v1508 = vperm.slane %v53, 3
    %v1509 = vperm.slane %v54, 3
    %v1510 = vperm.slane %v54, 7
    %v1511 = vperm.slane %v55, 3
    %v1512 = vperm.slane %v55, 7
    %v1513 = vperm.slane %v56, 3
    %v1514 = vperm.slane %v56, 7
    %v1515 = vperm.slane %v57, 3
    %v1516 = vperm.slane %v57, 7
    %v1517 = vperm.slane %v58, 3
    %v1518 = vperm.slane %v58, 7
    %v1519 = vperm.slane %v59, 3
    %v1520 = vperm.slane %v59, 7
    %v1521 = vperm.slane %v60, 3
    %v1522 = vperm.slane %v60, 7
    %v1523 = vperm.slane %v61, 3
    %v1524 = vperm.slane %v61, 7
    %v1525 = vperm.slane %v62, 3
    %v1526 = vperm.slane %v62, 7
    %v1527 = vperm.slane %v63, 3
    %v1566 = vperm.slane %v1490, 3
    %v1567 = vperm.slane %v1491, 3
    %v1568 = vperm.slane %v1492, 3
    %v1569 = vperm.slane %v1493, 3
    %v1570 = vperm.slane %v1494, 3
    %v1571 = vperm.slane %v1495, 3
    %v1572 = vperm.slane %v1496, 3
    %v1573 = vperm.slane %v1497, 3
    %v1574 = vperm.slane %v1498, 3
    %v1575 = vperm.slane %v1499, 3
    %v1576 = vperm.slane %v1500, 3
    %v1577 = vperm.slane %v1501, 3
    %v1578 = vperm.slane %v1502, 3
    %v1579 = vperm.slane %v1503, 3
    %v1580 = vperm.slane %v1504, 3
    %v1581 = vperm.slane %v1505, 3
    %v1582 = vperm.slane %v1506, 3
    %v1583 = vperm.slane %v1507, 3
    %v1584 = vperm.slane %v1508, 3
    %v1585 = vperm.slane %v1509, 3
    %v1586 = vperm.slane %v1510, 3
    %v1587 = vperm.slane %v1511, 3
    %v1588 = vperm.slane %v1512, 3
    %v1589 = vperm.slane %v1513, 3
    %v1590 = vperm.slane %v1514, 3
    %v1591 = vperm.slane %v1515, 3
    %v1592 = vperm.slane %v1516, 3
    %v1593 = vperm.slane %v1517, 3
    %v1594 = vperm.slane %v1518, 3
    %v1595 = vperm.slane %v1519, 3
    %v1596 = vperm.slane %v1520, 3
    %v1597 = vperm.slane %v1521, 3
    %v1598 = vperm.slane %v1522, 3
    %v1599 = vperm.slane %v1523, 3
    %v1600 = vperm.slane %v1524, 3
    %v1601 = vperm.slane %v1525, 3
    %v1602 = vperm.slane %v1526, 3
    %v1603 = vperm.slane %v1527, 3
    %v1604 = vmul.f32 %v1414, %v1566
    %v1605 = vmul.f32 %v1415, %v1567
    %v1606 = vmul.f32 %v1416, %v1568
    %v1607 = vmul.f32 %v1417, %v1569
    %v1608 = vmul.f32 %v1418, %v1570
    %v1609 = vmul.f32 %v1419, %v1571
    %v1610 = vmul.f32 %v1420, %v1572
    %v1611 = vmul.f32 %v1421, %v1573
    %v1612 = vmul.f32 %v1422, %v1574
    %v1613 = vmul.f32 %v1423, %v1575
    %v1614 = vmul.f32 %v1424, %v1576
    %v1615 = vmul.f32 %v1425, %v1577
    %v1616 = vmul.f32 %v1426, %v1578
    %v1617 = vmul.f32 %v1427, %v1579
    %v1618 = vmul.f32 %v1428, %v1580
    %v1619 = vmul.f32 %v1429, %v1581
    %v1620 = vmul.f32 %v1430, %v1582
    %v1621 = vmul.f32 %v1431, %v1583
    %v1622 = vmul.f32 %v1432, %v1584
    %v1623 = vmul.f32 %v1433, %v1566
    %v1624 = vmul.f32 %v1434, %v1567
    %v1625 = vmul.f32 %v1435, %v1568
    %v1626 = vmul.f32 %v1436, %v1569
    %v1627 = vmul.f32 %v1437, %v1570
    %v1628 = vmul.f32 %v1438, %v1571
    %v1629 = vmul.f32 %v1439, %v1572
    %v1630 = vmul.f32 %v1440, %v1573
    %v1631 = vmul.f32 %v1441, %v1574
    %v1632 = vmul.f32 %v1442, %v1575
    %v1633 = vmul.f32 %v1443, %v1576
    %v1634 = vmul.f32 %v1444, %v1577
    %v1635 = vmul.f32 %v1445, %v1578
    %v1636 = vmul.f32 %v1446, %v1579
    %v1637 = vmul.f32 %v1447, %v1580
    %v1638 = vmul.f32 %v1448, %v1581
    %v1639 = vmul.f32 %v1449, %v1582
    %v1640 = vmul.f32 %v1450, %v1583
    %v1641 = vmul.f32 %v1451, %v1584
    %v1642 = vmul.f32 %v1452, %v1566
    %v1643 = vmul.f32 %v1453, %v1567
    %v1644 = vmul.f32 %v1454, %v1568
    %v1645 = vmul.f32 %v1455, %v1569
    %v1646 = vmul.f32 %v1456, %v1570
    %v1647 = vmul.f32 %v1457, %v1571
    %v1648 = vmul.f32 %v1458, %v1572
    %v1649 = vmul.f32 %v1459, %v1573
    %v1650 = vmul.f32 %v1460, %v1574
    %v1651 = vmul.f32 %v1461, %v1575
    %v1652 = vmul.f32 %v1462, %v1576
    %v1653 = vmul.f32 %v1463, %v1577
    %v1654 = vmul.f32 %v1464, %v1578
    %v1655 = vmul.f32 %v1465, %v1579
    %v1656 = vmul.f32 %v1466, %v1580
    %v1657 = vmul.f32 %v1467, %v1581
    %v1658 = vmul.f32 %v1468, %v1582
    %v1659 = vmul.f32 %v1469, %v1583
    %v1660 = vmul.f32 %v1470, %v1584
    %v1661 = vmul.f32 %v1471, %v1566
    %v1662 = vmul.f32 %v1472, %v1567
    %v1663 = vmul.f32 %v1473, %v1568
    %v1664 = vmul.f32 %v1474, %v1569
    %v1665 = vmul.f32 %v1475, %v1570
    %v1666 = vmul.f32 %v1476, %v1571
    %v1667 = vmul.f32 %v1477, %v1572
    %v1668 = vmul.f32 %v1478, %v1573
    %v1669 = vmul.f32 %v1479, %v1574
    %v1670 = vmul.f32 %v1480, %v1575
    %v1671 = vmul.f32 %v1481, %v1576
    %v1672 = vmul.f32 %v1482, %v1577
    %v1673 = vmul.f32 %v1483, %v1578
    %v1674 = vmul.f32 %v1484, %v1579
    %v1675 = vmul.f32 %v1485, %v1580
    %v1676 = vmul.f32 %v1486, %v1581
    %v1677 = vmul.f32 %v1487, %v1582
    %v1678 = vmul.f32 %v1488, %v1583
    %v1679 = vmul.f32 %v1489, %v1584
    %v1680 = vmul.f32 %v1414, %v1585
    %v1681 = vmul.f32 %v1415, %v1586
    %v1682 = vmul.f32 %v1416, %v1587
    %v1683 = vmul.f32 %v1417, %v1588
    %v1684 = vmul.f32 %v1418, %v1589
    %v1685 = vmul.f32 %v1419, %v1590
    %v1686 = vmul.f32 %v1420, %v1591
    %v1687 = vmul.f32 %v1421, %v1592
    %v1688 = vmul.f32 %v1422, %v1593
    %v1689 = vmul.f32 %v1423, %v1594
    %v1690 = vmul.f32 %v1424, %v1595
    %v1691 = vmul.f32 %v1425, %v1596
    %v1692 = vmul.f32 %v1426, %v1597
    %v1693 = vmul.f32 %v1427, %v1598
    %v1694 = vmul.f32 %v1428, %v1599
    %v1695 = vmul.f32 %v1429, %v1600
    %v1696 = vmul.f32 %v1430, %v1601
    %v1697 = vmul.f32 %v1431, %v1602
    %v1698 = vmul.f32 %v1432, %v1603
    %v1699 = vmul.f32 %v1433, %v1585
    %v1700 = vmul.f32 %v1434, %v1586
    %v1701 = vmul.f32 %v1435, %v1587
    %v1702 = vmul.f32 %v1436, %v1588
    %v1703 = vmul.f32 %v1437, %v1589
    %v1704 = vmul.f32 %v1438, %v1590
    %v1705 = vmul.f32 %v1439, %v1591
    %v1706 = vmul.f32 %v1440, %v1592
    %v1707 = vmul.f32 %v1441, %v1593
    %v1708 = vmul.f32 %v1442, %v1594
    %v1709 = vmul.f32 %v1443, %v1595
    %v1710 = vmul.f32 %v1444, %v1596
    %v1711 = vmul.f32 %v1445, %v1597
    %v1712 = vmul.f32 %v1446, %v1598
    %v1713 = vmul.f32 %v1447, %v1599
    %v1714 = vmul.f32 %v1448, %v1600
    %v1715 = vmul.f32 %v1449, %v1601
    %v1716 = vmul.f32 %v1450, %v1602
    %v1717 = vmul.f32 %v1451, %v1603
    %v1718 = vmul.f32 %v1452, %v1585
    %v1719 = vmul.f32 %v1453, %v1586
    %v1720 = vmul.f32 %v1454, %v1587
    %v1721 = vmul.f32 %v1455, %v1588
    %v1722 = vmul.f32 %v1456, %v1589
    %v1723 = vmul.f32 %v1457, %v1590
    %v1724 = vmul.f32 %v1458, %v1591
    %v1725 = vmul.f32 %v1459, %v1592
    %v1726 = vmul.f32 %v1460, %v1593
    %v1727 = vmul.f32 %v1461, %v1594
    %v1728 = vmul.f32 %v1462, %v1595
    %v1729 = vmul.f32 %v1463, %v1596
    %v1730 = vmul.f32 %v1464, %v1597
    %v1731 = vmul.f32 %v1465, %v1598
    %v1732 = vmul.f32 %v1466, %v1599
    %v1733 = vmul.f32 %v1467, %v1600
    %v1734 = vmul.f32 %v1468, %v1601
    %v1735 = vmul.f32 %v1469, %v1602
    %v1736 = vmul.f32 %v1470, %v1603
    %v1737 = vmul.f32 %v1471, %v1585
    %v1738 = vmul.f32 %v1472, %v1586
    %v1739 = vmul.f32 %v1473, %v1587
    %v1740 = vmul.f32 %v1474, %v1588
    %v1741 = vmul.f32 %v1475, %v1589
    %v1742 = vmul.f32 %v1476, %v1590
    %v1743 = vmul.f32 %v1477, %v1591
    %v1744 = vmul.f32 %v1478, %v1592
    %v1745 = vmul.f32 %v1479, %v1593
    %v1746 = vmul.f32 %v1480, %v1594
    %v1747 = vmul.f32 %v1481, %v1595
    %v1748 = vmul.f32 %v1482, %v1596
    %v1749 = vmul.f32 %v1483, %v1597
    %v1750 = vmul.f32 %v1484, %v1598
    %v1751 = vmul.f32 %v1485, %v1599
    %v1752 = vmul.f32 %v1486, %v1600
    %v1753 = vmul.f32 %v1487, %v1601
    %v1754 = vmul.f32 %v1488, %v1602
    %v1755 = vmul.f32 %v1489, %v1603
    %v1756 = vadd.f32 %v1262, %v1604
    %v1757 = vadd.f32 %v1263, %v1605
    %v1758 = vadd.f32 %v1264, %v1606
    %v1759 = vadd.f32 %v1265, %v1607
    %v1760 = vadd.f32 %v1266, %v1608
    %v1761 = vadd.f32 %v1267, %v1609
    %v1762 = vadd.f32 %v1268, %v1610
    %v1763 = vadd.f32 %v1269, %v1611
    %v1764 = vadd.f32 %v1270, %v1612
    %v1765 = vadd.f32 %v1271, %v1613
    %v1766 = vadd.f32 %v1272, %v1614
    %v1767 = vadd.f32 %v1273, %v1615
    %v1768 = vadd.f32 %v1274, %v1616
    %v1769 = vadd.f32 %v1275, %v1617
    %v1770 = vadd.f32 %v1276, %v1618
    %v1771 = vadd.f32 %v1277, %v1619
    %v1772 = vadd.f32 %v1278, %v1620
    %v1773 = vadd.f32 %v1279, %v1621
    %v1774 = vadd.f32 %v1280, %v1622
    %v1775 = vadd.f32 %v1281, %v1623
    %v1776 = vadd.f32 %v1282, %v1624
    %v1777 = vadd.f32 %v1283, %v1625
    %v1778 = vadd.f32 %v1284, %v1626
    %v1779 = vadd.f32 %v1285, %v1627
    %v1780 = vadd.f32 %v1286, %v1628
    %v1781 = vadd.f32 %v1287, %v1629
    %v1782 = vadd.f32 %v1288, %v1630
    %v1783 = vadd.f32 %v1289, %v1631
    %v1784 = vadd.f32 %v1290, %v1632
    %v1785 = vadd.f32 %v1291, %v1633
    %v1786 = vadd.f32 %v1292, %v1634
    %v1787 = vadd.f32 %v1293, %v1635
    %v1788 = vadd.f32 %v1294, %v1636
    %v1789 = vadd.f32 %v1295, %v1637
    %v1790 = vadd.f32 %v1296, %v1638
    %v1791 = vadd.f32 %v1297, %v1639
    %v1792 = vadd.f32 %v1298, %v1640
    %v1793 = vadd.f32 %v1299, %v1641
    %v1794 = vadd.f32 %v1300, %v1642
    %v1795 = vadd.f32 %v1301, %v1643
    %v1796 = vadd.f32 %v1302, %v1644
    %v1797 = vadd.f32 %v1303, %v1645
    %v1798 = vadd.f32 %v1304, %v1646
    %v1799 = vadd.f32 %v1305, %v1647
    %v1800 = vadd.f32 %v1306, %v1648
    %v1801 = vadd.f32 %v1307, %v1649
    %v1802 = vadd.f32 %v1308, %v1650
    %v1803 = vadd.f32 %v1309, %v1651
    %v1804 = vadd.f32 %v1310, %v1652
    %v1805 = vadd.f32 %v1311, %v1653
    %v1806 = vadd.f32 %v1312, %v1654
    %v1807 = vadd.f32 %v1313, %v1655
    %v1808 = vadd.f32 %v1314, %v1656
    %v1809 = vadd.f32 %v1315, %v1657
    %v1810 = vadd.f32 %v1316, %v1658
    %v1811 = vadd.f32 %v1317, %v1659
    %v1812 = vadd.f32 %v1318, %v1660
    %v1813 = vadd.f32 %v1319, %v1661
    %v1814 = vadd.f32 %v1320, %v1662
    %v1815 = vadd.f32 %v1321, %v1663
    %v1816 = vadd.f32 %v1322, %v1664
    %v1817 = vadd.f32 %v1323, %v1665
    %v1818 = vadd.f32 %v1324, %v1666
    %v1819 = vadd.f32 %v1325, %v1667
    %v1820 = vadd.f32 %v1326, %v1668
    %v1821 = vadd.f32 %v1327, %v1669
    %v1822 = vadd.f32 %v1328, %v1670
    %v1823 = vadd.f32 %v1329, %v1671
    %v1824 = vadd.f32 %v1330, %v1672
    %v1825 = vadd.f32 %v1331, %v1673
    %v1826 = vadd.f32 %v1332, %v1674
    %v1827 = vadd.f32 %v1333, %v1675
    %v1828 = vadd.f32 %v1334, %v1676
    %v1829 = vadd.f32 %v1335, %v1677
    %v1830 = vadd.f32 %v1336, %v1678
    %v1831 = vadd.f32 %v1337, %v1679
    %v1832 = vadd.f32 %v1338, %v1680
    %v1833 = vadd.f32 %v1339, %v1681
    %v1834 = vadd.f32 %v1340, %v1682
    %v1835 = vadd.f32 %v1341, %v1683
    %v1836 = vadd.f32 %v1342, %v1684
    %v1837 = vadd.f32 %v1343, %v1685
    %v1838 = vadd.f32 %v1344, %v1686
    %v1839 = vadd.f32 %v1345, %v1687
    %v1840 = vadd.f32 %v1346, %v1688
    %v1841 = vadd.f32 %v1347, %v1689
    %v1842 = vadd.f32 %v1348, %v1690
    %v1843 = vadd.f32 %v1349, %v1691
    %v1844 = vadd.f32 %v1350, %v1692
    %v1845 = vadd.f32 %v1351, %v1693
    %v1846 = vadd.f32 %v1352, %v1694
    %v1847 = vadd.f32 %v1353, %v1695
    %v1848 = vadd.f32 %v1354, %v1696
    %v1849 = vadd.f32 %v1355, %v1697
    %v1850 = vadd.f32 %v1356, %v1698
    %v1851 = vadd.f32 %v1357, %v1699
    %v1852 = vadd.f32 %v1358, %v1700
    %v1853 = vadd.f32 %v1359, %v1701
    %v1854 = vadd.f32 %v1360, %v1702
    %v1855 = vadd.f32 %v1361, %v1703
    %v1856 = vadd.f32 %v1362, %v1704
    %v1857 = vadd.f32 %v1363, %v1705
    %v1858 = vadd.f32 %v1364, %v1706
    %v1859 = vadd.f32 %v1365, %v1707
    %v1860 = vadd.f32 %v1366, %v1708
    %v1861 = vadd.f32 %v1367, %v1709
    %v1862 = vadd.f32 %v1368, %v1710
    %v1863 = vadd.f32 %v1369, %v1711
    %v1864 = vadd.f32 %v1370, %v1712
    %v1865 = vadd.f32 %v1371, %v1713
    %v1866 = vadd.f32 %v1372, %v1714
    %v1867 = vadd.f32 %v1373, %v1715
    %v1868 = vadd.f32 %v1374, %v1716
    %v1869 = vadd.f32 %v1375, %v1717
    %v1870 = vadd.f32 %v1376, %v1718
    %v1871 = vadd.f32 %v1377, %v1719
    %v1872 = vadd.f32 %v1378, %v1720
    %v1873 = vadd.f32 %v1379, %v1721
    %v1874 = vadd.f32 %v1380, %v1722
    %v1875 = vadd.f32 %v1381, %v1723
    %v1876 = vadd.f32 %v1382, %v1724
    %v1877 = vadd.f32 %v1383, %v1725
    %v1878 = vadd.f32 %v1384, %v1726
    %v1879 = vadd.f32 %v1385, %v1727
    %v1880 = vadd.f32 %v1386, %v1728
    %v1881 = vadd.f32 %v1387, %v1729
    %v1882 = vadd.f32 %v1388, %v1730
    %v1883 = vadd.f32 %v1389, %v1731
    %v1884 = vadd.f32 %v1390, %v1732
    %v1885 = vadd.f32 %v1391, %v1733
    %v1886 = vadd.f32 %v1392, %v1734
    %v1887 = vadd.f32 %v1393, %v1735
    %v1888 = vadd.f32 %v1394, %v1736
    %v1889 = vadd.f32 %v1395, %v1737
    %v1890 = vadd.f32 %v1396, %v1738
    %v1891 = vadd.f32 %v1397, %v1739
    %v1892 = vadd.f32 %v1398, %v1740
    %v1893 = vadd.f32 %v1399, %v1741
    %v1894 = vadd.f32 %v1400, %v1742
    %v1895 = vadd.f32 %v1401, %v1743
    %v1896 = vadd.f32 %v1402, %v1744
    %v1897 = vadd.f32 %v1403, %v1745
    %v1898 = vadd.f32 %v1404, %v1746
    %v1899 = vadd.f32 %v1405, %v1747
    %v1900 = vadd.f32 %v1406, %v1748
    %v1901 = vadd.f32 %v1407, %v1749
    %v1902 = vadd.f32 %v1408, %v1750
    %v1903 = vadd.f32 %v1409, %v1751
    %v1904 = vadd.f32 %v1410, %v1752
    %v1905 = vadd.f32 %v1411, %v1753
    %v1906 = vadd.f32 %v1412, %v1754
    %v1907 = vadd.f32 %v1413, %v1755
    %v1908 = vadd.f32 %v1756, %v1757
    %v1909 = vadd.f32 %v1908, %v1758
    %v1910 = vadd.f32 %v1909, %v1759
    %v1911 = vadd.f32 %v1910, %v1760
    %v1912 = vadd.f32 %v1911, %v1761
    %v1913 = vadd.f32 %v1912, %v1762
    %v1914 = vadd.f32 %v1913, %v1763
    %v1915 = vadd.f32 %v1914, %v1764
    %v1916 = vadd.f32 %v1915, %v1765
    %v1917 = vadd.f32 %v1916, %v1766
    %v1918 = vadd.f32 %v1917, %v1767
    %v1919 = vadd.f32 %v1918, %v1768
    %v1920 = vadd.f32 %v1919, %v1769
    %v1921 = vadd.f32 %v1920, %v1770
    %v1922 = vadd.f32 %v1921, %v1771
    %v1923 = vadd.f32 %v1922, %v1772
    %v1924 = vadd.f32 %v1923, %v1773
    %vm1925 = vcmask 261120
    %v1926 = vsel %vm1925, %v1774, 0.0
    %v1927 = vadd.f32 %v1924, %v1926
    %1928 = vadd.xlane.f32.xlu0 %v1927
    %v1929 = vpop.xlane.xlu0 %1928
    %v1930 = vadd.f32 %v1775, %v1776
    %v1931 = vadd.f32 %v1930, %v1777
    %v1932 = vadd.f32 %v1931, %v1778
    %v1933 = vadd.f32 %v1932, %v1779
    %v1934 = vadd.f32 %v1933, %v1780
    %v1935 = vadd.f32 %v1934, %v1781
    %v1936 = vadd.f32 %v1935, %v1782
    %v1937 = vadd.f32 %v1936, %v1783
    %v1938 = vadd.f32 %v1937, %v1784
    %v1939 = vadd.f32 %v1938, %v1785
    %v1940 = vadd.f32 %v1939, %v1786
    %v1941 = vadd.f32 %v1940, %v1787
    %v1942 = vadd.f32 %v1941, %v1788
    %v1943 = vadd.f32 %v1942, %v1789
    %v1944 = vadd.f32 %v1943, %v1790
    %v1945 = vadd.f32 %v1944, %v1791
    %v1946 = vadd.f32 %v1945, %v1792
    %v1947 = vsel %vm1925, %v1793, 0.0
    %v1948 = vadd.f32 %v1946, %v1947
    %1949 = vadd.xlane.f32.xlu0 %v1948
    %v1950 = vpop.xlane.xlu0 %1949
    %v1951 = vadd.f32 %v1794, %v1795
    %v1952 = vadd.f32 %v1951, %v1796
    %v1953 = vadd.f32 %v1952, %v1797
    %v1954 = vadd.f32 %v1953, %v1798
    %v1955 = vadd.f32 %v1954, %v1799
    %v1956 = vadd.f32 %v1955, %v1800
    %v1957 = vadd.f32 %v1956, %v1801
    %v1958 = vadd.f32 %v1957, %v1802
    %v1959 = vadd.f32 %v1958, %v1803
    %v1960 = vadd.f32 %v1959, %v1804
    %v1961 = vadd.f32 %v1960, %v1805
    %v1962 = vadd.f32 %v1961, %v1806
    %v1963 = vadd.f32 %v1962, %v1807
    %v1964 = vadd.f32 %v1963, %v1808
    %v1965 = vadd.f32 %v1964, %v1809
    %v1966 = vadd.f32 %v1965, %v1810
    %v1967 = vadd.f32 %v1966, %v1811
    %v1968 = vsel %vm1925, %v1812, 0.0
    %v1969 = vadd.f32 %v1967, %v1968
    %1970 = vadd.xlane.f32.xlu0 %v1969
    %v1971 = vpop.xlane.xlu0 %1970
    %v1972 = vadd.f32 %v1813, %v1814
    %v1973 = vadd.f32 %v1972, %v1815
    %v1974 = vadd.f32 %v1973, %v1816
    %v1975 = vadd.f32 %v1974, %v1817
    %v1976 = vadd.f32 %v1975, %v1818
    %v1977 = vadd.f32 %v1976, %v1819
    %v1978 = vadd.f32 %v1977, %v1820
    %v1979 = vadd.f32 %v1978, %v1821
    %v1980 = vadd.f32 %v1979, %v1822
    %v1981 = vadd.f32 %v1980, %v1823
    %v1982 = vadd.f32 %v1981, %v1824
    %v1983 = vadd.f32 %v1982, %v1825
    %v1984 = vadd.f32 %v1983, %v1826
    %v1985 = vadd.f32 %v1984, %v1827
    %v1986 = vadd.f32 %v1985, %v1828
    %v1987 = vadd.f32 %v1986, %v1829
    %v1988 = vadd.f32 %v1987, %v1830
    %v1989 = vsel %vm1925, %v1831, 0.0
    %v1990 = vadd.f32 %v1988, %v1989
    %1991 = vadd.xlane.f32.xlu0 %v1990
    %v1992 = vpop.xlane.xlu0 %1991
    %v1993 = vadd.f32 %v1832, %v1833
    %v1994 = vadd.f32 %v1993, %v1834
    %v1995 = vadd.f32 %v1994, %v1835
    %v1996 = vadd.f32 %v1995, %v1836
    %v1997 = vadd.f32 %v1996, %v1837
    %v1998 = vadd.f32 %v1997, %v1838
    %v1999 = vadd.f32 %v1998, %v1839
    %v2000 = vadd.f32 %v1999, %v1840
    %v2001 = vadd.f32 %v2000, %v1841
    %v2002 = vadd.f32 %v2001, %v1842
    %v2003 = vadd.f32 %v2002, %v1843
    %v2004 = vadd.f32 %v2003, %v1844
    %v2005 = vadd.f32 %v2004, %v1845
    %v2006 = vadd.f32 %v2005, %v1846
    %v2007 = vadd.f32 %v2006, %v1847
    %v2008 = vadd.f32 %v2007, %v1848
    %v2009 = vadd.f32 %v2008, %v1849
    %v2010 = vsel %vm1925, %v1850, 0.0
    %v2011 = vadd.f32 %v2009, %v2010
    %2012 = vadd.xlane.f32.xlu0 %v2011
    %v2013 = vpop.xlane.xlu0 %2012
    %v2014 = vadd.f32 %v1851, %v1852
    %v2015 = vadd.f32 %v2014, %v1853
    %v2016 = vadd.f32 %v2015, %v1854
    %v2017 = vadd.f32 %v2016, %v1855
    %v2018 = vadd.f32 %v2017, %v1856
    %v2019 = vadd.f32 %v2018, %v1857
    %v2020 = vadd.f32 %v2019, %v1858
    %v2021 = vadd.f32 %v2020, %v1859
    %v2022 = vadd.f32 %v2021, %v1860
    %v2023 = vadd.f32 %v2022, %v1861
    %v2024 = vadd.f32 %v2023, %v1862
    %v2025 = vadd.f32 %v2024, %v1863
    %v2026 = vadd.f32 %v2025, %v1864
    %v2027 = vadd.f32 %v2026, %v1865
    %v2028 = vadd.f32 %v2027, %v1866
    %v2029 = vadd.f32 %v2028, %v1867
    %v2030 = vadd.f32 %v2029, %v1868
    %v2031 = vsel %vm1925, %v1869, 0.0
    %v2032 = vadd.f32 %v2030, %v2031
    %2033 = vadd.xlane.f32.xlu0 %v2032
    %v2034 = vpop.xlane.xlu0 %2033
    %v2035 = vadd.f32 %v1870, %v1871
    %v2036 = vadd.f32 %v2035, %v1872
    %v2037 = vadd.f32 %v2036, %v1873
    %v2038 = vadd.f32 %v2037, %v1874
    %v2039 = vadd.f32 %v2038, %v1875
    %v2040 = vadd.f32 %v2039, %v1876
    %v2041 = vadd.f32 %v2040, %v1877
    %v2042 = vadd.f32 %v2041, %v1878
    %v2043 = vadd.f32 %v2042, %v1879
    %v2044 = vadd.f32 %v2043, %v1880
    %v2045 = vadd.f32 %v2044, %v1881
    %v2046 = vadd.f32 %v2045, %v1882
    %v2047 = vadd.f32 %v2046, %v1883
    %v2048 = vadd.f32 %v2047, %v1884
    %v2049 = vadd.f32 %v2048, %v1885
    %v2050 = vadd.f32 %v2049, %v1886
    %v2051 = vadd.f32 %v2050, %v1887
    %v2052 = vsel %vm1925, %v1888, 0.0
    %v2053 = vadd.f32 %v2051, %v2052
    %2054 = vadd.xlane.f32.xlu0 %v2053
    %v2055 = vpop.xlane.xlu0 %2054
    %v2056 = vadd.f32 %v1889, %v1890
    %v2057 = vadd.f32 %v2056, %v1891
    %v2058 = vadd.f32 %v2057, %v1892
    %v2059 = vadd.f32 %v2058, %v1893
    %v2060 = vadd.f32 %v2059, %v1894
    %v2061 = vadd.f32 %v2060, %v1895
    %v2062 = vadd.f32 %v2061, %v1896
    %v2063 = vadd.f32 %v2062, %v1897
    %v2064 = vadd.f32 %v2063, %v1898
    %v2065 = vadd.f32 %v2064, %v1899
    %v2066 = vadd.f32 %v2065, %v1900
    %v2067 = vadd.f32 %v2066, %v1901
    %v2068 = vadd.f32 %v2067, %v1902
    %v2069 = vadd.f32 %v2068, %v1903
    %v2070 = vadd.f32 %v2069, %v1904
    %v2071 = vadd.f32 %v2070, %v1905
    %v2072 = vadd.f32 %v2071, %v1906
    %v2073 = vsel %vm1925, %v1907, 0.0
    %v2074 = vadd.f32 %v2072, %v2073
    %2075 = vadd.xlane.f32.xlu0 %v2074
    %v2076 = vpop.xlane.xlu0 %2075
    %v2077 = vmul.f32 %v1929, 0.0004280822
    %v2078 = vmul.f32 %v1950, 0.0004280822
    %v2079 = vmul.f32 %v1971, 0.0004280822
    %v2080 = vmul.f32 %v1992, 0.0004280822
    %v2081 = vmul.f32 %v2013, 0.0004280822
    %v2082 = vmul.f32 %v2034, 0.0004280822
    %v2083 = vmul.f32 %v2055, 0.0004280822
    %v2084 = vmul.f32 %v2076, 0.0004280822
    %v2085 = vmul.f32 %v2077, %v2077
    %v2086 = vmul.f32 %v2078, %v2078
    %v2087 = vmul.f32 %v2079, %v2079
    %v2088 = vmul.f32 %v2080, %v2080
    %v2089 = vmul.f32 %v2081, %v2081
    %v2090 = vmul.f32 %v2082, %v2082
    %v2091 = vmul.f32 %v2083, %v2083
    %v2092 = vmul.f32 %v2084, %v2084
    %v2093 = vadd.f32 %v2085, %v2086
    %v2094 = vrot.slane %v2093, 4
    %v2095 = vadd.f32 %v2093, %v2094
    %v2096 = vrot.slane %v2095, 2
    %v2097 = vadd.f32 %v2095, %v2096
    %v2098 = vrot.slane %v2097, 1
    %v2099 = vadd.f32 %v2097, %v2098
    %v2100 = vadd.f32 %v2087, %v2088
    %v2101 = vrot.slane %v2100, 4
    %v2102 = vadd.f32 %v2100, %v2101
    %v2103 = vrot.slane %v2102, 2
    %v2104 = vadd.f32 %v2102, %v2103
    %v2105 = vrot.slane %v2104, 1
    %v2106 = vadd.f32 %v2104, %v2105
    %v2107 = vadd.f32 %v2089, %v2090
    %v2108 = vrot.slane %v2107, 4
    %v2109 = vadd.f32 %v2107, %v2108
    %v2110 = vrot.slane %v2109, 2
    %v2111 = vadd.f32 %v2109, %v2110
    %v2112 = vrot.slane %v2111, 1
    %v2113 = vadd.f32 %v2111, %v2112
    %v2114 = vadd.f32 %v2091, %v2092
    %v2115 = vrot.slane %v2114, 4
    %v2116 = vadd.f32 %v2114, %v2115
    %v2117 = vrot.slane %v2116, 2
    %v2118 = vadd.f32 %v2116, %v2117
    %v2119 = vrot.slane %v2118, 1
    %v2120 = vadd.f32 %v2118, %v2119
    %v2121 = vrsqrt.pop %v2099
    %v2122 = vmul.f32 %v2121, %v2099
    %v2123 = vmul.f32 %v2122, %v2121
    %v2124 = vmul.f32 0.5, %v2123
    %v2125 = vsub.f32 1.5, %v2124
    %v2126 = vmul.f32 %v2121, %v2125
    %v2127 = vmul.f32 %v2099, %v2126
    %vm2128 = vcmp.eq.f32.partialorder %v2099, inf
    %v2129 = vsel %vm2128, %v2099, %v2127
    %vm2130 = vcmp.eq.f32.partialorder %v2099, 0.0
    %v2131 = vand.u32 %v2099, 2147483648
    %v2132 = vsel %vm2130, %v2131, %v2129
    %v2133 = vrsqrt.pop %v2106
    %v2134 = vmul.f32 %v2133, %v2106
    %v2135 = vmul.f32 %v2134, %v2133
    %v2136 = vmul.f32 0.5, %v2135
    %v2137 = vsub.f32 1.5, %v2136
    %v2138 = vmul.f32 %v2133, %v2137
    %v2139 = vmul.f32 %v2106, %v2138
    %vm2140 = vcmp.eq.f32.partialorder %v2106, inf
    %v2141 = vsel %vm2140, %v2106, %v2139
    %vm2142 = vcmp.eq.f32.partialorder %v2106, 0.0
    %v2143 = vand.u32 %v2106, 2147483648
    %v2144 = vsel %vm2142, %v2143, %v2141
    %v2145 = vrsqrt.pop %v2113
    %v2146 = vmul.f32 %v2145, %v2113
    %v2147 = vmul.f32 %v2146, %v2145
    %v2148 = vmul.f32 0.5, %v2147
    %v2149 = vsub.f32 1.5, %v2148
    %v2150 = vmul.f32 %v2145, %v2149
    %v2151 = vmul.f32 %v2113, %v2150
    %vm2152 = vcmp.eq.f32.partialorder %v2113, inf
    %v2153 = vsel %vm2152, %v2113, %v2151
    %vm2154 = vcmp.eq.f32.partialorder %v2113, 0.0
    %v2155 = vand.u32 %v2113, 2147483648
    %v2156 = vsel %vm2154, %v2155, %v2153
    %v2157 = vrsqrt.pop %v2120
    %v2158 = vmul.f32 %v2157, %v2120
    %v2159 = vmul.f32 %v2158, %v2157
    %v2160 = vmul.f32 0.5, %v2159
    %v2161 = vsub.f32 1.5, %v2160
    %v2162 = vmul.f32 %v2157, %v2161
    %v2163 = vmul.f32 %v2120, %v2162
    %vm2164 = vcmp.eq.f32.partialorder %v2120, inf
    %v2165 = vsel %vm2164, %v2120, %v2163
    %vm2166 = vcmp.eq.f32.partialorder %v2120, 0.0
    %v2167 = vand.u32 %v2120, 2147483648
    %v2168 = vsel %vm2166, %v2167, %v2165
    %v2169 = vadd.f32 %v2099, 1.0
    %v2170 = vadd.f32 %v2106, 1.0
    %v2171 = vadd.f32 %v2113, 1.0
    %v2172 = vadd.f32 %v2120, 1.0
    %v2173 = vrcp.pop %v2169
    %v2174 = vmul.f32 %v2169, %v2173
    %v2175 = vsub.f32 1.0, %v2174
    %v2176 = vmul.f32 %v2173, %v2175
    %v2177 = vadd.f32 %v2173, %v2176
    %vm2178 = vweird.f32 %v2169
    %vm2179 = vweird.f32 %v2173
    %vm2180 = vmor %vm2178, %vm2179
    %v2181 = vsel %vm2180, %v2173, %v2177
    %v2182 = vand.u32 2147483647, %v2169
    %vm2183 = vcmp.eq.f32.partialorder %v2182, 8.507059e+37
    %v2184 = vand.u32 %v2169, 2147483648
    %v2185 = vor.u32 1.1754944e-38, %v2184
    %v2186 = vsel %vm2183, %v2185, %v2181
    %v2187 = vmul.f32 %v2132, %v2186
    %v2188 = vrcp.pop %v2170
    %v2189 = vmul.f32 %v2170, %v2188
    %v2190 = vsub.f32 1.0, %v2189
    %v2191 = vmul.f32 %v2188, %v2190
    %v2192 = vadd.f32 %v2188, %v2191
    %vm2193 = vweird.f32 %v2170
    %vm2194 = vweird.f32 %v2188
    %vm2195 = vmor %vm2193, %vm2194
    %v2196 = vsel %vm2195, %v2188, %v2192
    %v2197 = vand.u32 2147483647, %v2170
    %vm2198 = vcmp.eq.f32.partialorder %v2197, 8.507059e+37
    %v2199 = vand.u32 %v2170, 2147483648
    %v2200 = vor.u32 1.1754944e-38, %v2199
    %v2201 = vsel %vm2198, %v2200, %v2196
    %v2202 = vmul.f32 %v2144, %v2201
    %v2203 = vrcp.pop %v2171
    %v2204 = vmul.f32 %v2171, %v2203
    %v2205 = vsub.f32 1.0, %v2204
    %v2206 = vmul.f32 %v2203, %v2205
    %v2207 = vadd.f32 %v2203, %v2206
    %vm2208 = vweird.f32 %v2171
    %vm2209 = vweird.f32 %v2203
    %vm2210 = vmor %vm2208, %vm2209
    %v2211 = vsel %vm2210, %v2203, %v2207
    %v2212 = vand.u32 2147483647, %v2171
    %vm2213 = vcmp.eq.f32.partialorder %v2212, 8.507059e+37
    %v2214 = vand.u32 %v2171, 2147483648
    %v2215 = vor.u32 1.1754944e-38, %v2214
    %v2216 = vsel %vm2213, %v2215, %v2211
    %v2217 = vmul.f32 %v2156, %v2216
    %v2218 = vrcp.pop %v2172
    %v2219 = vmul.f32 %v2172, %v2218
    %v2220 = vsub.f32 1.0, %v2219
    %v2221 = vmul.f32 %v2218, %v2220
    %v2222 = vadd.f32 %v2218, %v2221
    %vm2223 = vweird.f32 %v2172
    %vm2224 = vweird.f32 %v2218
    %vm2225 = vmor %vm2223, %vm2224
    %v2226 = vsel %vm2225, %v2218, %v2222
    %v2227 = vand.u32 2147483647, %v2172
    %vm2228 = vcmp.eq.f32.partialorder %v2227, 8.507059e+37
    %v2229 = vand.u32 %v2172, 2147483648
    %v2230 = vor.u32 1.1754944e-38, %v2229
    %v2231 = vsel %vm2228, %v2230, %v2226
    %v2232 = vmul.f32 %v2168, %v2231
    %v2233 = vmul.f32 %v2077, %v2187
    %v2234 = vmul.f32 %v2078, %v2187
    %v2235 = vmul.f32 %v2079, %v2202
    %v2236 = vmul.f32 %v2080, %v2202
    %v2237 = vmul.f32 %v2081, %v2217
    %v2238 = vmul.f32 %v2082, %v2217
    %v2239 = vmul.f32 %v2083, %v2232
    %v2240 = vmul.f32 %v2084, %v2232
    %v2241 = vmul.f32 %v1756, %v2233
    %v2242 = vmul.f32 %v1757, %v2233
    %v2243 = vmul.f32 %v1758, %v2233
    %v2244 = vmul.f32 %v1759, %v2233
    %v2245 = vmul.f32 %v1760, %v2233
    %v2246 = vmul.f32 %v1761, %v2233
    %v2247 = vmul.f32 %v1762, %v2233
    %v2248 = vmul.f32 %v1763, %v2233
    %v2249 = vmul.f32 %v1764, %v2233
    %v2250 = vmul.f32 %v1765, %v2233
    %v2251 = vmul.f32 %v1766, %v2233
    %v2252 = vmul.f32 %v1767, %v2233
    %v2253 = vmul.f32 %v1768, %v2233
    %v2254 = vmul.f32 %v1769, %v2233
    %v2255 = vmul.f32 %v1770, %v2233
    %v2256 = vmul.f32 %v1771, %v2233
    %v2257 = vmul.f32 %v1772, %v2233
    %v2258 = vmul.f32 %v1773, %v2233
    %v2259 = vmul.f32 %v1774, %v2233
    %v2260 = vmul.f32 %v1775, %v2234
    %v2261 = vmul.f32 %v1776, %v2234
    %v2262 = vmul.f32 %v1777, %v2234
    %v2263 = vmul.f32 %v1778, %v2234
    %v2264 = vmul.f32 %v1779, %v2234
    %v2265 = vmul.f32 %v1780, %v2234
    %v2266 = vmul.f32 %v1781, %v2234
    %v2267 = vmul.f32 %v1782, %v2234
    %v2268 = vmul.f32 %v1783, %v2234
    %v2269 = vmul.f32 %v1784, %v2234
    %v2270 = vmul.f32 %v1785, %v2234
    %v2271 = vmul.f32 %v1786, %v2234
    %v2272 = vmul.f32 %v1787, %v2234
    %v2273 = vmul.f32 %v1788, %v2234
    %v2274 = vmul.f32 %v1789, %v2234
    %v2275 = vmul.f32 %v1790, %v2234
    %v2276 = vmul.f32 %v1791, %v2234
    %v2277 = vmul.f32 %v1792, %v2234
    %v2278 = vmul.f32 %v1793, %v2234
    %v2279 = vmul.f32 %v1794, %v2235
    %v2280 = vmul.f32 %v1795, %v2235
    %v2281 = vmul.f32 %v1796, %v2235
    %v2282 = vmul.f32 %v1797, %v2235
    %v2283 = vmul.f32 %v1798, %v2235
    %v2284 = vmul.f32 %v1799, %v2235
    %v2285 = vmul.f32 %v1800, %v2235
    %v2286 = vmul.f32 %v1801, %v2235
    %v2287 = vmul.f32 %v1802, %v2235
    %v2288 = vmul.f32 %v1803, %v2235
    %v2289 = vmul.f32 %v1804, %v2235
    %v2290 = vmul.f32 %v1805, %v2235
    %v2291 = vmul.f32 %v1806, %v2235
    %v2292 = vmul.f32 %v1807, %v2235
    %v2293 = vmul.f32 %v1808, %v2235
    %v2294 = vmul.f32 %v1809, %v2235
    %v2295 = vmul.f32 %v1810, %v2235
    %v2296 = vmul.f32 %v1811, %v2235
    %v2297 = vmul.f32 %v1812, %v2235
    %v2298 = vmul.f32 %v1813, %v2236
    %v2299 = vmul.f32 %v1814, %v2236
    %v2300 = vmul.f32 %v1815, %v2236
    %v2301 = vmul.f32 %v1816, %v2236
    %v2302 = vmul.f32 %v1817, %v2236
    %v2303 = vmul.f32 %v1818, %v2236
    %v2304 = vmul.f32 %v1819, %v2236
    %v2305 = vmul.f32 %v1820, %v2236
    %v2306 = vmul.f32 %v1821, %v2236
    %v2307 = vmul.f32 %v1822, %v2236
    %v2308 = vmul.f32 %v1823, %v2236
    %v2309 = vmul.f32 %v1824, %v2236
    %v2310 = vmul.f32 %v1825, %v2236
    %v2311 = vmul.f32 %v1826, %v2236
    %v2312 = vmul.f32 %v1827, %v2236
    %v2313 = vmul.f32 %v1828, %v2236
    %v2314 = vmul.f32 %v1829, %v2236
    %v2315 = vmul.f32 %v1830, %v2236
    %v2316 = vmul.f32 %v1831, %v2236
    %v2317 = vmul.f32 %v1832, %v2237
    %v2318 = vmul.f32 %v1833, %v2237
    %v2319 = vmul.f32 %v1834, %v2237
    %v2320 = vmul.f32 %v1835, %v2237
    %v2321 = vmul.f32 %v1836, %v2237
    %v2322 = vmul.f32 %v1837, %v2237
    %v2323 = vmul.f32 %v1838, %v2237
    %v2324 = vmul.f32 %v1839, %v2237
    %v2325 = vmul.f32 %v1840, %v2237
    %v2326 = vmul.f32 %v1841, %v2237
    %v2327 = vmul.f32 %v1842, %v2237
    %v2328 = vmul.f32 %v1843, %v2237
    %v2329 = vmul.f32 %v1844, %v2237
    %v2330 = vmul.f32 %v1845, %v2237
    %v2331 = vmul.f32 %v1846, %v2237
    %v2332 = vmul.f32 %v1847, %v2237
    %v2333 = vmul.f32 %v1848, %v2237
    %v2334 = vmul.f32 %v1849, %v2237
    %v2335 = vmul.f32 %v1850, %v2237
    %v2336 = vmul.f32 %v1851, %v2238
    %v2337 = vmul.f32 %v1852, %v2238
    %v2338 = vmul.f32 %v1853, %v2238
    %v2339 = vmul.f32 %v1854, %v2238
    %v2340 = vmul.f32 %v1855, %v2238
    %v2341 = vmul.f32 %v1856, %v2238
    %v2342 = vmul.f32 %v1857, %v2238
    %v2343 = vmul.f32 %v1858, %v2238
    %v2344 = vmul.f32 %v1859, %v2238
    %v2345 = vmul.f32 %v1860, %v2238
    %v2346 = vmul.f32 %v1861, %v2238
    %v2347 = vmul.f32 %v1862, %v2238
    %v2348 = vmul.f32 %v1863, %v2238
    %v2349 = vmul.f32 %v1864, %v2238
    %v2350 = vmul.f32 %v1865, %v2238
    %v2351 = vmul.f32 %v1866, %v2238
    %v2352 = vmul.f32 %v1867, %v2238
    %v2353 = vmul.f32 %v1868, %v2238
    %v2354 = vmul.f32 %v1869, %v2238
    %v2355 = vmul.f32 %v1870, %v2239
    %v2356 = vmul.f32 %v1871, %v2239
    %v2357 = vmul.f32 %v1872, %v2239
    %v2358 = vmul.f32 %v1873, %v2239
    %v2359 = vmul.f32 %v1874, %v2239
    %v2360 = vmul.f32 %v1875, %v2239
    %v2361 = vmul.f32 %v1876, %v2239
    %v2362 = vmul.f32 %v1877, %v2239
    %v2363 = vmul.f32 %v1878, %v2239
    %v2364 = vmul.f32 %v1879, %v2239
    %v2365 = vmul.f32 %v1880, %v2239
    %v2366 = vmul.f32 %v1881, %v2239
    %v2367 = vmul.f32 %v1882, %v2239
    %v2368 = vmul.f32 %v1883, %v2239
    %v2369 = vmul.f32 %v1884, %v2239
    %v2370 = vmul.f32 %v1885, %v2239
    %v2371 = vmul.f32 %v1886, %v2239
    %v2372 = vmul.f32 %v1887, %v2239
    %v2373 = vmul.f32 %v1888, %v2239
    %v2374 = vmul.f32 %v1889, %v2240
    %v2375 = vmul.f32 %v1890, %v2240
    %v2376 = vmul.f32 %v1891, %v2240
    %v2377 = vmul.f32 %v1892, %v2240
    %v2378 = vmul.f32 %v1893, %v2240
    %v2379 = vmul.f32 %v1894, %v2240
    %v2380 = vmul.f32 %v1895, %v2240
    %v2381 = vmul.f32 %v1896, %v2240
    %v2382 = vmul.f32 %v1897, %v2240
    %v2383 = vmul.f32 %v1898, %v2240
    %v2384 = vmul.f32 %v1899, %v2240
    %v2385 = vmul.f32 %v1900, %v2240
    %v2386 = vmul.f32 %v1901, %v2240
    %v2387 = vmul.f32 %v1902, %v2240
    %v2388 = vmul.f32 %v1903, %v2240
    %v2389 = vmul.f32 %v1904, %v2240
    %v2390 = vmul.f32 %v1905, %v2240
    %v2391 = vmul.f32 %v1906, %v2240
    %v2392 = vmul.f32 %v1907, %v2240
    %v2393 = vadd.f32 %v2241, %v2260
    %v2394 = vrot.slane %v2393, 4
    %v2395 = vadd.f32 %v2393, %v2394
    %v2396 = vrot.slane %v2395, 2
    %v2397 = vadd.f32 %v2395, %v2396
    %v2398 = vrot.slane %v2397, 1
    %v2399 = vadd.f32 %v2397, %v2398
    %v2400 = vadd.f32 %v2242, %v2261
    %v2401 = vrot.slane %v2400, 4
    %v2402 = vadd.f32 %v2400, %v2401
    %v2403 = vrot.slane %v2402, 2
    %v2404 = vadd.f32 %v2402, %v2403
    %v2405 = vrot.slane %v2404, 1
    %v2406 = vadd.f32 %v2404, %v2405
    %v2407 = vadd.f32 %v2243, %v2262
    %v2408 = vrot.slane %v2407, 4
    %v2409 = vadd.f32 %v2407, %v2408
    %v2410 = vrot.slane %v2409, 2
    %v2411 = vadd.f32 %v2409, %v2410
    %v2412 = vrot.slane %v2411, 1
    %v2413 = vadd.f32 %v2411, %v2412
    %v2414 = vadd.f32 %v2244, %v2263
    %v2415 = vrot.slane %v2414, 4
    %v2416 = vadd.f32 %v2414, %v2415
    %v2417 = vrot.slane %v2416, 2
    %v2418 = vadd.f32 %v2416, %v2417
    %v2419 = vrot.slane %v2418, 1
    %v2420 = vadd.f32 %v2418, %v2419
    %v2421 = vadd.f32 %v2245, %v2264
    %v2422 = vrot.slane %v2421, 4
    %v2423 = vadd.f32 %v2421, %v2422
    %v2424 = vrot.slane %v2423, 2
    %v2425 = vadd.f32 %v2423, %v2424
    %v2426 = vrot.slane %v2425, 1
    %v2427 = vadd.f32 %v2425, %v2426
    %v2428 = vadd.f32 %v2246, %v2265
    %v2429 = vrot.slane %v2428, 4
    %v2430 = vadd.f32 %v2428, %v2429
    %v2431 = vrot.slane %v2430, 2
    %v2432 = vadd.f32 %v2430, %v2431
    %v2433 = vrot.slane %v2432, 1
    %v2434 = vadd.f32 %v2432, %v2433
    %v2435 = vadd.f32 %v2247, %v2266
    %v2436 = vrot.slane %v2435, 4
    %v2437 = vadd.f32 %v2435, %v2436
    %v2438 = vrot.slane %v2437, 2
    %v2439 = vadd.f32 %v2437, %v2438
    %v2440 = vrot.slane %v2439, 1
    %v2441 = vadd.f32 %v2439, %v2440
    %v2442 = vadd.f32 %v2248, %v2267
    %v2443 = vrot.slane %v2442, 4
    %v2444 = vadd.f32 %v2442, %v2443
    %v2445 = vrot.slane %v2444, 2
    %v2446 = vadd.f32 %v2444, %v2445
    %v2447 = vrot.slane %v2446, 1
    %v2448 = vadd.f32 %v2446, %v2447
    %v2449 = vadd.f32 %v2249, %v2268
    %v2450 = vrot.slane %v2449, 4
    %v2451 = vadd.f32 %v2449, %v2450
    %v2452 = vrot.slane %v2451, 2
    %v2453 = vadd.f32 %v2451, %v2452
    %v2454 = vrot.slane %v2453, 1
    %v2455 = vadd.f32 %v2453, %v2454
    %v2456 = vadd.f32 %v2250, %v2269
    %v2457 = vrot.slane %v2456, 4
    %v2458 = vadd.f32 %v2456, %v2457
    %v2459 = vrot.slane %v2458, 2
    %v2460 = vadd.f32 %v2458, %v2459
    %v2461 = vrot.slane %v2460, 1
    %v2462 = vadd.f32 %v2460, %v2461
    %v2463 = vadd.f32 %v2251, %v2270
    %v2464 = vrot.slane %v2463, 4
    %v2465 = vadd.f32 %v2463, %v2464
    %v2466 = vrot.slane %v2465, 2
    %v2467 = vadd.f32 %v2465, %v2466
    %v2468 = vrot.slane %v2467, 1
    %v2469 = vadd.f32 %v2467, %v2468
    %v2470 = vadd.f32 %v2252, %v2271
    %v2471 = vrot.slane %v2470, 4
    %v2472 = vadd.f32 %v2470, %v2471
    %v2473 = vrot.slane %v2472, 2
    %v2474 = vadd.f32 %v2472, %v2473
    %v2475 = vrot.slane %v2474, 1
    %v2476 = vadd.f32 %v2474, %v2475
    %v2477 = vadd.f32 %v2253, %v2272
    %v2478 = vrot.slane %v2477, 4
    %v2479 = vadd.f32 %v2477, %v2478
    %v2480 = vrot.slane %v2479, 2
    %v2481 = vadd.f32 %v2479, %v2480
    %v2482 = vrot.slane %v2481, 1
    %v2483 = vadd.f32 %v2481, %v2482
    %v2484 = vadd.f32 %v2254, %v2273
    %v2485 = vrot.slane %v2484, 4
    %v2486 = vadd.f32 %v2484, %v2485
    %v2487 = vrot.slane %v2486, 2
    %v2488 = vadd.f32 %v2486, %v2487
    %v2489 = vrot.slane %v2488, 1
    %v2490 = vadd.f32 %v2488, %v2489
    %v2491 = vadd.f32 %v2255, %v2274
    %v2492 = vrot.slane %v2491, 4
    %v2493 = vadd.f32 %v2491, %v2492
    %v2494 = vrot.slane %v2493, 2
    %v2495 = vadd.f32 %v2493, %v2494
    %v2496 = vrot.slane %v2495, 1
    %v2497 = vadd.f32 %v2495, %v2496
    %v2498 = vadd.f32 %v2256, %v2275
    %v2499 = vrot.slane %v2498, 4
    %v2500 = vadd.f32 %v2498, %v2499
    %v2501 = vrot.slane %v2500, 2
    %v2502 = vadd.f32 %v2500, %v2501
    %v2503 = vrot.slane %v2502, 1
    %v2504 = vadd.f32 %v2502, %v2503
    %v2505 = vadd.f32 %v2257, %v2276
    %v2506 = vrot.slane %v2505, 4
    %v2507 = vadd.f32 %v2505, %v2506
    %v2508 = vrot.slane %v2507, 2
    %v2509 = vadd.f32 %v2507, %v2508
    %v2510 = vrot.slane %v2509, 1
    %v2511 = vadd.f32 %v2509, %v2510
    %v2512 = vadd.f32 %v2258, %v2277
    %v2513 = vrot.slane %v2512, 4
    %v2514 = vadd.f32 %v2512, %v2513
    %v2515 = vrot.slane %v2514, 2
    %v2516 = vadd.f32 %v2514, %v2515
    %v2517 = vrot.slane %v2516, 1
    %v2518 = vadd.f32 %v2516, %v2517
    %v2519 = vsel %vm1925, %v2259, 0.0
    %v2520 = vsel %vm1925, %v2278, 0.0
    %v2521 = vadd.f32 %v2519, %v2520
    %v2522 = vrot.slane %v2521, 4
    %v2523 = vadd.f32 %v2521, %v2522
    %v2524 = vrot.slane %v2523, 2
    %v2525 = vadd.f32 %v2523, %v2524
    %v2526 = vrot.slane %v2525, 1
    %v2527 = vadd.f32 %v2525, %v2526
    %v2528 = vadd.f32 %v2279, %v2298
    %v2529 = vrot.slane %v2528, 4
    %v2530 = vadd.f32 %v2528, %v2529
    %v2531 = vrot.slane %v2530, 2
    %v2532 = vadd.f32 %v2530, %v2531
    %v2533 = vrot.slane %v2532, 1
    %v2534 = vadd.f32 %v2532, %v2533
    %v2535 = vadd.f32 %v2280, %v2299
    %v2536 = vrot.slane %v2535, 4
    %v2537 = vadd.f32 %v2535, %v2536
    %v2538 = vrot.slane %v2537, 2
    %v2539 = vadd.f32 %v2537, %v2538
    %v2540 = vrot.slane %v2539, 1
    %v2541 = vadd.f32 %v2539, %v2540
    %v2542 = vadd.f32 %v2281, %v2300
    %v2543 = vrot.slane %v2542, 4
    %v2544 = vadd.f32 %v2542, %v2543
    %v2545 = vrot.slane %v2544, 2
    %v2546 = vadd.f32 %v2544, %v2545
    %v2547 = vrot.slane %v2546, 1
    %v2548 = vadd.f32 %v2546, %v2547
    %v2549 = vadd.f32 %v2282, %v2301
    %v2550 = vrot.slane %v2549, 4
    %v2551 = vadd.f32 %v2549, %v2550
    %v2552 = vrot.slane %v2551, 2
    %v2553 = vadd.f32 %v2551, %v2552
    %v2554 = vrot.slane %v2553, 1
    %v2555 = vadd.f32 %v2553, %v2554
    %v2556 = vadd.f32 %v2283, %v2302
    %v2557 = vrot.slane %v2556, 4
    %v2558 = vadd.f32 %v2556, %v2557
    %v2559 = vrot.slane %v2558, 2
    %v2560 = vadd.f32 %v2558, %v2559
    %v2561 = vrot.slane %v2560, 1
    %v2562 = vadd.f32 %v2560, %v2561
    %v2563 = vadd.f32 %v2284, %v2303
    %v2564 = vrot.slane %v2563, 4
    %v2565 = vadd.f32 %v2563, %v2564
    %v2566 = vrot.slane %v2565, 2
    %v2567 = vadd.f32 %v2565, %v2566
    %v2568 = vrot.slane %v2567, 1
    %v2569 = vadd.f32 %v2567, %v2568
    %v2570 = vadd.f32 %v2285, %v2304
    %v2571 = vrot.slane %v2570, 4
    %v2572 = vadd.f32 %v2570, %v2571
    %v2573 = vrot.slane %v2572, 2
    %v2574 = vadd.f32 %v2572, %v2573
    %v2575 = vrot.slane %v2574, 1
    %v2576 = vadd.f32 %v2574, %v2575
    %v2577 = vadd.f32 %v2286, %v2305
    %v2578 = vrot.slane %v2577, 4
    %v2579 = vadd.f32 %v2577, %v2578
    %v2580 = vrot.slane %v2579, 2
    %v2581 = vadd.f32 %v2579, %v2580
    %v2582 = vrot.slane %v2581, 1
    %v2583 = vadd.f32 %v2581, %v2582
    %v2584 = vadd.f32 %v2287, %v2306
    %v2585 = vrot.slane %v2584, 4
    %v2586 = vadd.f32 %v2584, %v2585
    %v2587 = vrot.slane %v2586, 2
    %v2588 = vadd.f32 %v2586, %v2587
    %v2589 = vrot.slane %v2588, 1
    %v2590 = vadd.f32 %v2588, %v2589
    %v2591 = vadd.f32 %v2288, %v2307
    %v2592 = vrot.slane %v2591, 4
    %v2593 = vadd.f32 %v2591, %v2592
    %v2594 = vrot.slane %v2593, 2
    %v2595 = vadd.f32 %v2593, %v2594
    %v2596 = vrot.slane %v2595, 1
    %v2597 = vadd.f32 %v2595, %v2596
    %v2598 = vadd.f32 %v2289, %v2308
    %v2599 = vrot.slane %v2598, 4
    %v2600 = vadd.f32 %v2598, %v2599
    %v2601 = vrot.slane %v2600, 2
    %v2602 = vadd.f32 %v2600, %v2601
    %v2603 = vrot.slane %v2602, 1
    %v2604 = vadd.f32 %v2602, %v2603
    %v2605 = vadd.f32 %v2290, %v2309
    %v2606 = vrot.slane %v2605, 4
    %v2607 = vadd.f32 %v2605, %v2606
    %v2608 = vrot.slane %v2607, 2
    %v2609 = vadd.f32 %v2607, %v2608
    %v2610 = vrot.slane %v2609, 1
    %v2611 = vadd.f32 %v2609, %v2610
    %v2612 = vadd.f32 %v2291, %v2310
    %v2613 = vrot.slane %v2612, 4
    %v2614 = vadd.f32 %v2612, %v2613
    %v2615 = vrot.slane %v2614, 2
    %v2616 = vadd.f32 %v2614, %v2615
    %v2617 = vrot.slane %v2616, 1
    %v2618 = vadd.f32 %v2616, %v2617
    %v2619 = vadd.f32 %v2292, %v2311
    %v2620 = vrot.slane %v2619, 4
    %v2621 = vadd.f32 %v2619, %v2620
    %v2622 = vrot.slane %v2621, 2
    %v2623 = vadd.f32 %v2621, %v2622
    %v2624 = vrot.slane %v2623, 1
    %v2625 = vadd.f32 %v2623, %v2624
    %v2626 = vadd.f32 %v2293, %v2312
    %v2627 = vrot.slane %v2626, 4
    %v2628 = vadd.f32 %v2626, %v2627
    %v2629 = vrot.slane %v2628, 2
    %v2630 = vadd.f32 %v2628, %v2629
    %v2631 = vrot.slane %v2630, 1
    %v2632 = vadd.f32 %v2630, %v2631
    %v2633 = vadd.f32 %v2294, %v2313
    %v2634 = vrot.slane %v2633, 4
    %v2635 = vadd.f32 %v2633, %v2634
    %v2636 = vrot.slane %v2635, 2
    %v2637 = vadd.f32 %v2635, %v2636
    %v2638 = vrot.slane %v2637, 1
    %v2639 = vadd.f32 %v2637, %v2638
    %v2640 = vadd.f32 %v2295, %v2314
    %v2641 = vrot.slane %v2640, 4
    %v2642 = vadd.f32 %v2640, %v2641
    %v2643 = vrot.slane %v2642, 2
    %v2644 = vadd.f32 %v2642, %v2643
    %v2645 = vrot.slane %v2644, 1
    %v2646 = vadd.f32 %v2644, %v2645
    %v2647 = vadd.f32 %v2296, %v2315
    %v2648 = vrot.slane %v2647, 4
    %v2649 = vadd.f32 %v2647, %v2648
    %v2650 = vrot.slane %v2649, 2
    %v2651 = vadd.f32 %v2649, %v2650
    %v2652 = vrot.slane %v2651, 1
    %v2653 = vadd.f32 %v2651, %v2652
    %v2654 = vsel %vm1925, %v2297, 0.0
    %v2655 = vsel %vm1925, %v2316, 0.0
    %v2656 = vadd.f32 %v2654, %v2655
    %v2657 = vrot.slane %v2656, 4
    %v2658 = vadd.f32 %v2656, %v2657
    %v2659 = vrot.slane %v2658, 2
    %v2660 = vadd.f32 %v2658, %v2659
    %v2661 = vrot.slane %v2660, 1
    %v2662 = vadd.f32 %v2660, %v2661
    %v2663 = vadd.f32 %v2317, %v2336
    %v2664 = vrot.slane %v2663, 4
    %v2665 = vadd.f32 %v2663, %v2664
    %v2666 = vrot.slane %v2665, 2
    %v2667 = vadd.f32 %v2665, %v2666
    %v2668 = vrot.slane %v2667, 1
    %v2669 = vadd.f32 %v2667, %v2668
    %v2670 = vadd.f32 %v2318, %v2337
    %v2671 = vrot.slane %v2670, 4
    %v2672 = vadd.f32 %v2670, %v2671
    %v2673 = vrot.slane %v2672, 2
    %v2674 = vadd.f32 %v2672, %v2673
    %v2675 = vrot.slane %v2674, 1
    %v2676 = vadd.f32 %v2674, %v2675
    %v2677 = vadd.f32 %v2319, %v2338
    %v2678 = vrot.slane %v2677, 4
    %v2679 = vadd.f32 %v2677, %v2678
    %v2680 = vrot.slane %v2679, 2
    %v2681 = vadd.f32 %v2679, %v2680
    %v2682 = vrot.slane %v2681, 1
    %v2683 = vadd.f32 %v2681, %v2682
    %v2684 = vadd.f32 %v2320, %v2339
    %v2685 = vrot.slane %v2684, 4
    %v2686 = vadd.f32 %v2684, %v2685
    %v2687 = vrot.slane %v2686, 2
    %v2688 = vadd.f32 %v2686, %v2687
    %v2689 = vrot.slane %v2688, 1
    %v2690 = vadd.f32 %v2688, %v2689
    %v2691 = vadd.f32 %v2321, %v2340
    %v2692 = vrot.slane %v2691, 4
    %v2693 = vadd.f32 %v2691, %v2692
    %v2694 = vrot.slane %v2693, 2
    %v2695 = vadd.f32 %v2693, %v2694
    %v2696 = vrot.slane %v2695, 1
    %v2697 = vadd.f32 %v2695, %v2696
    %v2698 = vadd.f32 %v2322, %v2341
    %v2699 = vrot.slane %v2698, 4
    %v2700 = vadd.f32 %v2698, %v2699
    %v2701 = vrot.slane %v2700, 2
    %v2702 = vadd.f32 %v2700, %v2701
    %v2703 = vrot.slane %v2702, 1
    %v2704 = vadd.f32 %v2702, %v2703
    %v2705 = vadd.f32 %v2323, %v2342
    %v2706 = vrot.slane %v2705, 4
    %v2707 = vadd.f32 %v2705, %v2706
    %v2708 = vrot.slane %v2707, 2
    %v2709 = vadd.f32 %v2707, %v2708
    %v2710 = vrot.slane %v2709, 1
    %v2711 = vadd.f32 %v2709, %v2710
    %v2712 = vadd.f32 %v2324, %v2343
    %v2713 = vrot.slane %v2712, 4
    %v2714 = vadd.f32 %v2712, %v2713
    %v2715 = vrot.slane %v2714, 2
    %v2716 = vadd.f32 %v2714, %v2715
    %v2717 = vrot.slane %v2716, 1
    %v2718 = vadd.f32 %v2716, %v2717
    %v2719 = vadd.f32 %v2325, %v2344
    %v2720 = vrot.slane %v2719, 4
    %v2721 = vadd.f32 %v2719, %v2720
    %v2722 = vrot.slane %v2721, 2
    %v2723 = vadd.f32 %v2721, %v2722
    %v2724 = vrot.slane %v2723, 1
    %v2725 = vadd.f32 %v2723, %v2724
    %v2726 = vadd.f32 %v2326, %v2345
    %v2727 = vrot.slane %v2726, 4
    %v2728 = vadd.f32 %v2726, %v2727
    %v2729 = vrot.slane %v2728, 2
    %v2730 = vadd.f32 %v2728, %v2729
    %v2731 = vrot.slane %v2730, 1
    %v2732 = vadd.f32 %v2730, %v2731
    %v2733 = vadd.f32 %v2327, %v2346
    %v2734 = vrot.slane %v2733, 4
    %v2735 = vadd.f32 %v2733, %v2734
    %v2736 = vrot.slane %v2735, 2
    %v2737 = vadd.f32 %v2735, %v2736
    %v2738 = vrot.slane %v2737, 1
    %v2739 = vadd.f32 %v2737, %v2738
    %v2740 = vadd.f32 %v2328, %v2347
    %v2741 = vrot.slane %v2740, 4
    %v2742 = vadd.f32 %v2740, %v2741
    %v2743 = vrot.slane %v2742, 2
    %v2744 = vadd.f32 %v2742, %v2743
    %v2745 = vrot.slane %v2744, 1
    %v2746 = vadd.f32 %v2744, %v2745
    %v2747 = vadd.f32 %v2329, %v2348
    %v2748 = vrot.slane %v2747, 4
    %v2749 = vadd.f32 %v2747, %v2748
    %v2750 = vrot.slane %v2749, 2
    %v2751 = vadd.f32 %v2749, %v2750
    %v2752 = vrot.slane %v2751, 1
    %v2753 = vadd.f32 %v2751, %v2752
    %v2754 = vadd.f32 %v2330, %v2349
    %v2755 = vrot.slane %v2754, 4
    %v2756 = vadd.f32 %v2754, %v2755
    %v2757 = vrot.slane %v2756, 2
    %v2758 = vadd.f32 %v2756, %v2757
    %v2759 = vrot.slane %v2758, 1
    %v2760 = vadd.f32 %v2758, %v2759
    %v2761 = vadd.f32 %v2331, %v2350
    %v2762 = vrot.slane %v2761, 4
    %v2763 = vadd.f32 %v2761, %v2762
    %v2764 = vrot.slane %v2763, 2
    %v2765 = vadd.f32 %v2763, %v2764
    %v2766 = vrot.slane %v2765, 1
    %v2767 = vadd.f32 %v2765, %v2766
    %v2768 = vadd.f32 %v2332, %v2351
    %v2769 = vrot.slane %v2768, 4
    %v2770 = vadd.f32 %v2768, %v2769
    %v2771 = vrot.slane %v2770, 2
    %v2772 = vadd.f32 %v2770, %v2771
    %v2773 = vrot.slane %v2772, 1
    %v2774 = vadd.f32 %v2772, %v2773
    %v2775 = vadd.f32 %v2333, %v2352
    %v2776 = vrot.slane %v2775, 4
    %v2777 = vadd.f32 %v2775, %v2776
    %v2778 = vrot.slane %v2777, 2
    %v2779 = vadd.f32 %v2777, %v2778
    %v2780 = vrot.slane %v2779, 1
    %v2781 = vadd.f32 %v2779, %v2780
    %v2782 = vadd.f32 %v2334, %v2353
    %v2783 = vrot.slane %v2782, 4
    %v2784 = vadd.f32 %v2782, %v2783
    %v2785 = vrot.slane %v2784, 2
    %v2786 = vadd.f32 %v2784, %v2785
    %v2787 = vrot.slane %v2786, 1
    %v2788 = vadd.f32 %v2786, %v2787
    %v2789 = vsel %vm1925, %v2335, 0.0
    %v2790 = vsel %vm1925, %v2354, 0.0
    %v2791 = vadd.f32 %v2789, %v2790
    %v2792 = vrot.slane %v2791, 4
    %v2793 = vadd.f32 %v2791, %v2792
    %v2794 = vrot.slane %v2793, 2
    %v2795 = vadd.f32 %v2793, %v2794
    %v2796 = vrot.slane %v2795, 1
    %v2797 = vadd.f32 %v2795, %v2796
    %v2798 = vadd.f32 %v2355, %v2374
    %v2799 = vrot.slane %v2798, 4
    %v2800 = vadd.f32 %v2798, %v2799
    %v2801 = vrot.slane %v2800, 2
    %v2802 = vadd.f32 %v2800, %v2801
    %v2803 = vrot.slane %v2802, 1
    %v2804 = vadd.f32 %v2802, %v2803
    %v2805 = vadd.f32 %v2356, %v2375
    %v2806 = vrot.slane %v2805, 4
    %v2807 = vadd.f32 %v2805, %v2806
    %v2808 = vrot.slane %v2807, 2
    %v2809 = vadd.f32 %v2807, %v2808
    %v2810 = vrot.slane %v2809, 1
    %v2811 = vadd.f32 %v2809, %v2810
    %v2812 = vadd.f32 %v2357, %v2376
    %v2813 = vrot.slane %v2812, 4
    %v2814 = vadd.f32 %v2812, %v2813
    %v2815 = vrot.slane %v2814, 2
    %v2816 = vadd.f32 %v2814, %v2815
    %v2817 = vrot.slane %v2816, 1
    %v2818 = vadd.f32 %v2816, %v2817
    %v2819 = vadd.f32 %v2358, %v2377
    %v2820 = vrot.slane %v2819, 4
    %v2821 = vadd.f32 %v2819, %v2820
    %v2822 = vrot.slane %v2821, 2
    %v2823 = vadd.f32 %v2821, %v2822
    %v2824 = vrot.slane %v2823, 1
    %v2825 = vadd.f32 %v2823, %v2824
    %v2826 = vadd.f32 %v2359, %v2378
    %v2827 = vrot.slane %v2826, 4
    %v2828 = vadd.f32 %v2826, %v2827
    %v2829 = vrot.slane %v2828, 2
    %v2830 = vadd.f32 %v2828, %v2829
    %v2831 = vrot.slane %v2830, 1
    %v2832 = vadd.f32 %v2830, %v2831
    %v2833 = vadd.f32 %v2360, %v2379
    %v2834 = vrot.slane %v2833, 4
    %v2835 = vadd.f32 %v2833, %v2834
    %v2836 = vrot.slane %v2835, 2
    %v2837 = vadd.f32 %v2835, %v2836
    %v2838 = vrot.slane %v2837, 1
    %v2839 = vadd.f32 %v2837, %v2838
    %v2840 = vadd.f32 %v2361, %v2380
    %v2841 = vrot.slane %v2840, 4
    %v2842 = vadd.f32 %v2840, %v2841
    %v2843 = vrot.slane %v2842, 2
    %v2844 = vadd.f32 %v2842, %v2843
    %v2845 = vrot.slane %v2844, 1
    %v2846 = vadd.f32 %v2844, %v2845
    %v2847 = vadd.f32 %v2362, %v2381
    %v2848 = vrot.slane %v2847, 4
    %v2849 = vadd.f32 %v2847, %v2848
    %v2850 = vrot.slane %v2849, 2
    %v2851 = vadd.f32 %v2849, %v2850
    %v2852 = vrot.slane %v2851, 1
    %v2853 = vadd.f32 %v2851, %v2852
    %v2854 = vadd.f32 %v2363, %v2382
    %v2855 = vrot.slane %v2854, 4
    %v2856 = vadd.f32 %v2854, %v2855
    %v2857 = vrot.slane %v2856, 2
    %v2858 = vadd.f32 %v2856, %v2857
    %v2859 = vrot.slane %v2858, 1
    %v2860 = vadd.f32 %v2858, %v2859
    %v2861 = vadd.f32 %v2364, %v2383
    %v2862 = vrot.slane %v2861, 4
    %v2863 = vadd.f32 %v2861, %v2862
    %v2864 = vrot.slane %v2863, 2
    %v2865 = vadd.f32 %v2863, %v2864
    %v2866 = vrot.slane %v2865, 1
    %v2867 = vadd.f32 %v2865, %v2866
    %v2868 = vadd.f32 %v2365, %v2384
    %v2869 = vrot.slane %v2868, 4
    %v2870 = vadd.f32 %v2868, %v2869
    %v2871 = vrot.slane %v2870, 2
    %v2872 = vadd.f32 %v2870, %v2871
    %v2873 = vrot.slane %v2872, 1
    %v2874 = vadd.f32 %v2872, %v2873
    %v2875 = vadd.f32 %v2366, %v2385
    %v2876 = vrot.slane %v2875, 4
    %v2877 = vadd.f32 %v2875, %v2876
    %v2878 = vrot.slane %v2877, 2
    %v2879 = vadd.f32 %v2877, %v2878
    %v2880 = vrot.slane %v2879, 1
    %v2881 = vadd.f32 %v2879, %v2880
    %v2882 = vadd.f32 %v2367, %v2386
    %v2883 = vrot.slane %v2882, 4
    %v2884 = vadd.f32 %v2882, %v2883
    %v2885 = vrot.slane %v2884, 2
    %v2886 = vadd.f32 %v2884, %v2885
    %v2887 = vrot.slane %v2886, 1
    %v2888 = vadd.f32 %v2886, %v2887
    %v2889 = vadd.f32 %v2368, %v2387
    %v2890 = vrot.slane %v2889, 4
    %v2891 = vadd.f32 %v2889, %v2890
    %v2892 = vrot.slane %v2891, 2
    %v2893 = vadd.f32 %v2891, %v2892
    %v2894 = vrot.slane %v2893, 1
    %v2895 = vadd.f32 %v2893, %v2894
    %v2896 = vadd.f32 %v2369, %v2388
    %v2897 = vrot.slane %v2896, 4
    %v2898 = vadd.f32 %v2896, %v2897
    %v2899 = vrot.slane %v2898, 2
    %v2900 = vadd.f32 %v2898, %v2899
    %v2901 = vrot.slane %v2900, 1
    %v2902 = vadd.f32 %v2900, %v2901
    %v2903 = vadd.f32 %v2370, %v2389
    %v2904 = vrot.slane %v2903, 4
    %v2905 = vadd.f32 %v2903, %v2904
    %v2906 = vrot.slane %v2905, 2
    %v2907 = vadd.f32 %v2905, %v2906
    %v2908 = vrot.slane %v2907, 1
    %v2909 = vadd.f32 %v2907, %v2908
    %v2910 = vadd.f32 %v2371, %v2390
    %v2911 = vrot.slane %v2910, 4
    %v2912 = vadd.f32 %v2910, %v2911
    %v2913 = vrot.slane %v2912, 2
    %v2914 = vadd.f32 %v2912, %v2913
    %v2915 = vrot.slane %v2914, 1
    %v2916 = vadd.f32 %v2914, %v2915
    %v2917 = vadd.f32 %v2372, %v2391
    %v2918 = vrot.slane %v2917, 4
    %v2919 = vadd.f32 %v2917, %v2918
    %v2920 = vrot.slane %v2919, 2
    %v2921 = vadd.f32 %v2919, %v2920
    %v2922 = vrot.slane %v2921, 1
    %v2923 = vadd.f32 %v2921, %v2922
    %v2924 = vsel %vm1925, %v2373, 0.0
    %v2925 = vsel %vm1925, %v2392, 0.0
    %v2926 = vadd.f32 %v2924, %v2925
    %v2927 = vrot.slane %v2926, 4
    %v2928 = vadd.f32 %v2926, %v2927
    %v2929 = vrot.slane %v2928, 2
    %v2930 = vadd.f32 %v2928, %v2929
    %v2931 = vrot.slane %v2930, 1
    %v2932 = vadd.f32 %v2930, %v2931
    %v2933 = vmax.f32 %v2399, %v2406
    %v2934 = vmax.f32 %v2933, %v2413
    %v2935 = vmax.f32 %v2934, %v2420
    %v2936 = vmax.f32 %v2935, %v2427
    %v2937 = vmax.f32 %v2936, %v2434
    %v2938 = vmax.f32 %v2937, %v2441
    %v2939 = vmax.f32 %v2938, %v2448
    %v2940 = vmax.f32 %v2939, %v2455
    %v2941 = vmax.f32 %v2940, %v2462
    %v2942 = vmax.f32 %v2941, %v2469
    %v2943 = vmax.f32 %v2942, %v2476
    %v2944 = vmax.f32 %v2943, %v2483
    %v2945 = vmax.f32 %v2944, %v2490
    %v2946 = vmax.f32 %v2945, %v2497
    %v2947 = vmax.f32 %v2946, %v2504
    %v2948 = vmax.f32 %v2947, %v2511
    %v2949 = vmax.f32 %v2948, %v2518
    %v2950 = vsel %vm1925, %v2527, -inf
    %v2951 = vmax.f32 %v2949, %v2950
    %2952 = vmax.xlane.f32.xlu0 %v2951
    %v2953 = vpop.xlane.xlu0 %2952
    %v2954 = vmax.f32 %v2534, %v2541
    %v2955 = vmax.f32 %v2954, %v2548
    %v2956 = vmax.f32 %v2955, %v2555
    %v2957 = vmax.f32 %v2956, %v2562
    %v2958 = vmax.f32 %v2957, %v2569
    %v2959 = vmax.f32 %v2958, %v2576
    %v2960 = vmax.f32 %v2959, %v2583
    %v2961 = vmax.f32 %v2960, %v2590
    %v2962 = vmax.f32 %v2961, %v2597
    %v2963 = vmax.f32 %v2962, %v2604
    %v2964 = vmax.f32 %v2963, %v2611
    %v2965 = vmax.f32 %v2964, %v2618
    %v2966 = vmax.f32 %v2965, %v2625
    %v2967 = vmax.f32 %v2966, %v2632
    %v2968 = vmax.f32 %v2967, %v2639
    %v2969 = vmax.f32 %v2968, %v2646
    %v2970 = vmax.f32 %v2969, %v2653
    %v2971 = vsel %vm1925, %v2662, -inf
    %v2972 = vmax.f32 %v2970, %v2971
    %2973 = vmax.xlane.f32.xlu0 %v2972
    %v2974 = vpop.xlane.xlu0 %2973
    %v2975 = vmax.f32 %v2669, %v2676
    %v2976 = vmax.f32 %v2975, %v2683
    %v2977 = vmax.f32 %v2976, %v2690
    %v2978 = vmax.f32 %v2977, %v2697
    %v2979 = vmax.f32 %v2978, %v2704
    %v2980 = vmax.f32 %v2979, %v2711
    %v2981 = vmax.f32 %v2980, %v2718
    %v2982 = vmax.f32 %v2981, %v2725
    %v2983 = vmax.f32 %v2982, %v2732
    %v2984 = vmax.f32 %v2983, %v2739
    %v2985 = vmax.f32 %v2984, %v2746
    %v2986 = vmax.f32 %v2985, %v2753
    %v2987 = vmax.f32 %v2986, %v2760
    %v2988 = vmax.f32 %v2987, %v2767
    %v2989 = vmax.f32 %v2988, %v2774
    %v2990 = vmax.f32 %v2989, %v2781
    %v2991 = vmax.f32 %v2990, %v2788
    %v2992 = vsel %vm1925, %v2797, -inf
    %v2993 = vmax.f32 %v2991, %v2992
    %2994 = vmax.xlane.f32.xlu0 %v2993
    %v2995 = vpop.xlane.xlu0 %2994
    %v2996 = vmax.f32 %v2804, %v2811
    %v2997 = vmax.f32 %v2996, %v2818
    %v2998 = vmax.f32 %v2997, %v2825
    %v2999 = vmax.f32 %v2998, %v2832
    %v3000 = vmax.f32 %v2999, %v2839
    %v3001 = vmax.f32 %v3000, %v2846
    %v3002 = vmax.f32 %v3001, %v2853
    %v3003 = vmax.f32 %v3002, %v2860
    %v3004 = vmax.f32 %v3003, %v2867
    %v3005 = vmax.f32 %v3004, %v2874
    %v3006 = vmax.f32 %v3005, %v2881
    %v3007 = vmax.f32 %v3006, %v2888
    %v3008 = vmax.f32 %v3007, %v2895
    %v3009 = vmax.f32 %v3008, %v2902
    %v3010 = vmax.f32 %v3009, %v2909
    %v3011 = vmax.f32 %v3010, %v2916
    %v3012 = vmax.f32 %v3011, %v2923
    %v3013 = vsel %vm1925, %v2932, -inf
    %v3014 = vmax.f32 %v3012, %v3013
    %3015 = vmax.xlane.f32.xlu0 %v3014
    %v3016 = vpop.xlane.xlu0 %3015
    %v3017 = vsub.f32 %v2399, %v2953
    %v3018 = vsub.f32 %v2406, %v2953
    %v3019 = vsub.f32 %v2413, %v2953
    %v3020 = vsub.f32 %v2420, %v2953
    %v3021 = vsub.f32 %v2427, %v2953
    %v3022 = vsub.f32 %v2434, %v2953
    %v3023 = vsub.f32 %v2441, %v2953
    %v3024 = vsub.f32 %v2448, %v2953
    %v3025 = vsub.f32 %v2455, %v2953
    %v3026 = vsub.f32 %v2462, %v2953
    %v3027 = vsub.f32 %v2469, %v2953
    %v3028 = vsub.f32 %v2476, %v2953
    %v3029 = vsub.f32 %v2483, %v2953
    %v3030 = vsub.f32 %v2490, %v2953
    %v3031 = vsub.f32 %v2497, %v2953
    %v3032 = vsub.f32 %v2504, %v2953
    %v3033 = vsub.f32 %v2511, %v2953
    %v3034 = vsub.f32 %v2518, %v2953
    %v3035 = vsub.f32 %v2527, %v2953
    %v3036 = vsub.f32 %v2534, %v2974
    %v3037 = vsub.f32 %v2541, %v2974
    %v3038 = vsub.f32 %v2548, %v2974
    %v3039 = vsub.f32 %v2555, %v2974
    %v3040 = vsub.f32 %v2562, %v2974
    %v3041 = vsub.f32 %v2569, %v2974
    %v3042 = vsub.f32 %v2576, %v2974
    %v3043 = vsub.f32 %v2583, %v2974
    %v3044 = vsub.f32 %v2590, %v2974
    %v3045 = vsub.f32 %v2597, %v2974
    %v3046 = vsub.f32 %v2604, %v2974
    %v3047 = vsub.f32 %v2611, %v2974
    %v3048 = vsub.f32 %v2618, %v2974
    %v3049 = vsub.f32 %v2625, %v2974
    %v3050 = vsub.f32 %v2632, %v2974
    %v3051 = vsub.f32 %v2639, %v2974
    %v3052 = vsub.f32 %v2646, %v2974
    %v3053 = vsub.f32 %v2653, %v2974
    %v3054 = vsub.f32 %v2662, %v2974
    %v3055 = vsub.f32 %v2669, %v2995
    %v3056 = vsub.f32 %v2676, %v2995
    %v3057 = vsub.f32 %v2683, %v2995
    %v3058 = vsub.f32 %v2690, %v2995
    %v3059 = vsub.f32 %v2697, %v2995
    %v3060 = vsub.f32 %v2704, %v2995
    %v3061 = vsub.f32 %v2711, %v2995
    %v3062 = vsub.f32 %v2718, %v2995
    %v3063 = vsub.f32 %v2725, %v2995
    %v3064 = vsub.f32 %v2732, %v2995
    %v3065 = vsub.f32 %v2739, %v2995
    %v3066 = vsub.f32 %v2746, %v2995
    %v3067 = vsub.f32 %v2753, %v2995
    %v3068 = vsub.f32 %v2760, %v2995
    %v3069 = vsub.f32 %v2767, %v2995
    %v3070 = vsub.f32 %v2774, %v2995
    %v3071 = vsub.f32 %v2781, %v2995
    %v3072 = vsub.f32 %v2788, %v2995
    %v3073 = vsub.f32 %v2797, %v2995
    %v3074 = vsub.f32 %v2804, %v3016
    %v3075 = vsub.f32 %v2811, %v3016
    %v3076 = vsub.f32 %v2818, %v3016
    %v3077 = vsub.f32 %v2825, %v3016
    %v3078 = vsub.f32 %v2832, %v3016
    %v3079 = vsub.f32 %v2839, %v3016
    %v3080 = vsub.f32 %v2846, %v3016
    %v3081 = vsub.f32 %v2853, %v3016
    %v3082 = vsub.f32 %v2860, %v3016
    %v3083 = vsub.f32 %v2867, %v3016
    %v3084 = vsub.f32 %v2874, %v3016
    %v3085 = vsub.f32 %v2881, %v3016
    %v3086 = vsub.f32 %v2888, %v3016
    %v3087 = vsub.f32 %v2895, %v3016
    %v3088 = vsub.f32 %v2902, %v3016
    %v3089 = vsub.f32 %v2909, %v3016
    %v3090 = vsub.f32 %v2916, %v3016
    %v3091 = vsub.f32 %v2923, %v3016
    %v3092 = vsub.f32 %v2932, %v3016
    %v3093 = vmul.f32 %v3017, 1.442695
    %v3094 = vpow.pop %v3093
    %v3095 = vmul.f32 %v3018, 1.442695
    %v3096 = vpow.pop %v3095
    %v3097 = vmul.f32 %v3019, 1.442695
    %v3098 = vpow.pop %v3097
    %v3099 = vmul.f32 %v3020, 1.442695
    %v3100 = vpow.pop %v3099
    %v3101 = vmul.f32 %v3021, 1.442695
    %v3102 = vpow.pop %v3101
    %v3103 = vmul.f32 %v3022, 1.442695
    %v3104 = vpow.pop %v3103
    %v3105 = vmul.f32 %v3023, 1.442695
    %v3106 = vpow.pop %v3105
    %v3107 = vmul.f32 %v3024, 1.442695
    %v3108 = vpow.pop %v3107
    %v3109 = vmul.f32 %v3025, 1.442695
    %v3110 = vpow.pop %v3109
    %v3111 = vmul.f32 %v3026, 1.442695
    %v3112 = vpow.pop %v3111
    %v3113 = vmul.f32 %v3027, 1.442695
    %v3114 = vpow.pop %v3113
    %v3115 = vmul.f32 %v3028, 1.442695
    %v3116 = vpow.pop %v3115
    %v3117 = vmul.f32 %v3029, 1.442695
    %v3118 = vpow.pop %v3117
    %v3119 = vmul.f32 %v3030, 1.442695
    %v3120 = vpow.pop %v3119
    %v3121 = vmul.f32 %v3031, 1.442695
    %v3122 = vpow.pop %v3121
    %v3123 = vmul.f32 %v3032, 1.442695
    %v3124 = vpow.pop %v3123
    %v3125 = vmul.f32 %v3033, 1.442695
    %v3126 = vpow.pop %v3125
    %v3127 = vmul.f32 %v3034, 1.442695
    %v3128 = vpow.pop %v3127
    %v3129 = vmul.f32 %v3035, 1.442695
    %v3130 = vpow.pop %v3129
    %v3131 = vmul.f32 %v3036, 1.442695
    %v3132 = vpow.pop %v3131
    %v3133 = vmul.f32 %v3037, 1.442695
    %v3134 = vpow.pop %v3133
    %v3135 = vmul.f32 %v3038, 1.442695
    %v3136 = vpow.pop %v3135
    %v3137 = vmul.f32 %v3039, 1.442695
    %v3138 = vpow.pop %v3137
    %v3139 = vmul.f32 %v3040, 1.442695
    %v3140 = vpow.pop %v3139
    %v3141 = vmul.f32 %v3041, 1.442695
    %v3142 = vpow.pop %v3141
    %v3143 = vmul.f32 %v3042, 1.442695
    %v3144 = vpow.pop %v3143
    %v3145 = vmul.f32 %v3043, 1.442695
    %v3146 = vpow.pop %v3145
    %v3147 = vmul.f32 %v3044, 1.442695
    %v3148 = vpow.pop %v3147
    %v3149 = vmul.f32 %v3045, 1.442695
    %v3150 = vpow.pop %v3149
    %v3151 = vmul.f32 %v3046, 1.442695
    %v3152 = vpow.pop %v3151
    %v3153 = vmul.f32 %v3047, 1.442695
    %v3154 = vpow.pop %v3153
    %v3155 = vmul.f32 %v3048, 1.442695
    %v3156 = vpow.pop %v3155
    %v3157 = vmul.f32 %v3049, 1.442695
    %v3158 = vpow.pop %v3157
    %v3159 = vmul.f32 %v3050, 1.442695
    %v3160 = vpow.pop %v3159
    %v3161 = vmul.f32 %v3051, 1.442695
    %v3162 = vpow.pop %v3161
    %v3163 = vmul.f32 %v3052, 1.442695
    %v3164 = vpow.pop %v3163
    %v3165 = vmul.f32 %v3053, 1.442695
    %v3166 = vpow.pop %v3165
    %v3167 = vmul.f32 %v3054, 1.442695
    %v3168 = vpow.pop %v3167
    %v3169 = vmul.f32 %v3055, 1.442695
    %v3170 = vpow.pop %v3169
    %v3171 = vmul.f32 %v3056, 1.442695
    %v3172 = vpow.pop %v3171
    %v3173 = vmul.f32 %v3057, 1.442695
    %v3174 = vpow.pop %v3173
    %v3175 = vmul.f32 %v3058, 1.442695
    %v3176 = vpow.pop %v3175
    %v3177 = vmul.f32 %v3059, 1.442695
    %v3178 = vpow.pop %v3177
    %v3179 = vmul.f32 %v3060, 1.442695
    %v3180 = vpow.pop %v3179
    %v3181 = vmul.f32 %v3061, 1.442695
    %v3182 = vpow.pop %v3181
    %v3183 = vmul.f32 %v3062, 1.442695
    %v3184 = vpow.pop %v3183
    %v3185 = vmul.f32 %v3063, 1.442695
    %v3186 = vpow.pop %v3185
    %v3187 = vmul.f32 %v3064, 1.442695
    %v3188 = vpow.pop %v3187
    %v3189 = vmul.f32 %v3065, 1.442695
    %v3190 = vpow.pop %v3189
    %v3191 = vmul.f32 %v3066, 1.442695
    %v3192 = vpow.pop %v3191
    %v3193 = vmul.f32 %v3067, 1.442695
    %v3194 = vpow.pop %v3193
    %v3195 = vmul.f32 %v3068, 1.442695
    %v3196 = vpow.pop %v3195
    %v3197 = vmul.f32 %v3069, 1.442695
    %v3198 = vpow.pop %v3197
    %v3199 = vmul.f32 %v3070, 1.442695
    %v3200 = vpow.pop %v3199
    %v3201 = vmul.f32 %v3071, 1.442695
    %v3202 = vpow.pop %v3201
    %v3203 = vmul.f32 %v3072, 1.442695
    %v3204 = vpow.pop %v3203
    %v3205 = vmul.f32 %v3073, 1.442695
    %v3206 = vpow.pop %v3205
    %v3207 = vmul.f32 %v3074, 1.442695
    %v3208 = vpow.pop %v3207
    %v3209 = vmul.f32 %v3075, 1.442695
    %v3210 = vpow.pop %v3209
    %v3211 = vmul.f32 %v3076, 1.442695
    %v3212 = vpow.pop %v3211
    %v3213 = vmul.f32 %v3077, 1.442695
    %v3214 = vpow.pop %v3213
    %v3215 = vmul.f32 %v3078, 1.442695
    %v3216 = vpow.pop %v3215
    %v3217 = vmul.f32 %v3079, 1.442695
    %v3218 = vpow.pop %v3217
    %v3219 = vmul.f32 %v3080, 1.442695
    %v3220 = vpow.pop %v3219
    %v3221 = vmul.f32 %v3081, 1.442695
    %v3222 = vpow.pop %v3221
    %v3223 = vmul.f32 %v3082, 1.442695
    %v3224 = vpow.pop %v3223
    %v3225 = vmul.f32 %v3083, 1.442695
    %v3226 = vpow.pop %v3225
    %v3227 = vmul.f32 %v3084, 1.442695
    %v3228 = vpow.pop %v3227
    %v3229 = vmul.f32 %v3085, 1.442695
    %v3230 = vpow.pop %v3229
    %v3231 = vmul.f32 %v3086, 1.442695
    %v3232 = vpow.pop %v3231
    %v3233 = vmul.f32 %v3087, 1.442695
    %v3234 = vpow.pop %v3233
    %v3235 = vmul.f32 %v3088, 1.442695
    %v3236 = vpow.pop %v3235
    %v3237 = vmul.f32 %v3089, 1.442695
    %v3238 = vpow.pop %v3237
    %v3239 = vmul.f32 %v3090, 1.442695
    %v3240 = vpow.pop %v3239
    %v3241 = vmul.f32 %v3091, 1.442695
    %v3242 = vpow.pop %v3241
    %v3243 = vmul.f32 %v3092, 1.442695
    %v3244 = vpow.pop %v3243
    %v3245 = vadd.f32 %v3094, %v3096
    %v3246 = vadd.f32 %v3245, %v3098
    %v3247 = vadd.f32 %v3246, %v3100
    %v3248 = vadd.f32 %v3247, %v3102
    %v3249 = vadd.f32 %v3248, %v3104
    %v3250 = vadd.f32 %v3249, %v3106
    %v3251 = vadd.f32 %v3250, %v3108
    %v3252 = vadd.f32 %v3251, %v3110
    %v3253 = vadd.f32 %v3252, %v3112
    %v3254 = vadd.f32 %v3253, %v3114
    %v3255 = vadd.f32 %v3254, %v3116
    %v3256 = vadd.f32 %v3255, %v3118
    %v3257 = vadd.f32 %v3256, %v3120
    %v3258 = vadd.f32 %v3257, %v3122
    %v3259 = vadd.f32 %v3258, %v3124
    %v3260 = vadd.f32 %v3259, %v3126
    %v3261 = vadd.f32 %v3260, %v3128
    %v3262 = vsel %vm1925, %v3130, 0.0
    %v3263 = vadd.f32 %v3261, %v3262
    %3264 = vadd.xlane.f32.xlu0 %v3263
    %v3265 = vpop.xlane.xlu0 %3264
    %v3266 = vadd.f32 %v3132, %v3134
    %v3267 = vadd.f32 %v3266, %v3136
    %v3268 = vadd.f32 %v3267, %v3138
    %v3269 = vadd.f32 %v3268, %v3140
    %v3270 = vadd.f32 %v3269, %v3142
    %v3271 = vadd.f32 %v3270, %v3144
    %v3272 = vadd.f32 %v3271, %v3146
    %v3273 = vadd.f32 %v3272, %v3148
    %v3274 = vadd.f32 %v3273, %v3150
    %v3275 = vadd.f32 %v3274, %v3152
    %v3276 = vadd.f32 %v3275, %v3154
    %v3277 = vadd.f32 %v3276, %v3156
    %v3278 = vadd.f32 %v3277, %v3158
    %v3279 = vadd.f32 %v3278, %v3160
    %v3280 = vadd.f32 %v3279, %v3162
    %v3281 = vadd.f32 %v3280, %v3164
    %v3282 = vadd.f32 %v3281, %v3166
    %v3283 = vsel %vm1925, %v3168, 0.0
    %v3284 = vadd.f32 %v3282, %v3283
    %3285 = vadd.xlane.f32.xlu0 %v3284
    %v3286 = vpop.xlane.xlu0 %3285
    %v3287 = vadd.f32 %v3170, %v3172
    %v3288 = vadd.f32 %v3287, %v3174
    %v3289 = vadd.f32 %v3288, %v3176
    %v3290 = vadd.f32 %v3289, %v3178
    %v3291 = vadd.f32 %v3290, %v3180
    %v3292 = vadd.f32 %v3291, %v3182
    %v3293 = vadd.f32 %v3292, %v3184
    %v3294 = vadd.f32 %v3293, %v3186
    %v3295 = vadd.f32 %v3294, %v3188
    %v3296 = vadd.f32 %v3295, %v3190
    %v3297 = vadd.f32 %v3296, %v3192
    %v3298 = vadd.f32 %v3297, %v3194
    %v3299 = vadd.f32 %v3298, %v3196
    %v3300 = vadd.f32 %v3299, %v3198
    %v3301 = vadd.f32 %v3300, %v3200
    %v3302 = vadd.f32 %v3301, %v3202
    %v3303 = vadd.f32 %v3302, %v3204
    %v3304 = vsel %vm1925, %v3206, 0.0
    %v3305 = vadd.f32 %v3303, %v3304
    %3306 = vadd.xlane.f32.xlu0 %v3305
    %v3307 = vpop.xlane.xlu0 %3306
    %v3308 = vadd.f32 %v3208, %v3210
    %v3309 = vadd.f32 %v3308, %v3212
    %v3310 = vadd.f32 %v3309, %v3214
    %v3311 = vadd.f32 %v3310, %v3216
    %v3312 = vadd.f32 %v3311, %v3218
    %v3313 = vadd.f32 %v3312, %v3220
    %v3314 = vadd.f32 %v3313, %v3222
    %v3315 = vadd.f32 %v3314, %v3224
    %v3316 = vadd.f32 %v3315, %v3226
    %v3317 = vadd.f32 %v3316, %v3228
    %v3318 = vadd.f32 %v3317, %v3230
    %v3319 = vadd.f32 %v3318, %v3232
    %v3320 = vadd.f32 %v3319, %v3234
    %v3321 = vadd.f32 %v3320, %v3236
    %v3322 = vadd.f32 %v3321, %v3238
    %v3323 = vadd.f32 %v3322, %v3240
    %v3324 = vadd.f32 %v3323, %v3242
    %v3325 = vsel %vm1925, %v3244, 0.0
    %v3326 = vadd.f32 %v3324, %v3325
    %3327 = vadd.xlane.f32.xlu0 %v3326
    %v3328 = vpop.xlane.xlu0 %3327
    %v3329 = vrcp.pop %v3265
    %v3330 = vmul.f32 %v3265, %v3329
    %v3331 = vsub.f32 1.0, %v3330
    %v3332 = vmul.f32 %v3329, %v3331
    %v3333 = vadd.f32 %v3329, %v3332
    %vm3334 = vweird.f32 %v3265
    %vm3335 = vweird.f32 %v3329
    %vm3336 = vmor %vm3334, %vm3335
    %v3337 = vsel %vm3336, %v3329, %v3333
    %v3338 = vand.u32 2147483647, %v3265
    %vm3339 = vcmp.eq.f32.partialorder %v3338, 8.507059e+37
    %v3340 = vand.u32 %v3265, 2147483648
    %v3341 = vor.u32 1.1754944e-38, %v3340
    %v3342 = vsel %vm3339, %v3341, %v3337
    %v3343 = vmul.f32 1.0, %v3342
    %v3344 = vrcp.pop %v3286
    %v3345 = vmul.f32 %v3286, %v3344
    %v3346 = vsub.f32 1.0, %v3345
    %v3347 = vmul.f32 %v3344, %v3346
    %v3348 = vadd.f32 %v3344, %v3347
    %vm3349 = vweird.f32 %v3286
    %vm3350 = vweird.f32 %v3344
    %vm3351 = vmor %vm3349, %vm3350
    %v3352 = vsel %vm3351, %v3344, %v3348
    %v3353 = vand.u32 2147483647, %v3286
    %vm3354 = vcmp.eq.f32.partialorder %v3353, 8.507059e+37
    %v3355 = vand.u32 %v3286, 2147483648
    %v3356 = vor.u32 1.1754944e-38, %v3355
    %v3357 = vsel %vm3354, %v3356, %v3352
    %v3358 = vmul.f32 1.0, %v3357
    %v3359 = vrcp.pop %v3307
    %v3360 = vmul.f32 %v3307, %v3359
    %v3361 = vsub.f32 1.0, %v3360
    %v3362 = vmul.f32 %v3359, %v3361
    %v3363 = vadd.f32 %v3359, %v3362
    %vm3364 = vweird.f32 %v3307
    %vm3365 = vweird.f32 %v3359
    %vm3366 = vmor %vm3364, %vm3365
    %v3367 = vsel %vm3366, %v3359, %v3363
    %v3368 = vand.u32 2147483647, %v3307
    %vm3369 = vcmp.eq.f32.partialorder %v3368, 8.507059e+37
    %v3370 = vand.u32 %v3307, 2147483648
    %v3371 = vor.u32 1.1754944e-38, %v3370
    %v3372 = vsel %vm3369, %v3371, %v3367
    %v3373 = vmul.f32 1.0, %v3372
    %v3374 = vrcp.pop %v3328
    %v3375 = vmul.f32 %v3328, %v3374
    %v3376 = vsub.f32 1.0, %v3375
    %v3377 = vmul.f32 %v3374, %v3376
    %v3378 = vadd.f32 %v3374, %v3377
    %vm3379 = vweird.f32 %v3328
    %vm3380 = vweird.f32 %v3374
    %vm3381 = vmor %vm3379, %vm3380
    %v3382 = vsel %vm3381, %v3374, %v3378
    %v3383 = vand.u32 2147483647, %v3328
    %vm3384 = vcmp.eq.f32.partialorder %v3383, 8.507059e+37
    %v3385 = vand.u32 %v3328, 2147483648
    %v3386 = vor.u32 1.1754944e-38, %v3385
    %v3387 = vsel %vm3384, %v3386, %v3382
    %v3388 = vmul.f32 1.0, %v3387
    %v3389 = vmul.f32 %v3094, %v3343
    %v3390 = vmul.f32 %v3096, %v3343
    %v3391 = vmul.f32 %v3098, %v3343
    %v3392 = vmul.f32 %v3100, %v3343
    %v3393 = vmul.f32 %v3102, %v3343
    %v3394 = vmul.f32 %v3104, %v3343
    %v3395 = vmul.f32 %v3106, %v3343
    %v3396 = vmul.f32 %v3108, %v3343
    %v3397 = vmul.f32 %v3110, %v3343
    %v3398 = vmul.f32 %v3112, %v3343
    %v3399 = vmul.f32 %v3114, %v3343
    %v3400 = vmul.f32 %v3116, %v3343
    %v3401 = vmul.f32 %v3118, %v3343
    %v3402 = vmul.f32 %v3120, %v3343
    %v3403 = vmul.f32 %v3122, %v3343
    %v3404 = vmul.f32 %v3124, %v3343
    %v3405 = vmul.f32 %v3126, %v3343
    %v3406 = vmul.f32 %v3128, %v3343
    %v3407 = vmul.f32 %v3130, %v3343
    %v3408 = vmul.f32 %v3132, %v3358
    %v3409 = vmul.f32 %v3134, %v3358
    %v3410 = vmul.f32 %v3136, %v3358
    %v3411 = vmul.f32 %v3138, %v3358
    %v3412 = vmul.f32 %v3140, %v3358
    %v3413 = vmul.f32 %v3142, %v3358
    %v3414 = vmul.f32 %v3144, %v3358
    %v3415 = vmul.f32 %v3146, %v3358
    %v3416 = vmul.f32 %v3148, %v3358
    %v3417 = vmul.f32 %v3150, %v3358
    %v3418 = vmul.f32 %v3152, %v3358
    %v3419 = vmul.f32 %v3154, %v3358
    %v3420 = vmul.f32 %v3156, %v3358
    %v3421 = vmul.f32 %v3158, %v3358
    %v3422 = vmul.f32 %v3160, %v3358
    %v3423 = vmul.f32 %v3162, %v3358
    %v3424 = vmul.f32 %v3164, %v3358
    %v3425 = vmul.f32 %v3166, %v3358
    %v3426 = vmul.f32 %v3168, %v3358
    %v3427 = vmul.f32 %v3170, %v3373
    %v3428 = vmul.f32 %v3172, %v3373
    %v3429 = vmul.f32 %v3174, %v3373
    %v3430 = vmul.f32 %v3176, %v3373
    %v3431 = vmul.f32 %v3178, %v3373
    %v3432 = vmul.f32 %v3180, %v3373
    %v3433 = vmul.f32 %v3182, %v3373
    %v3434 = vmul.f32 %v3184, %v3373
    %v3435 = vmul.f32 %v3186, %v3373
    %v3436 = vmul.f32 %v3188, %v3373
    %v3437 = vmul.f32 %v3190, %v3373
    %v3438 = vmul.f32 %v3192, %v3373
    %v3439 = vmul.f32 %v3194, %v3373
    %v3440 = vmul.f32 %v3196, %v3373
    %v3441 = vmul.f32 %v3198, %v3373
    %v3442 = vmul.f32 %v3200, %v3373
    %v3443 = vmul.f32 %v3202, %v3373
    %v3444 = vmul.f32 %v3204, %v3373
    %v3445 = vmul.f32 %v3206, %v3373
    %v3446 = vmul.f32 %v3208, %v3388
    %v3447 = vmul.f32 %v3210, %v3388
    %v3448 = vmul.f32 %v3212, %v3388
    %v3449 = vmul.f32 %v3214, %v3388
    %v3450 = vmul.f32 %v3216, %v3388
    %v3451 = vmul.f32 %v3218, %v3388
    %v3452 = vmul.f32 %v3220, %v3388
    %v3453 = vmul.f32 %v3222, %v3388
    %v3454 = vmul.f32 %v3224, %v3388
    %v3455 = vmul.f32 %v3226, %v3388
    %v3456 = vmul.f32 %v3228, %v3388
    %v3457 = vmul.f32 %v3230, %v3388
    %v3458 = vmul.f32 %v3232, %v3388
    %v3459 = vmul.f32 %v3234, %v3388
    %v3460 = vmul.f32 %v3236, %v3388
    %v3461 = vmul.f32 %v3238, %v3388
    %v3462 = vmul.f32 %v3240, %v3388
    %v3463 = vmul.f32 %v3242, %v3388
    %v3464 = vmul.f32 %v3244, %v3388
    %v3465 = vmul.f32 %v3389, %v1756
    %v3466 = vmul.f32 %v3390, %v1757
    %v3467 = vmul.f32 %v3391, %v1758
    %v3468 = vmul.f32 %v3392, %v1759
    %v3469 = vmul.f32 %v3393, %v1760
    %v3470 = vmul.f32 %v3394, %v1761
    %v3471 = vmul.f32 %v3395, %v1762
    %v3472 = vmul.f32 %v3396, %v1763
    %v3473 = vmul.f32 %v3397, %v1764
    %v3474 = vmul.f32 %v3398, %v1765
    %v3475 = vmul.f32 %v3399, %v1766
    %v3476 = vmul.f32 %v3400, %v1767
    %v3477 = vmul.f32 %v3401, %v1768
    %v3478 = vmul.f32 %v3402, %v1769
    %v3479 = vmul.f32 %v3403, %v1770
    %v3480 = vmul.f32 %v3404, %v1771
    %v3481 = vmul.f32 %v3405, %v1772
    %v3482 = vmul.f32 %v3406, %v1773
    %v3483 = vmul.f32 %v3407, %v1774
    %v3484 = vmul.f32 %v3389, %v1775
    %v3485 = vmul.f32 %v3390, %v1776
    %v3486 = vmul.f32 %v3391, %v1777
    %v3487 = vmul.f32 %v3392, %v1778
    %v3488 = vmul.f32 %v3393, %v1779
    %v3489 = vmul.f32 %v3394, %v1780
    %v3490 = vmul.f32 %v3395, %v1781
    %v3491 = vmul.f32 %v3396, %v1782
    %v3492 = vmul.f32 %v3397, %v1783
    %v3493 = vmul.f32 %v3398, %v1784
    %v3494 = vmul.f32 %v3399, %v1785
    %v3495 = vmul.f32 %v3400, %v1786
    %v3496 = vmul.f32 %v3401, %v1787
    %v3497 = vmul.f32 %v3402, %v1788
    %v3498 = vmul.f32 %v3403, %v1789
    %v3499 = vmul.f32 %v3404, %v1790
    %v3500 = vmul.f32 %v3405, %v1791
    %v3501 = vmul.f32 %v3406, %v1792
    %v3502 = vmul.f32 %v3407, %v1793
    %v3503 = vmul.f32 %v3408, %v1794
    %v3504 = vmul.f32 %v3409, %v1795
    %v3505 = vmul.f32 %v3410, %v1796
    %v3506 = vmul.f32 %v3411, %v1797
    %v3507 = vmul.f32 %v3412, %v1798
    %v3508 = vmul.f32 %v3413, %v1799
    %v3509 = vmul.f32 %v3414, %v1800
    %v3510 = vmul.f32 %v3415, %v1801
    %v3511 = vmul.f32 %v3416, %v1802
    %v3512 = vmul.f32 %v3417, %v1803
    %v3513 = vmul.f32 %v3418, %v1804
    %v3514 = vmul.f32 %v3419, %v1805
    %v3515 = vmul.f32 %v3420, %v1806
    %v3516 = vmul.f32 %v3421, %v1807
    %v3517 = vmul.f32 %v3422, %v1808
    %v3518 = vmul.f32 %v3423, %v1809
    %v3519 = vmul.f32 %v3424, %v1810
    %v3520 = vmul.f32 %v3425, %v1811
    %v3521 = vmul.f32 %v3426, %v1812
    %v3522 = vmul.f32 %v3408, %v1813
    %v3523 = vmul.f32 %v3409, %v1814
    %v3524 = vmul.f32 %v3410, %v1815
    %v3525 = vmul.f32 %v3411, %v1816
    %v3526 = vmul.f32 %v3412, %v1817
    %v3527 = vmul.f32 %v3413, %v1818
    %v3528 = vmul.f32 %v3414, %v1819
    %v3529 = vmul.f32 %v3415, %v1820
    %v3530 = vmul.f32 %v3416, %v1821
    %v3531 = vmul.f32 %v3417, %v1822
    %v3532 = vmul.f32 %v3418, %v1823
    %v3533 = vmul.f32 %v3419, %v1824
    %v3534 = vmul.f32 %v3420, %v1825
    %v3535 = vmul.f32 %v3421, %v1826
    %v3536 = vmul.f32 %v3422, %v1827
    %v3537 = vmul.f32 %v3423, %v1828
    %v3538 = vmul.f32 %v3424, %v1829
    %v3539 = vmul.f32 %v3425, %v1830
    %v3540 = vmul.f32 %v3426, %v1831
    %v3541 = vmul.f32 %v3427, %v1832
    %v3542 = vmul.f32 %v3428, %v1833
    %v3543 = vmul.f32 %v3429, %v1834
    %v3544 = vmul.f32 %v3430, %v1835
    %v3545 = vmul.f32 %v3431, %v1836
    %v3546 = vmul.f32 %v3432, %v1837
    %v3547 = vmul.f32 %v3433, %v1838
    %v3548 = vmul.f32 %v3434, %v1839
    %v3549 = vmul.f32 %v3435, %v1840
    %v3550 = vmul.f32 %v3436, %v1841
    %v3551 = vmul.f32 %v3437, %v1842
    %v3552 = vmul.f32 %v3438, %v1843
    %v3553 = vmul.f32 %v3439, %v1844
    %v3554 = vmul.f32 %v3440, %v1845
    %v3555 = vmul.f32 %v3441, %v1846
    %v3556 = vmul.f32 %v3442, %v1847
    %v3557 = vmul.f32 %v3443, %v1848
    %v3558 = vmul.f32 %v3444, %v1849
    %v3559 = vmul.f32 %v3445, %v1850
    %v3560 = vmul.f32 %v3427, %v1851
    %v3561 = vmul.f32 %v3428, %v1852
    %v3562 = vmul.f32 %v3429, %v1853
    %v3563 = vmul.f32 %v3430, %v1854
    %v3564 = vmul.f32 %v3431, %v1855
    %v3565 = vmul.f32 %v3432, %v1856
    %v3566 = vmul.f32 %v3433, %v1857
    %v3567 = vmul.f32 %v3434, %v1858
    %v3568 = vmul.f32 %v3435, %v1859
    %v3569 = vmul.f32 %v3436, %v1860
    %v3570 = vmul.f32 %v3437, %v1861
    %v3571 = vmul.f32 %v3438, %v1862
    %v3572 = vmul.f32 %v3439, %v1863
    %v3573 = vmul.f32 %v3440, %v1864
    %v3574 = vmul.f32 %v3441, %v1865
    %v3575 = vmul.f32 %v3442, %v1866
    %v3576 = vmul.f32 %v3443, %v1867
    %v3577 = vmul.f32 %v3444, %v1868
    %v3578 = vmul.f32 %v3445, %v1869
    %v3579 = vmul.f32 %v3446, %v1870
    %v3580 = vmul.f32 %v3447, %v1871
    %v3581 = vmul.f32 %v3448, %v1872
    %v3582 = vmul.f32 %v3449, %v1873
    %v3583 = vmul.f32 %v3450, %v1874
    %v3584 = vmul.f32 %v3451, %v1875
    %v3585 = vmul.f32 %v3452, %v1876
    %v3586 = vmul.f32 %v3453, %v1877
    %v3587 = vmul.f32 %v3454, %v1878
    %v3588 = vmul.f32 %v3455, %v1879
    %v3589 = vmul.f32 %v3456, %v1880
    %v3590 = vmul.f32 %v3457, %v1881
    %v3591 = vmul.f32 %v3458, %v1882
    %v3592 = vmul.f32 %v3459, %v1883
    %v3593 = vmul.f32 %v3460, %v1884
    %v3594 = vmul.f32 %v3461, %v1885
    %v3595 = vmul.f32 %v3462, %v1886
    %v3596 = vmul.f32 %v3463, %v1887
    %v3597 = vmul.f32 %v3464, %v1888
    %v3598 = vmul.f32 %v3446, %v1889
    %v3599 = vmul.f32 %v3447, %v1890
    %v3600 = vmul.f32 %v3448, %v1891
    %v3601 = vmul.f32 %v3449, %v1892
    %v3602 = vmul.f32 %v3450, %v1893
    %v3603 = vmul.f32 %v3451, %v1894
    %v3604 = vmul.f32 %v3452, %v1895
    %v3605 = vmul.f32 %v3453, %v1896
    %v3606 = vmul.f32 %v3454, %v1897
    %v3607 = vmul.f32 %v3455, %v1898
    %v3608 = vmul.f32 %v3456, %v1899
    %v3609 = vmul.f32 %v3457, %v1900
    %v3610 = vmul.f32 %v3458, %v1901
    %v3611 = vmul.f32 %v3459, %v1902
    %v3612 = vmul.f32 %v3460, %v1903
    %v3613 = vmul.f32 %v3461, %v1904
    %v3614 = vmul.f32 %v3462, %v1905
    %v3615 = vmul.f32 %v3463, %v1906
    %v3616 = vmul.f32 %v3464, %v1907
    %v3617 = vadd.f32 %v3465, %v3466
    %v3618 = vadd.f32 %v3617, %v3467
    %v3619 = vadd.f32 %v3618, %v3468
    %v3620 = vadd.f32 %v3619, %v3469
    %v3621 = vadd.f32 %v3620, %v3470
    %v3622 = vadd.f32 %v3621, %v3471
    %v3623 = vadd.f32 %v3622, %v3472
    %v3624 = vadd.f32 %v3623, %v3473
    %v3625 = vadd.f32 %v3624, %v3474
    %v3626 = vadd.f32 %v3625, %v3475
    %v3627 = vadd.f32 %v3626, %v3476
    %v3628 = vadd.f32 %v3627, %v3477
    %v3629 = vadd.f32 %v3628, %v3478
    %v3630 = vadd.f32 %v3629, %v3479
    %v3631 = vadd.f32 %v3630, %v3480
    %v3632 = vadd.f32 %v3631, %v3481
    %v3633 = vadd.f32 %v3632, %v3482
    %v3634 = vsel %vm1925, %v3483, 0.0
    %v3635 = vadd.f32 %v3633, %v3634
    %3636 = vadd.xlane.f32.xlu0 %v3635
    %v3637 = vpop.xlane.xlu0 %3636
    %v3638 = vadd.f32 %v3484, %v3485
    %v3639 = vadd.f32 %v3638, %v3486
    %v3640 = vadd.f32 %v3639, %v3487
    %v3641 = vadd.f32 %v3640, %v3488
    %v3642 = vadd.f32 %v3641, %v3489
    %v3643 = vadd.f32 %v3642, %v3490
    %v3644 = vadd.f32 %v3643, %v3491
    %v3645 = vadd.f32 %v3644, %v3492
    %v3646 = vadd.f32 %v3645, %v3493
    %v3647 = vadd.f32 %v3646, %v3494
    %v3648 = vadd.f32 %v3647, %v3495
    %v3649 = vadd.f32 %v3648, %v3496
    %v3650 = vadd.f32 %v3649, %v3497
    %v3651 = vadd.f32 %v3650, %v3498
    %v3652 = vadd.f32 %v3651, %v3499
    %v3653 = vadd.f32 %v3652, %v3500
    %v3654 = vadd.f32 %v3653, %v3501
    %v3655 = vsel %vm1925, %v3502, 0.0
    %v3656 = vadd.f32 %v3654, %v3655
    %3657 = vadd.xlane.f32.xlu0 %v3656
    %v3658 = vpop.xlane.xlu0 %3657
    %v3659 = vadd.f32 %v3503, %v3504
    %v3660 = vadd.f32 %v3659, %v3505
    %v3661 = vadd.f32 %v3660, %v3506
    %v3662 = vadd.f32 %v3661, %v3507
    %v3663 = vadd.f32 %v3662, %v3508
    %v3664 = vadd.f32 %v3663, %v3509
    %v3665 = vadd.f32 %v3664, %v3510
    %v3666 = vadd.f32 %v3665, %v3511
    %v3667 = vadd.f32 %v3666, %v3512
    %v3668 = vadd.f32 %v3667, %v3513
    %v3669 = vadd.f32 %v3668, %v3514
    %v3670 = vadd.f32 %v3669, %v3515
    %v3671 = vadd.f32 %v3670, %v3516
    %v3672 = vadd.f32 %v3671, %v3517
    %v3673 = vadd.f32 %v3672, %v3518
    %v3674 = vadd.f32 %v3673, %v3519
    %v3675 = vadd.f32 %v3674, %v3520
    %v3676 = vsel %vm1925, %v3521, 0.0
    %v3677 = vadd.f32 %v3675, %v3676
    %3678 = vadd.xlane.f32.xlu0 %v3677
    %v3679 = vpop.xlane.xlu0 %3678
    %v3680 = vadd.f32 %v3522, %v3523
    %v3681 = vadd.f32 %v3680, %v3524
    %v3682 = vadd.f32 %v3681, %v3525
    %v3683 = vadd.f32 %v3682, %v3526
    %v3684 = vadd.f32 %v3683, %v3527
    %v3685 = vadd.f32 %v3684, %v3528
    %v3686 = vadd.f32 %v3685, %v3529
    %v3687 = vadd.f32 %v3686, %v3530
    %v3688 = vadd.f32 %v3687, %v3531
    %v3689 = vadd.f32 %v3688, %v3532
    %v3690 = vadd.f32 %v3689, %v3533
    %v3691 = vadd.f32 %v3690, %v3534
    %v3692 = vadd.f32 %v3691, %v3535
    %v3693 = vadd.f32 %v3692, %v3536
    %v3694 = vadd.f32 %v3693, %v3537
    %v3695 = vadd.f32 %v3694, %v3538
    %v3696 = vadd.f32 %v3695, %v3539
    %v3697 = vsel %vm1925, %v3540, 0.0
    %v3698 = vadd.f32 %v3696, %v3697
    %3699 = vadd.xlane.f32.xlu0 %v3698
    %v3700 = vpop.xlane.xlu0 %3699
    %v3701 = vadd.f32 %v3541, %v3542
    %v3702 = vadd.f32 %v3701, %v3543
    %v3703 = vadd.f32 %v3702, %v3544
    %v3704 = vadd.f32 %v3703, %v3545
    %v3705 = vadd.f32 %v3704, %v3546
    %v3706 = vadd.f32 %v3705, %v3547
    %v3707 = vadd.f32 %v3706, %v3548
    %v3708 = vadd.f32 %v3707, %v3549
    %v3709 = vadd.f32 %v3708, %v3550
    %v3710 = vadd.f32 %v3709, %v3551
    %v3711 = vadd.f32 %v3710, %v3552
    %v3712 = vadd.f32 %v3711, %v3553
    %v3713 = vadd.f32 %v3712, %v3554
    %v3714 = vadd.f32 %v3713, %v3555
    %v3715 = vadd.f32 %v3714, %v3556
    %v3716 = vadd.f32 %v3715, %v3557
    %v3717 = vadd.f32 %v3716, %v3558
    %v3718 = vsel %vm1925, %v3559, 0.0
    %v3719 = vadd.f32 %v3717, %v3718
    %3720 = vadd.xlane.f32.xlu0 %v3719
    %v3721 = vpop.xlane.xlu0 %3720
    %v3722 = vadd.f32 %v3560, %v3561
    %v3723 = vadd.f32 %v3722, %v3562
    %v3724 = vadd.f32 %v3723, %v3563
    %v3725 = vadd.f32 %v3724, %v3564
    %v3726 = vadd.f32 %v3725, %v3565
    %v3727 = vadd.f32 %v3726, %v3566
    %v3728 = vadd.f32 %v3727, %v3567
    %v3729 = vadd.f32 %v3728, %v3568
    %v3730 = vadd.f32 %v3729, %v3569
    %v3731 = vadd.f32 %v3730, %v3570
    %v3732 = vadd.f32 %v3731, %v3571
    %v3733 = vadd.f32 %v3732, %v3572
    %v3734 = vadd.f32 %v3733, %v3573
    %v3735 = vadd.f32 %v3734, %v3574
    %v3736 = vadd.f32 %v3735, %v3575
    %v3737 = vadd.f32 %v3736, %v3576
    %v3738 = vadd.f32 %v3737, %v3577
    %v3739 = vsel %vm1925, %v3578, 0.0
    %v3740 = vadd.f32 %v3738, %v3739
    %3741 = vadd.xlane.f32.xlu0 %v3740
    %v3742 = vpop.xlane.xlu0 %3741
    %v3743 = vadd.f32 %v3579, %v3580
    %v3744 = vadd.f32 %v3743, %v3581
    %v3745 = vadd.f32 %v3744, %v3582
    %v3746 = vadd.f32 %v3745, %v3583
    %v3747 = vadd.f32 %v3746, %v3584
    %v3748 = vadd.f32 %v3747, %v3585
    %v3749 = vadd.f32 %v3748, %v3586
    %v3750 = vadd.f32 %v3749, %v3587
    %v3751 = vadd.f32 %v3750, %v3588
    %v3752 = vadd.f32 %v3751, %v3589
    %v3753 = vadd.f32 %v3752, %v3590
    %v3754 = vadd.f32 %v3753, %v3591
    %v3755 = vadd.f32 %v3754, %v3592
    %v3756 = vadd.f32 %v3755, %v3593
    %v3757 = vadd.f32 %v3756, %v3594
    %v3758 = vadd.f32 %v3757, %v3595
    %v3759 = vadd.f32 %v3758, %v3596
    %v3760 = vsel %vm1925, %v3597, 0.0
    %v3761 = vadd.f32 %v3759, %v3760
    %3762 = vadd.xlane.f32.xlu0 %v3761
    %v3763 = vpop.xlane.xlu0 %3762
    %v3764 = vadd.f32 %v3598, %v3599
    %v3765 = vadd.f32 %v3764, %v3600
    %v3766 = vadd.f32 %v3765, %v3601
    %v3767 = vadd.f32 %v3766, %v3602
    %v3768 = vadd.f32 %v3767, %v3603
    %v3769 = vadd.f32 %v3768, %v3604
    %v3770 = vadd.f32 %v3769, %v3605
    %v3771 = vadd.f32 %v3770, %v3606
    %v3772 = vadd.f32 %v3771, %v3607
    %v3773 = vadd.f32 %v3772, %v3608
    %v3774 = vadd.f32 %v3773, %v3609
    %v3775 = vadd.f32 %v3774, %v3610
    %v3776 = vadd.f32 %v3775, %v3611
    %v3777 = vadd.f32 %v3776, %v3612
    %v3778 = vadd.f32 %v3777, %v3613
    %v3779 = vadd.f32 %v3778, %v3614
    %v3780 = vadd.f32 %v3779, %v3615
    %v3781 = vsel %vm1925, %v3616, 0.0
    %v3782 = vadd.f32 %v3780, %v3781
    %3783 = vadd.xlane.f32.xlu0 %v3782
    %v3784 = vpop.xlane.xlu0 %3783
    %v3785 = vmul.f32 %v3637, %v3637
    %v3786 = vmul.f32 %v3658, %v3658
    %v3787 = vmul.f32 %v3679, %v3679
    %v3788 = vmul.f32 %v3700, %v3700
    %v3789 = vmul.f32 %v3721, %v3721
    %v3790 = vmul.f32 %v3742, %v3742
    %v3791 = vmul.f32 %v3763, %v3763
    %v3792 = vmul.f32 %v3784, %v3784
    %v3793 = vadd.f32 %v3785, %v3786
    %v3794 = vrot.slane %v3793, 4
    %v3795 = vadd.f32 %v3793, %v3794
    %v3796 = vrot.slane %v3795, 2
    %v3797 = vadd.f32 %v3795, %v3796
    %v3798 = vrot.slane %v3797, 1
    %v3799 = vadd.f32 %v3797, %v3798
    %v3800 = vadd.f32 %v3787, %v3788
    %v3801 = vrot.slane %v3800, 4
    %v3802 = vadd.f32 %v3800, %v3801
    %v3803 = vrot.slane %v3802, 2
    %v3804 = vadd.f32 %v3802, %v3803
    %v3805 = vrot.slane %v3804, 1
    %v3806 = vadd.f32 %v3804, %v3805
    %v3807 = vadd.f32 %v3789, %v3790
    %v3808 = vrot.slane %v3807, 4
    %v3809 = vadd.f32 %v3807, %v3808
    %v3810 = vrot.slane %v3809, 2
    %v3811 = vadd.f32 %v3809, %v3810
    %v3812 = vrot.slane %v3811, 1
    %v3813 = vadd.f32 %v3811, %v3812
    %v3814 = vadd.f32 %v3791, %v3792
    %v3815 = vrot.slane %v3814, 4
    %v3816 = vadd.f32 %v3814, %v3815
    %v3817 = vrot.slane %v3816, 2
    %v3818 = vadd.f32 %v3816, %v3817
    %v3819 = vrot.slane %v3818, 1
    %v3820 = vadd.f32 %v3818, %v3819
    %v3821 = vrsqrt.pop %v3799
    %v3822 = vmul.f32 %v3821, %v3799
    %v3823 = vmul.f32 %v3822, %v3821
    %v3824 = vmul.f32 0.5, %v3823
    %v3825 = vsub.f32 1.5, %v3824
    %v3826 = vmul.f32 %v3821, %v3825
    %v3827 = vmul.f32 %v3799, %v3826
    %vm3828 = vcmp.eq.f32.partialorder %v3799, inf
    %v3829 = vsel %vm3828, %v3799, %v3827
    %vm3830 = vcmp.eq.f32.partialorder %v3799, 0.0
    %v3831 = vand.u32 %v3799, 2147483648
    %v3832 = vsel %vm3830, %v3831, %v3829
    %v3833 = vrsqrt.pop %v3806
    %v3834 = vmul.f32 %v3833, %v3806
    %v3835 = vmul.f32 %v3834, %v3833
    %v3836 = vmul.f32 0.5, %v3835
    %v3837 = vsub.f32 1.5, %v3836
    %v3838 = vmul.f32 %v3833, %v3837
    %v3839 = vmul.f32 %v3806, %v3838
    %vm3840 = vcmp.eq.f32.partialorder %v3806, inf
    %v3841 = vsel %vm3840, %v3806, %v3839
    %vm3842 = vcmp.eq.f32.partialorder %v3806, 0.0
    %v3843 = vand.u32 %v3806, 2147483648
    %v3844 = vsel %vm3842, %v3843, %v3841
    %v3845 = vrsqrt.pop %v3813
    %v3846 = vmul.f32 %v3845, %v3813
    %v3847 = vmul.f32 %v3846, %v3845
    %v3848 = vmul.f32 0.5, %v3847
    %v3849 = vsub.f32 1.5, %v3848
    %v3850 = vmul.f32 %v3845, %v3849
    %v3851 = vmul.f32 %v3813, %v3850
    %vm3852 = vcmp.eq.f32.partialorder %v3813, inf
    %v3853 = vsel %vm3852, %v3813, %v3851
    %vm3854 = vcmp.eq.f32.partialorder %v3813, 0.0
    %v3855 = vand.u32 %v3813, 2147483648
    %v3856 = vsel %vm3854, %v3855, %v3853
    %v3857 = vrsqrt.pop %v3820
    %v3858 = vmul.f32 %v3857, %v3820
    %v3859 = vmul.f32 %v3858, %v3857
    %v3860 = vmul.f32 0.5, %v3859
    %v3861 = vsub.f32 1.5, %v3860
    %v3862 = vmul.f32 %v3857, %v3861
    %v3863 = vmul.f32 %v3820, %v3862
    %vm3864 = vcmp.eq.f32.partialorder %v3820, inf
    %v3865 = vsel %vm3864, %v3820, %v3863
    %vm3866 = vcmp.eq.f32.partialorder %v3820, 0.0
    %v3867 = vand.u32 %v3820, 2147483648
    %v3868 = vsel %vm3866, %v3867, %v3865
    %v3869 = vadd.f32 %v3799, 1.0
    %v3870 = vadd.f32 %v3806, 1.0
    %v3871 = vadd.f32 %v3813, 1.0
    %v3872 = vadd.f32 %v3820, 1.0
    %v3873 = vrcp.pop %v3869
    %v3874 = vmul.f32 %v3869, %v3873
    %v3875 = vsub.f32 1.0, %v3874
    %v3876 = vmul.f32 %v3873, %v3875
    %v3877 = vadd.f32 %v3873, %v3876
    %vm3878 = vweird.f32 %v3869
    %vm3879 = vweird.f32 %v3873
    %vm3880 = vmor %vm3878, %vm3879
    %v3881 = vsel %vm3880, %v3873, %v3877
    %v3882 = vand.u32 2147483647, %v3869
    %vm3883 = vcmp.eq.f32.partialorder %v3882, 8.507059e+37
    %v3884 = vand.u32 %v3869, 2147483648
    %v3885 = vor.u32 1.1754944e-38, %v3884
    %v3886 = vsel %vm3883, %v3885, %v3881
    %v3887 = vmul.f32 %v3832, %v3886
    %v3888 = vrcp.pop %v3870
    %v3889 = vmul.f32 %v3870, %v3888
    %v3890 = vsub.f32 1.0, %v3889
    %v3891 = vmul.f32 %v3888, %v3890
    %v3892 = vadd.f32 %v3888, %v3891
    %vm3893 = vweird.f32 %v3870
    %vm3894 = vweird.f32 %v3888
    %vm3895 = vmor %vm3893, %vm3894
    %v3896 = vsel %vm3895, %v3888, %v3892
    %v3897 = vand.u32 2147483647, %v3870
    %vm3898 = vcmp.eq.f32.partialorder %v3897, 8.507059e+37
    %v3899 = vand.u32 %v3870, 2147483648
    %v3900 = vor.u32 1.1754944e-38, %v3899
    %v3901 = vsel %vm3898, %v3900, %v3896
    %v3902 = vmul.f32 %v3844, %v3901
    %v3903 = vrcp.pop %v3871
    %v3904 = vmul.f32 %v3871, %v3903
    %v3905 = vsub.f32 1.0, %v3904
    %v3906 = vmul.f32 %v3903, %v3905
    %v3907 = vadd.f32 %v3903, %v3906
    %vm3908 = vweird.f32 %v3871
    %vm3909 = vweird.f32 %v3903
    %vm3910 = vmor %vm3908, %vm3909
    %v3911 = vsel %vm3910, %v3903, %v3907
    %v3912 = vand.u32 2147483647, %v3871
    %vm3913 = vcmp.eq.f32.partialorder %v3912, 8.507059e+37
    %v3914 = vand.u32 %v3871, 2147483648
    %v3915 = vor.u32 1.1754944e-38, %v3914
    %v3916 = vsel %vm3913, %v3915, %v3911
    %v3917 = vmul.f32 %v3856, %v3916
    %v3918 = vrcp.pop %v3872
    %v3919 = vmul.f32 %v3872, %v3918
    %v3920 = vsub.f32 1.0, %v3919
    %v3921 = vmul.f32 %v3918, %v3920
    %v3922 = vadd.f32 %v3918, %v3921
    %vm3923 = vweird.f32 %v3872
    %vm3924 = vweird.f32 %v3918
    %vm3925 = vmor %vm3923, %vm3924
    %v3926 = vsel %vm3925, %v3918, %v3922
    %v3927 = vand.u32 2147483647, %v3872
    %vm3928 = vcmp.eq.f32.partialorder %v3927, 8.507059e+37
    %v3929 = vand.u32 %v3872, 2147483648
    %v3930 = vor.u32 1.1754944e-38, %v3929
    %v3931 = vsel %vm3928, %v3930, %v3926
    %v3932 = vmul.f32 %v3868, %v3931
    %v3933 = vmul.f32 %v3637, %v3887
    %v3934 = vmul.f32 %v3658, %v3887
    %v3935 = vmul.f32 %v3679, %v3902
    %v3936 = vmul.f32 %v3700, %v3902
    %v3937 = vmul.f32 %v3721, %v3917
    %v3938 = vmul.f32 %v3742, %v3917
    %v3939 = vmul.f32 %v3763, %v3932
    %v3940 = vmul.f32 %v3784, %v3932
    %v3941 = vmul.f32 %v1756, %v3933
    %v3942 = vmul.f32 %v1757, %v3933
    %v3943 = vmul.f32 %v1758, %v3933
    %v3944 = vmul.f32 %v1759, %v3933
    %v3945 = vmul.f32 %v1760, %v3933
    %v3946 = vmul.f32 %v1761, %v3933
    %v3947 = vmul.f32 %v1762, %v3933
    %v3948 = vmul.f32 %v1763, %v3933
    %v3949 = vmul.f32 %v1764, %v3933
    %v3950 = vmul.f32 %v1765, %v3933
    %v3951 = vmul.f32 %v1766, %v3933
    %v3952 = vmul.f32 %v1767, %v3933
    %v3953 = vmul.f32 %v1768, %v3933
    %v3954 = vmul.f32 %v1769, %v3933
    %v3955 = vmul.f32 %v1770, %v3933
    %v3956 = vmul.f32 %v1771, %v3933
    %v3957 = vmul.f32 %v1772, %v3933
    %v3958 = vmul.f32 %v1773, %v3933
    %v3959 = vmul.f32 %v1774, %v3933
    %v3960 = vmul.f32 %v1775, %v3934
    %v3961 = vmul.f32 %v1776, %v3934
    %v3962 = vmul.f32 %v1777, %v3934
    %v3963 = vmul.f32 %v1778, %v3934
    %v3964 = vmul.f32 %v1779, %v3934
    %v3965 = vmul.f32 %v1780, %v3934
    %v3966 = vmul.f32 %v1781, %v3934
    %v3967 = vmul.f32 %v1782, %v3934
    %v3968 = vmul.f32 %v1783, %v3934
    %v3969 = vmul.f32 %v1784, %v3934
    %v3970 = vmul.f32 %v1785, %v3934
    %v3971 = vmul.f32 %v1786, %v3934
    %v3972 = vmul.f32 %v1787, %v3934
    %v3973 = vmul.f32 %v1788, %v3934
    %v3974 = vmul.f32 %v1789, %v3934
    %v3975 = vmul.f32 %v1790, %v3934
    %v3976 = vmul.f32 %v1791, %v3934
    %v3977 = vmul.f32 %v1792, %v3934
    %v3978 = vmul.f32 %v1793, %v3934
    %v3979 = vmul.f32 %v1794, %v3935
    %v3980 = vmul.f32 %v1795, %v3935
    %v3981 = vmul.f32 %v1796, %v3935
    %v3982 = vmul.f32 %v1797, %v3935
    %v3983 = vmul.f32 %v1798, %v3935
    %v3984 = vmul.f32 %v1799, %v3935
    %v3985 = vmul.f32 %v1800, %v3935
    %v3986 = vmul.f32 %v1801, %v3935
    %v3987 = vmul.f32 %v1802, %v3935
    %v3988 = vmul.f32 %v1803, %v3935
    %v3989 = vmul.f32 %v1804, %v3935
    %v3990 = vmul.f32 %v1805, %v3935
    %v3991 = vmul.f32 %v1806, %v3935
    %v3992 = vmul.f32 %v1807, %v3935
    %v3993 = vmul.f32 %v1808, %v3935
    %v3994 = vmul.f32 %v1809, %v3935
    %v3995 = vmul.f32 %v1810, %v3935
    %v3996 = vmul.f32 %v1811, %v3935
    %v3997 = vmul.f32 %v1812, %v3935
    %v3998 = vmul.f32 %v1813, %v3936
    %v3999 = vmul.f32 %v1814, %v3936
    %v4000 = vmul.f32 %v1815, %v3936
    %v4001 = vmul.f32 %v1816, %v3936
    %v4002 = vmul.f32 %v1817, %v3936
    %v4003 = vmul.f32 %v1818, %v3936
    %v4004 = vmul.f32 %v1819, %v3936
    %v4005 = vmul.f32 %v1820, %v3936
    %v4006 = vmul.f32 %v1821, %v3936
    %v4007 = vmul.f32 %v1822, %v3936
    %v4008 = vmul.f32 %v1823, %v3936
    %v4009 = vmul.f32 %v1824, %v3936
    %v4010 = vmul.f32 %v1825, %v3936
    %v4011 = vmul.f32 %v1826, %v3936
    %v4012 = vmul.f32 %v1827, %v3936
    %v4013 = vmul.f32 %v1828, %v3936
    %v4014 = vmul.f32 %v1829, %v3936
    %v4015 = vmul.f32 %v1830, %v3936
    %v4016 = vmul.f32 %v1831, %v3936
    %v4017 = vmul.f32 %v1832, %v3937
    %v4018 = vmul.f32 %v1833, %v3937
    %v4019 = vmul.f32 %v1834, %v3937
    %v4020 = vmul.f32 %v1835, %v3937
    %v4021 = vmul.f32 %v1836, %v3937
    %v4022 = vmul.f32 %v1837, %v3937
    %v4023 = vmul.f32 %v1838, %v3937
    %v4024 = vmul.f32 %v1839, %v3937
    %v4025 = vmul.f32 %v1840, %v3937
    %v4026 = vmul.f32 %v1841, %v3937
    %v4027 = vmul.f32 %v1842, %v3937
    %v4028 = vmul.f32 %v1843, %v3937
    %v4029 = vmul.f32 %v1844, %v3937
    %v4030 = vmul.f32 %v1845, %v3937
    %v4031 = vmul.f32 %v1846, %v3937
    %v4032 = vmul.f32 %v1847, %v3937
    %v4033 = vmul.f32 %v1848, %v3937
    %v4034 = vmul.f32 %v1849, %v3937
    %v4035 = vmul.f32 %v1850, %v3937
    %v4036 = vmul.f32 %v1851, %v3938
    %v4037 = vmul.f32 %v1852, %v3938
    %v4038 = vmul.f32 %v1853, %v3938
    %v4039 = vmul.f32 %v1854, %v3938
    %v4040 = vmul.f32 %v1855, %v3938
    %v4041 = vmul.f32 %v1856, %v3938
    %v4042 = vmul.f32 %v1857, %v3938
    %v4043 = vmul.f32 %v1858, %v3938
    %v4044 = vmul.f32 %v1859, %v3938
    %v4045 = vmul.f32 %v1860, %v3938
    %v4046 = vmul.f32 %v1861, %v3938
    %v4047 = vmul.f32 %v1862, %v3938
    %v4048 = vmul.f32 %v1863, %v3938
    %v4049 = vmul.f32 %v1864, %v3938
    %v4050 = vmul.f32 %v1865, %v3938
    %v4051 = vmul.f32 %v1866, %v3938
    %v4052 = vmul.f32 %v1867, %v3938
    %v4053 = vmul.f32 %v1868, %v3938
    %v4054 = vmul.f32 %v1869, %v3938
    %v4055 = vmul.f32 %v1870, %v3939
    %v4056 = vmul.f32 %v1871, %v3939
    %v4057 = vmul.f32 %v1872, %v3939
    %v4058 = vmul.f32 %v1873, %v3939
    %v4059 = vmul.f32 %v1874, %v3939
    %v4060 = vmul.f32 %v1875, %v3939
    %v4061 = vmul.f32 %v1876, %v3939
    %v4062 = vmul.f32 %v1877, %v3939
    %v4063 = vmul.f32 %v1878, %v3939
    %v4064 = vmul.f32 %v1879, %v3939
    %v4065 = vmul.f32 %v1880, %v3939
    %v4066 = vmul.f32 %v1881, %v3939
    %v4067 = vmul.f32 %v1882, %v3939
    %v4068 = vmul.f32 %v1883, %v3939
    %v4069 = vmul.f32 %v1884, %v3939
    %v4070 = vmul.f32 %v1885, %v3939
    %v4071 = vmul.f32 %v1886, %v3939
    %v4072 = vmul.f32 %v1887, %v3939
    %v4073 = vmul.f32 %v1888, %v3939
    %v4074 = vmul.f32 %v1889, %v3940
    %v4075 = vmul.f32 %v1890, %v3940
    %v4076 = vmul.f32 %v1891, %v3940
    %v4077 = vmul.f32 %v1892, %v3940
    %v4078 = vmul.f32 %v1893, %v3940
    %v4079 = vmul.f32 %v1894, %v3940
    %v4080 = vmul.f32 %v1895, %v3940
    %v4081 = vmul.f32 %v1896, %v3940
    %v4082 = vmul.f32 %v1897, %v3940
    %v4083 = vmul.f32 %v1898, %v3940
    %v4084 = vmul.f32 %v1899, %v3940
    %v4085 = vmul.f32 %v1900, %v3940
    %v4086 = vmul.f32 %v1901, %v3940
    %v4087 = vmul.f32 %v1902, %v3940
    %v4088 = vmul.f32 %v1903, %v3940
    %v4089 = vmul.f32 %v1904, %v3940
    %v4090 = vmul.f32 %v1905, %v3940
    %v4091 = vmul.f32 %v1906, %v3940
    %v4092 = vmul.f32 %v1907, %v3940
    %v4093 = vadd.f32 %v3941, %v3960
    %v4094 = vrot.slane %v4093, 4
    %v4095 = vadd.f32 %v4093, %v4094
    %v4096 = vrot.slane %v4095, 2
    %v4097 = vadd.f32 %v4095, %v4096
    %v4098 = vrot.slane %v4097, 1
    %v4099 = vadd.f32 %v4097, %v4098
    %v4100 = vadd.f32 %v3942, %v3961
    %v4101 = vrot.slane %v4100, 4
    %v4102 = vadd.f32 %v4100, %v4101
    %v4103 = vrot.slane %v4102, 2
    %v4104 = vadd.f32 %v4102, %v4103
    %v4105 = vrot.slane %v4104, 1
    %v4106 = vadd.f32 %v4104, %v4105
    %v4107 = vadd.f32 %v3943, %v3962
    %v4108 = vrot.slane %v4107, 4
    %v4109 = vadd.f32 %v4107, %v4108
    %v4110 = vrot.slane %v4109, 2
    %v4111 = vadd.f32 %v4109, %v4110
    %v4112 = vrot.slane %v4111, 1
    %v4113 = vadd.f32 %v4111, %v4112
    %v4114 = vadd.f32 %v3944, %v3963
    %v4115 = vrot.slane %v4114, 4
    %v4116 = vadd.f32 %v4114, %v4115
    %v4117 = vrot.slane %v4116, 2
    %v4118 = vadd.f32 %v4116, %v4117
    %v4119 = vrot.slane %v4118, 1
    %v4120 = vadd.f32 %v4118, %v4119
    %v4121 = vadd.f32 %v3945, %v3964
    %v4122 = vrot.slane %v4121, 4
    %v4123 = vadd.f32 %v4121, %v4122
    %v4124 = vrot.slane %v4123, 2
    %v4125 = vadd.f32 %v4123, %v4124
    %v4126 = vrot.slane %v4125, 1
    %v4127 = vadd.f32 %v4125, %v4126
    %v4128 = vadd.f32 %v3946, %v3965
    %v4129 = vrot.slane %v4128, 4
    %v4130 = vadd.f32 %v4128, %v4129
    %v4131 = vrot.slane %v4130, 2
    %v4132 = vadd.f32 %v4130, %v4131
    %v4133 = vrot.slane %v4132, 1
    %v4134 = vadd.f32 %v4132, %v4133
    %v4135 = vadd.f32 %v3947, %v3966
    %v4136 = vrot.slane %v4135, 4
    %v4137 = vadd.f32 %v4135, %v4136
    %v4138 = vrot.slane %v4137, 2
    %v4139 = vadd.f32 %v4137, %v4138
    %v4140 = vrot.slane %v4139, 1
    %v4141 = vadd.f32 %v4139, %v4140
    %v4142 = vadd.f32 %v3948, %v3967
    %v4143 = vrot.slane %v4142, 4
    %v4144 = vadd.f32 %v4142, %v4143
    %v4145 = vrot.slane %v4144, 2
    %v4146 = vadd.f32 %v4144, %v4145
    %v4147 = vrot.slane %v4146, 1
    %v4148 = vadd.f32 %v4146, %v4147
    %v4149 = vadd.f32 %v3949, %v3968
    %v4150 = vrot.slane %v4149, 4
    %v4151 = vadd.f32 %v4149, %v4150
    %v4152 = vrot.slane %v4151, 2
    %v4153 = vadd.f32 %v4151, %v4152
    %v4154 = vrot.slane %v4153, 1
    %v4155 = vadd.f32 %v4153, %v4154
    %v4156 = vadd.f32 %v3950, %v3969
    %v4157 = vrot.slane %v4156, 4
    %v4158 = vadd.f32 %v4156, %v4157
    %v4159 = vrot.slane %v4158, 2
    %v4160 = vadd.f32 %v4158, %v4159
    %v4161 = vrot.slane %v4160, 1
    %v4162 = vadd.f32 %v4160, %v4161
    %v4163 = vadd.f32 %v3951, %v3970
    %v4164 = vrot.slane %v4163, 4
    %v4165 = vadd.f32 %v4163, %v4164
    %v4166 = vrot.slane %v4165, 2
    %v4167 = vadd.f32 %v4165, %v4166
    %v4168 = vrot.slane %v4167, 1
    %v4169 = vadd.f32 %v4167, %v4168
    %v4170 = vadd.f32 %v3952, %v3971
    %v4171 = vrot.slane %v4170, 4
    %v4172 = vadd.f32 %v4170, %v4171
    %v4173 = vrot.slane %v4172, 2
    %v4174 = vadd.f32 %v4172, %v4173
    %v4175 = vrot.slane %v4174, 1
    %v4176 = vadd.f32 %v4174, %v4175
    %v4177 = vadd.f32 %v3953, %v3972
    %v4178 = vrot.slane %v4177, 4
    %v4179 = vadd.f32 %v4177, %v4178
    %v4180 = vrot.slane %v4179, 2
    %v4181 = vadd.f32 %v4179, %v4180
    %v4182 = vrot.slane %v4181, 1
    %v4183 = vadd.f32 %v4181, %v4182
    %v4184 = vadd.f32 %v3954, %v3973
    %v4185 = vrot.slane %v4184, 4
    %v4186 = vadd.f32 %v4184, %v4185
    %v4187 = vrot.slane %v4186, 2
    %v4188 = vadd.f32 %v4186, %v4187
    %v4189 = vrot.slane %v4188, 1
    %v4190 = vadd.f32 %v4188, %v4189
    %v4191 = vadd.f32 %v3955, %v3974
    %v4192 = vrot.slane %v4191, 4
    %v4193 = vadd.f32 %v4191, %v4192
    %v4194 = vrot.slane %v4193, 2
    %v4195 = vadd.f32 %v4193, %v4194
    %v4196 = vrot.slane %v4195, 1
    %v4197 = vadd.f32 %v4195, %v4196
    %v4198 = vadd.f32 %v3956, %v3975
    %v4199 = vrot.slane %v4198, 4
    %v4200 = vadd.f32 %v4198, %v4199
    %v4201 = vrot.slane %v4200, 2
    %v4202 = vadd.f32 %v4200, %v4201
    %v4203 = vrot.slane %v4202, 1
    %v4204 = vadd.f32 %v4202, %v4203
    %v4205 = vadd.f32 %v3957, %v3976
    %v4206 = vrot.slane %v4205, 4
    %v4207 = vadd.f32 %v4205, %v4206
    %v4208 = vrot.slane %v4207, 2
    %v4209 = vadd.f32 %v4207, %v4208
    %v4210 = vrot.slane %v4209, 1
    %v4211 = vadd.f32 %v4209, %v4210
    %v4212 = vadd.f32 %v3958, %v3977
    %v4213 = vrot.slane %v4212, 4
    %v4214 = vadd.f32 %v4212, %v4213
    %v4215 = vrot.slane %v4214, 2
    %v4216 = vadd.f32 %v4214, %v4215
    %v4217 = vrot.slane %v4216, 1
    %v4218 = vadd.f32 %v4216, %v4217
    %v4219 = vsel %vm1925, %v3959, 0.0
    %v4220 = vsel %vm1925, %v3978, 0.0
    %v4221 = vadd.f32 %v4219, %v4220
    %v4222 = vrot.slane %v4221, 4
    %v4223 = vadd.f32 %v4221, %v4222
    %v4224 = vrot.slane %v4223, 2
    %v4225 = vadd.f32 %v4223, %v4224
    %v4226 = vrot.slane %v4225, 1
    %v4227 = vadd.f32 %v4225, %v4226
    %v4228 = vadd.f32 %v3979, %v3998
    %v4229 = vrot.slane %v4228, 4
    %v4230 = vadd.f32 %v4228, %v4229
    %v4231 = vrot.slane %v4230, 2
    %v4232 = vadd.f32 %v4230, %v4231
    %v4233 = vrot.slane %v4232, 1
    %v4234 = vadd.f32 %v4232, %v4233
    %v4235 = vadd.f32 %v3980, %v3999
    %v4236 = vrot.slane %v4235, 4
    %v4237 = vadd.f32 %v4235, %v4236
    %v4238 = vrot.slane %v4237, 2
    %v4239 = vadd.f32 %v4237, %v4238
    %v4240 = vrot.slane %v4239, 1
    %v4241 = vadd.f32 %v4239, %v4240
    %v4242 = vadd.f32 %v3981, %v4000
    %v4243 = vrot.slane %v4242, 4
    %v4244 = vadd.f32 %v4242, %v4243
    %v4245 = vrot.slane %v4244, 2
    %v4246 = vadd.f32 %v4244, %v4245
    %v4247 = vrot.slane %v4246, 1
    %v4248 = vadd.f32 %v4246, %v4247
    %v4249 = vadd.f32 %v3982, %v4001
    %v4250 = vrot.slane %v4249, 4
    %v4251 = vadd.f32 %v4249, %v4250
    %v4252 = vrot.slane %v4251, 2
    %v4253 = vadd.f32 %v4251, %v4252
    %v4254 = vrot.slane %v4253, 1
    %v4255 = vadd.f32 %v4253, %v4254
    %v4256 = vadd.f32 %v3983, %v4002
    %v4257 = vrot.slane %v4256, 4
    %v4258 = vadd.f32 %v4256, %v4257
    %v4259 = vrot.slane %v4258, 2
    %v4260 = vadd.f32 %v4258, %v4259
    %v4261 = vrot.slane %v4260, 1
    %v4262 = vadd.f32 %v4260, %v4261
    %v4263 = vadd.f32 %v3984, %v4003
    %v4264 = vrot.slane %v4263, 4
    %v4265 = vadd.f32 %v4263, %v4264
    %v4266 = vrot.slane %v4265, 2
    %v4267 = vadd.f32 %v4265, %v4266
    %v4268 = vrot.slane %v4267, 1
    %v4269 = vadd.f32 %v4267, %v4268
    %v4270 = vadd.f32 %v3985, %v4004
    %v4271 = vrot.slane %v4270, 4
    %v4272 = vadd.f32 %v4270, %v4271
    %v4273 = vrot.slane %v4272, 2
    %v4274 = vadd.f32 %v4272, %v4273
    %v4275 = vrot.slane %v4274, 1
    %v4276 = vadd.f32 %v4274, %v4275
    %v4277 = vadd.f32 %v3986, %v4005
    %v4278 = vrot.slane %v4277, 4
    %v4279 = vadd.f32 %v4277, %v4278
    %v4280 = vrot.slane %v4279, 2
    %v4281 = vadd.f32 %v4279, %v4280
    %v4282 = vrot.slane %v4281, 1
    %v4283 = vadd.f32 %v4281, %v4282
    %v4284 = vadd.f32 %v3987, %v4006
    %v4285 = vrot.slane %v4284, 4
    %v4286 = vadd.f32 %v4284, %v4285
    %v4287 = vrot.slane %v4286, 2
    %v4288 = vadd.f32 %v4286, %v4287
    %v4289 = vrot.slane %v4288, 1
    %v4290 = vadd.f32 %v4288, %v4289
    %v4291 = vadd.f32 %v3988, %v4007
    %v4292 = vrot.slane %v4291, 4
    %v4293 = vadd.f32 %v4291, %v4292
    %v4294 = vrot.slane %v4293, 2
    %v4295 = vadd.f32 %v4293, %v4294
    %v4296 = vrot.slane %v4295, 1
    %v4297 = vadd.f32 %v4295, %v4296
    %v4298 = vadd.f32 %v3989, %v4008
    %v4299 = vrot.slane %v4298, 4
    %v4300 = vadd.f32 %v4298, %v4299
    %v4301 = vrot.slane %v4300, 2
    %v4302 = vadd.f32 %v4300, %v4301
    %v4303 = vrot.slane %v4302, 1
    %v4304 = vadd.f32 %v4302, %v4303
    %v4305 = vadd.f32 %v3990, %v4009
    %v4306 = vrot.slane %v4305, 4
    %v4307 = vadd.f32 %v4305, %v4306
    %v4308 = vrot.slane %v4307, 2
    %v4309 = vadd.f32 %v4307, %v4308
    %v4310 = vrot.slane %v4309, 1
    %v4311 = vadd.f32 %v4309, %v4310
    %v4312 = vadd.f32 %v3991, %v4010
    %v4313 = vrot.slane %v4312, 4
    %v4314 = vadd.f32 %v4312, %v4313
    %v4315 = vrot.slane %v4314, 2
    %v4316 = vadd.f32 %v4314, %v4315
    %v4317 = vrot.slane %v4316, 1
    %v4318 = vadd.f32 %v4316, %v4317
    %v4319 = vadd.f32 %v3992, %v4011
    %v4320 = vrot.slane %v4319, 4
    %v4321 = vadd.f32 %v4319, %v4320
    %v4322 = vrot.slane %v4321, 2
    %v4323 = vadd.f32 %v4321, %v4322
    %v4324 = vrot.slane %v4323, 1
    %v4325 = vadd.f32 %v4323, %v4324
    %v4326 = vadd.f32 %v3993, %v4012
    %v4327 = vrot.slane %v4326, 4
    %v4328 = vadd.f32 %v4326, %v4327
    %v4329 = vrot.slane %v4328, 2
    %v4330 = vadd.f32 %v4328, %v4329
    %v4331 = vrot.slane %v4330, 1
    %v4332 = vadd.f32 %v4330, %v4331
    %v4333 = vadd.f32 %v3994, %v4013
    %v4334 = vrot.slane %v4333, 4
    %v4335 = vadd.f32 %v4333, %v4334
    %v4336 = vrot.slane %v4335, 2
    %v4337 = vadd.f32 %v4335, %v4336
    %v4338 = vrot.slane %v4337, 1
    %v4339 = vadd.f32 %v4337, %v4338
    %v4340 = vadd.f32 %v3995, %v4014
    %v4341 = vrot.slane %v4340, 4
    %v4342 = vadd.f32 %v4340, %v4341
    %v4343 = vrot.slane %v4342, 2
    %v4344 = vadd.f32 %v4342, %v4343
    %v4345 = vrot.slane %v4344, 1
    %v4346 = vadd.f32 %v4344, %v4345
    %v4347 = vadd.f32 %v3996, %v4015
    %v4348 = vrot.slane %v4347, 4
    %v4349 = vadd.f32 %v4347, %v4348
    %v4350 = vrot.slane %v4349, 2
    %v4351 = vadd.f32 %v4349, %v4350
    %v4352 = vrot.slane %v4351, 1
    %v4353 = vadd.f32 %v4351, %v4352
    %v4354 = vsel %vm1925, %v3997, 0.0
    %v4355 = vsel %vm1925, %v4016, 0.0
    %v4356 = vadd.f32 %v4354, %v4355
    %v4357 = vrot.slane %v4356, 4
    %v4358 = vadd.f32 %v4356, %v4357
    %v4359 = vrot.slane %v4358, 2
    %v4360 = vadd.f32 %v4358, %v4359
    %v4361 = vrot.slane %v4360, 1
    %v4362 = vadd.f32 %v4360, %v4361
    %v4363 = vadd.f32 %v4017, %v4036
    %v4364 = vrot.slane %v4363, 4
    %v4365 = vadd.f32 %v4363, %v4364
    %v4366 = vrot.slane %v4365, 2
    %v4367 = vadd.f32 %v4365, %v4366
    %v4368 = vrot.slane %v4367, 1
    %v4369 = vadd.f32 %v4367, %v4368
    %v4370 = vadd.f32 %v4018, %v4037
    %v4371 = vrot.slane %v4370, 4
    %v4372 = vadd.f32 %v4370, %v4371
    %v4373 = vrot.slane %v4372, 2
    %v4374 = vadd.f32 %v4372, %v4373
    %v4375 = vrot.slane %v4374, 1
    %v4376 = vadd.f32 %v4374, %v4375
    %v4377 = vadd.f32 %v4019, %v4038
    %v4378 = vrot.slane %v4377, 4
    %v4379 = vadd.f32 %v4377, %v4378
    %v4380 = vrot.slane %v4379, 2
    %v4381 = vadd.f32 %v4379, %v4380
    %v4382 = vrot.slane %v4381, 1
    %v4383 = vadd.f32 %v4381, %v4382
    %v4384 = vadd.f32 %v4020, %v4039
    %v4385 = vrot.slane %v4384, 4
    %v4386 = vadd.f32 %v4384, %v4385
    %v4387 = vrot.slane %v4386, 2
    %v4388 = vadd.f32 %v4386, %v4387
    %v4389 = vrot.slane %v4388, 1
    %v4390 = vadd.f32 %v4388, %v4389
    %v4391 = vadd.f32 %v4021, %v4040
    %v4392 = vrot.slane %v4391, 4
    %v4393 = vadd.f32 %v4391, %v4392
    %v4394 = vrot.slane %v4393, 2
    %v4395 = vadd.f32 %v4393, %v4394
    %v4396 = vrot.slane %v4395, 1
    %v4397 = vadd.f32 %v4395, %v4396
    %v4398 = vadd.f32 %v4022, %v4041
    %v4399 = vrot.slane %v4398, 4
    %v4400 = vadd.f32 %v4398, %v4399
    %v4401 = vrot.slane %v4400, 2
    %v4402 = vadd.f32 %v4400, %v4401
    %v4403 = vrot.slane %v4402, 1
    %v4404 = vadd.f32 %v4402, %v4403
    %v4405 = vadd.f32 %v4023, %v4042
    %v4406 = vrot.slane %v4405, 4
    %v4407 = vadd.f32 %v4405, %v4406
    %v4408 = vrot.slane %v4407, 2
    %v4409 = vadd.f32 %v4407, %v4408
    %v4410 = vrot.slane %v4409, 1
    %v4411 = vadd.f32 %v4409, %v4410
    %v4412 = vadd.f32 %v4024, %v4043
    %v4413 = vrot.slane %v4412, 4
    %v4414 = vadd.f32 %v4412, %v4413
    %v4415 = vrot.slane %v4414, 2
    %v4416 = vadd.f32 %v4414, %v4415
    %v4417 = vrot.slane %v4416, 1
    %v4418 = vadd.f32 %v4416, %v4417
    %v4419 = vadd.f32 %v4025, %v4044
    %v4420 = vrot.slane %v4419, 4
    %v4421 = vadd.f32 %v4419, %v4420
    %v4422 = vrot.slane %v4421, 2
    %v4423 = vadd.f32 %v4421, %v4422
    %v4424 = vrot.slane %v4423, 1
    %v4425 = vadd.f32 %v4423, %v4424
    %v4426 = vadd.f32 %v4026, %v4045
    %v4427 = vrot.slane %v4426, 4
    %v4428 = vadd.f32 %v4426, %v4427
    %v4429 = vrot.slane %v4428, 2
    %v4430 = vadd.f32 %v4428, %v4429
    %v4431 = vrot.slane %v4430, 1
    %v4432 = vadd.f32 %v4430, %v4431
    %v4433 = vadd.f32 %v4027, %v4046
    %v4434 = vrot.slane %v4433, 4
    %v4435 = vadd.f32 %v4433, %v4434
    %v4436 = vrot.slane %v4435, 2
    %v4437 = vadd.f32 %v4435, %v4436
    %v4438 = vrot.slane %v4437, 1
    %v4439 = vadd.f32 %v4437, %v4438
    %v4440 = vadd.f32 %v4028, %v4047
    %v4441 = vrot.slane %v4440, 4
    %v4442 = vadd.f32 %v4440, %v4441
    %v4443 = vrot.slane %v4442, 2
    %v4444 = vadd.f32 %v4442, %v4443
    %v4445 = vrot.slane %v4444, 1
    %v4446 = vadd.f32 %v4444, %v4445
    %v4447 = vadd.f32 %v4029, %v4048
    %v4448 = vrot.slane %v4447, 4
    %v4449 = vadd.f32 %v4447, %v4448
    %v4450 = vrot.slane %v4449, 2
    %v4451 = vadd.f32 %v4449, %v4450
    %v4452 = vrot.slane %v4451, 1
    %v4453 = vadd.f32 %v4451, %v4452
    %v4454 = vadd.f32 %v4030, %v4049
    %v4455 = vrot.slane %v4454, 4
    %v4456 = vadd.f32 %v4454, %v4455
    %v4457 = vrot.slane %v4456, 2
    %v4458 = vadd.f32 %v4456, %v4457
    %v4459 = vrot.slane %v4458, 1
    %v4460 = vadd.f32 %v4458, %v4459
    %v4461 = vadd.f32 %v4031, %v4050
    %v4462 = vrot.slane %v4461, 4
    %v4463 = vadd.f32 %v4461, %v4462
    %v4464 = vrot.slane %v4463, 2
    %v4465 = vadd.f32 %v4463, %v4464
    %v4466 = vrot.slane %v4465, 1
    %v4467 = vadd.f32 %v4465, %v4466
    %v4468 = vadd.f32 %v4032, %v4051
    %v4469 = vrot.slane %v4468, 4
    %v4470 = vadd.f32 %v4468, %v4469
    %v4471 = vrot.slane %v4470, 2
    %v4472 = vadd.f32 %v4470, %v4471
    %v4473 = vrot.slane %v4472, 1
    %v4474 = vadd.f32 %v4472, %v4473
    %v4475 = vadd.f32 %v4033, %v4052
    %v4476 = vrot.slane %v4475, 4
    %v4477 = vadd.f32 %v4475, %v4476
    %v4478 = vrot.slane %v4477, 2
    %v4479 = vadd.f32 %v4477, %v4478
    %v4480 = vrot.slane %v4479, 1
    %v4481 = vadd.f32 %v4479, %v4480
    %v4482 = vadd.f32 %v4034, %v4053
    %v4483 = vrot.slane %v4482, 4
    %v4484 = vadd.f32 %v4482, %v4483
    %v4485 = vrot.slane %v4484, 2
    %v4486 = vadd.f32 %v4484, %v4485
    %v4487 = vrot.slane %v4486, 1
    %v4488 = vadd.f32 %v4486, %v4487
    %v4489 = vsel %vm1925, %v4035, 0.0
    %v4490 = vsel %vm1925, %v4054, 0.0
    %v4491 = vadd.f32 %v4489, %v4490
    %v4492 = vrot.slane %v4491, 4
    %v4493 = vadd.f32 %v4491, %v4492
    %v4494 = vrot.slane %v4493, 2
    %v4495 = vadd.f32 %v4493, %v4494
    %v4496 = vrot.slane %v4495, 1
    %v4497 = vadd.f32 %v4495, %v4496
    %v4498 = vadd.f32 %v4055, %v4074
    %v4499 = vrot.slane %v4498, 4
    %v4500 = vadd.f32 %v4498, %v4499
    %v4501 = vrot.slane %v4500, 2
    %v4502 = vadd.f32 %v4500, %v4501
    %v4503 = vrot.slane %v4502, 1
    %v4504 = vadd.f32 %v4502, %v4503
    %v4505 = vadd.f32 %v4056, %v4075
    %v4506 = vrot.slane %v4505, 4
    %v4507 = vadd.f32 %v4505, %v4506
    %v4508 = vrot.slane %v4507, 2
    %v4509 = vadd.f32 %v4507, %v4508
    %v4510 = vrot.slane %v4509, 1
    %v4511 = vadd.f32 %v4509, %v4510
    %v4512 = vadd.f32 %v4057, %v4076
    %v4513 = vrot.slane %v4512, 4
    %v4514 = vadd.f32 %v4512, %v4513
    %v4515 = vrot.slane %v4514, 2
    %v4516 = vadd.f32 %v4514, %v4515
    %v4517 = vrot.slane %v4516, 1
    %v4518 = vadd.f32 %v4516, %v4517
    %v4519 = vadd.f32 %v4058, %v4077
    %v4520 = vrot.slane %v4519, 4
    %v4521 = vadd.f32 %v4519, %v4520
    %v4522 = vrot.slane %v4521, 2
    %v4523 = vadd.f32 %v4521, %v4522
    %v4524 = vrot.slane %v4523, 1
    %v4525 = vadd.f32 %v4523, %v4524
    %v4526 = vadd.f32 %v4059, %v4078
    %v4527 = vrot.slane %v4526, 4
    %v4528 = vadd.f32 %v4526, %v4527
    %v4529 = vrot.slane %v4528, 2
    %v4530 = vadd.f32 %v4528, %v4529
    %v4531 = vrot.slane %v4530, 1
    %v4532 = vadd.f32 %v4530, %v4531
    %v4533 = vadd.f32 %v4060, %v4079
    %v4534 = vrot.slane %v4533, 4
    %v4535 = vadd.f32 %v4533, %v4534
    %v4536 = vrot.slane %v4535, 2
    %v4537 = vadd.f32 %v4535, %v4536
    %v4538 = vrot.slane %v4537, 1
    %v4539 = vadd.f32 %v4537, %v4538
    %v4540 = vadd.f32 %v4061, %v4080
    %v4541 = vrot.slane %v4540, 4
    %v4542 = vadd.f32 %v4540, %v4541
    %v4543 = vrot.slane %v4542, 2
    %v4544 = vadd.f32 %v4542, %v4543
    %v4545 = vrot.slane %v4544, 1
    %v4546 = vadd.f32 %v4544, %v4545
    %v4547 = vadd.f32 %v4062, %v4081
    %v4548 = vrot.slane %v4547, 4
    %v4549 = vadd.f32 %v4547, %v4548
    %v4550 = vrot.slane %v4549, 2
    %v4551 = vadd.f32 %v4549, %v4550
    %v4552 = vrot.slane %v4551, 1
    %v4553 = vadd.f32 %v4551, %v4552
    %v4554 = vadd.f32 %v4063, %v4082
    %v4555 = vrot.slane %v4554, 4
    %v4556 = vadd.f32 %v4554, %v4555
    %v4557 = vrot.slane %v4556, 2
    %v4558 = vadd.f32 %v4556, %v4557
    %v4559 = vrot.slane %v4558, 1
    %v4560 = vadd.f32 %v4558, %v4559
    %v4561 = vadd.f32 %v4064, %v4083
    %v4562 = vrot.slane %v4561, 4
    %v4563 = vadd.f32 %v4561, %v4562
    %v4564 = vrot.slane %v4563, 2
    %v4565 = vadd.f32 %v4563, %v4564
    %v4566 = vrot.slane %v4565, 1
    %v4567 = vadd.f32 %v4565, %v4566
    %v4568 = vadd.f32 %v4065, %v4084
    %v4569 = vrot.slane %v4568, 4
    %v4570 = vadd.f32 %v4568, %v4569
    %v4571 = vrot.slane %v4570, 2
    %v4572 = vadd.f32 %v4570, %v4571
    %v4573 = vrot.slane %v4572, 1
    %v4574 = vadd.f32 %v4572, %v4573
    %v4575 = vadd.f32 %v4066, %v4085
    %v4576 = vrot.slane %v4575, 4
    %v4577 = vadd.f32 %v4575, %v4576
    %v4578 = vrot.slane %v4577, 2
    %v4579 = vadd.f32 %v4577, %v4578
    %v4580 = vrot.slane %v4579, 1
    %v4581 = vadd.f32 %v4579, %v4580
    %v4582 = vadd.f32 %v4067, %v4086
    %v4583 = vrot.slane %v4582, 4
    %v4584 = vadd.f32 %v4582, %v4583
    %v4585 = vrot.slane %v4584, 2
    %v4586 = vadd.f32 %v4584, %v4585
    %v4587 = vrot.slane %v4586, 1
    %v4588 = vadd.f32 %v4586, %v4587
    %v4589 = vadd.f32 %v4068, %v4087
    %v4590 = vrot.slane %v4589, 4
    %v4591 = vadd.f32 %v4589, %v4590
    %v4592 = vrot.slane %v4591, 2
    %v4593 = vadd.f32 %v4591, %v4592
    %v4594 = vrot.slane %v4593, 1
    %v4595 = vadd.f32 %v4593, %v4594
    %v4596 = vadd.f32 %v4069, %v4088
    %v4597 = vrot.slane %v4596, 4
    %v4598 = vadd.f32 %v4596, %v4597
    %v4599 = vrot.slane %v4598, 2
    %v4600 = vadd.f32 %v4598, %v4599
    %v4601 = vrot.slane %v4600, 1
    %v4602 = vadd.f32 %v4600, %v4601
    %v4603 = vadd.f32 %v4070, %v4089
    %v4604 = vrot.slane %v4603, 4
    %v4605 = vadd.f32 %v4603, %v4604
    %v4606 = vrot.slane %v4605, 2
    %v4607 = vadd.f32 %v4605, %v4606
    %v4608 = vrot.slane %v4607, 1
    %v4609 = vadd.f32 %v4607, %v4608
    %v4610 = vadd.f32 %v4071, %v4090
    %v4611 = vrot.slane %v4610, 4
    %v4612 = vadd.f32 %v4610, %v4611
    %v4613 = vrot.slane %v4612, 2
    %v4614 = vadd.f32 %v4612, %v4613
    %v4615 = vrot.slane %v4614, 1
    %v4616 = vadd.f32 %v4614, %v4615
    %v4617 = vadd.f32 %v4072, %v4091
    %v4618 = vrot.slane %v4617, 4
    %v4619 = vadd.f32 %v4617, %v4618
    %v4620 = vrot.slane %v4619, 2
    %v4621 = vadd.f32 %v4619, %v4620
    %v4622 = vrot.slane %v4621, 1
    %v4623 = vadd.f32 %v4621, %v4622
    %v4624 = vsel %vm1925, %v4073, 0.0
    %v4625 = vsel %vm1925, %v4092, 0.0
    %v4626 = vadd.f32 %v4624, %v4625
    %v4627 = vrot.slane %v4626, 4
    %v4628 = vadd.f32 %v4626, %v4627
    %v4629 = vrot.slane %v4628, 2
    %v4630 = vadd.f32 %v4628, %v4629
    %v4631 = vrot.slane %v4630, 1
    %v4632 = vadd.f32 %v4630, %v4631
    %v4633 = vadd.f32 %v2399, %v4099
    %v4634 = vadd.f32 %v2406, %v4106
    %v4635 = vadd.f32 %v2413, %v4113
    %v4636 = vadd.f32 %v2420, %v4120
    %v4637 = vadd.f32 %v2427, %v4127
    %v4638 = vadd.f32 %v2434, %v4134
    %v4639 = vadd.f32 %v2441, %v4141
    %v4640 = vadd.f32 %v2448, %v4148
    %v4641 = vadd.f32 %v2455, %v4155
    %v4642 = vadd.f32 %v2462, %v4162
    %v4643 = vadd.f32 %v2469, %v4169
    %v4644 = vadd.f32 %v2476, %v4176
    %v4645 = vadd.f32 %v2483, %v4183
    %v4646 = vadd.f32 %v2490, %v4190
    %v4647 = vadd.f32 %v2497, %v4197
    %v4648 = vadd.f32 %v2504, %v4204
    %v4649 = vadd.f32 %v2511, %v4211
    %v4650 = vadd.f32 %v2518, %v4218
    %v4651 = vadd.f32 %v2527, %v4227
    %v4652 = vadd.f32 %v2534, %v4234
    %v4653 = vadd.f32 %v2541, %v4241
    %v4654 = vadd.f32 %v2548, %v4248
    %v4655 = vadd.f32 %v2555, %v4255
    %v4656 = vadd.f32 %v2562, %v4262
    %v4657 = vadd.f32 %v2569, %v4269
    %v4658 = vadd.f32 %v2576, %v4276
    %v4659 = vadd.f32 %v2583, %v4283
    %v4660 = vadd.f32 %v2590, %v4290
    %v4661 = vadd.f32 %v2597, %v4297
    %v4662 = vadd.f32 %v2604, %v4304
    %v4663 = vadd.f32 %v2611, %v4311
    %v4664 = vadd.f32 %v2618, %v4318
    %v4665 = vadd.f32 %v2625, %v4325
    %v4666 = vadd.f32 %v2632, %v4332
    %v4667 = vadd.f32 %v2639, %v4339
    %v4668 = vadd.f32 %v2646, %v4346
    %v4669 = vadd.f32 %v2653, %v4353
    %v4670 = vadd.f32 %v2662, %v4362
    %v4671 = vadd.f32 %v2669, %v4369
    %v4672 = vadd.f32 %v2676, %v4376
    %v4673 = vadd.f32 %v2683, %v4383
    %v4674 = vadd.f32 %v2690, %v4390
    %v4675 = vadd.f32 %v2697, %v4397
    %v4676 = vadd.f32 %v2704, %v4404
    %v4677 = vadd.f32 %v2711, %v4411
    %v4678 = vadd.f32 %v2718, %v4418
    %v4679 = vadd.f32 %v2725, %v4425
    %v4680 = vadd.f32 %v2732, %v4432
    %v4681 = vadd.f32 %v2739, %v4439
    %v4682 = vadd.f32 %v2746, %v4446
    %v4683 = vadd.f32 %v2753, %v4453
    %v4684 = vadd.f32 %v2760, %v4460
    %v4685 = vadd.f32 %v2767, %v4467
    %v4686 = vadd.f32 %v2774, %v4474
    %v4687 = vadd.f32 %v2781, %v4481
    %v4688 = vadd.f32 %v2788, %v4488
    %v4689 = vadd.f32 %v2797, %v4497
    %v4690 = vadd.f32 %v2804, %v4504
    %v4691 = vadd.f32 %v2811, %v4511
    %v4692 = vadd.f32 %v2818, %v4518
    %v4693 = vadd.f32 %v2825, %v4525
    %v4694 = vadd.f32 %v2832, %v4532
    %v4695 = vadd.f32 %v2839, %v4539
    %v4696 = vadd.f32 %v2846, %v4546
    %v4697 = vadd.f32 %v2853, %v4553
    %v4698 = vadd.f32 %v2860, %v4560
    %v4699 = vadd.f32 %v2867, %v4567
    %v4700 = vadd.f32 %v2874, %v4574
    %v4701 = vadd.f32 %v2881, %v4581
    %v4702 = vadd.f32 %v2888, %v4588
    %v4703 = vadd.f32 %v2895, %v4595
    %v4704 = vadd.f32 %v2902, %v4602
    %v4705 = vadd.f32 %v2909, %v4609
    %v4706 = vadd.f32 %v2916, %v4616
    %v4707 = vadd.f32 %v2923, %v4623
    %v4708 = vadd.f32 %v2932, %v4632
    %v4709 = vmax.f32 %v4633, %v4634
    %v4710 = vmax.f32 %v4709, %v4635
    %v4711 = vmax.f32 %v4710, %v4636
    %v4712 = vmax.f32 %v4711, %v4637
    %v4713 = vmax.f32 %v4712, %v4638
    %v4714 = vmax.f32 %v4713, %v4639
    %v4715 = vmax.f32 %v4714, %v4640
    %v4716 = vmax.f32 %v4715, %v4641
    %v4717 = vmax.f32 %v4716, %v4642
    %v4718 = vmax.f32 %v4717, %v4643
    %v4719 = vmax.f32 %v4718, %v4644
    %v4720 = vmax.f32 %v4719, %v4645
    %v4721 = vmax.f32 %v4720, %v4646
    %v4722 = vmax.f32 %v4721, %v4647
    %v4723 = vmax.f32 %v4722, %v4648
    %v4724 = vmax.f32 %v4723, %v4649
    %v4725 = vmax.f32 %v4724, %v4650
    %v4726 = vsel %vm1925, %v4651, -inf
    %v4727 = vmax.f32 %v4725, %v4726
    %4728 = vmax.xlane.f32.xlu0 %v4727
    %v4729 = vpop.xlane.xlu0 %4728
    %v4730 = vmax.f32 %v4652, %v4653
    %v4731 = vmax.f32 %v4730, %v4654
    %v4732 = vmax.f32 %v4731, %v4655
    %v4733 = vmax.f32 %v4732, %v4656
    %v4734 = vmax.f32 %v4733, %v4657
    %v4735 = vmax.f32 %v4734, %v4658
    %v4736 = vmax.f32 %v4735, %v4659
    %v4737 = vmax.f32 %v4736, %v4660
    %v4738 = vmax.f32 %v4737, %v4661
    %v4739 = vmax.f32 %v4738, %v4662
    %v4740 = vmax.f32 %v4739, %v4663
    %v4741 = vmax.f32 %v4740, %v4664
    %v4742 = vmax.f32 %v4741, %v4665
    %v4743 = vmax.f32 %v4742, %v4666
    %v4744 = vmax.f32 %v4743, %v4667
    %v4745 = vmax.f32 %v4744, %v4668
    %v4746 = vmax.f32 %v4745, %v4669
    %v4747 = vsel %vm1925, %v4670, -inf
    %v4748 = vmax.f32 %v4746, %v4747
    %4749 = vmax.xlane.f32.xlu0 %v4748
    %v4750 = vpop.xlane.xlu0 %4749
    %v4751 = vmax.f32 %v4671, %v4672
    %v4752 = vmax.f32 %v4751, %v4673
    %v4753 = vmax.f32 %v4752, %v4674
    %v4754 = vmax.f32 %v4753, %v4675
    %v4755 = vmax.f32 %v4754, %v4676
    %v4756 = vmax.f32 %v4755, %v4677
    %v4757 = vmax.f32 %v4756, %v4678
    %v4758 = vmax.f32 %v4757, %v4679
    %v4759 = vmax.f32 %v4758, %v4680
    %v4760 = vmax.f32 %v4759, %v4681
    %v4761 = vmax.f32 %v4760, %v4682
    %v4762 = vmax.f32 %v4761, %v4683
    %v4763 = vmax.f32 %v4762, %v4684
    %v4764 = vmax.f32 %v4763, %v4685
    %v4765 = vmax.f32 %v4764, %v4686
    %v4766 = vmax.f32 %v4765, %v4687
    %v4767 = vmax.f32 %v4766, %v4688
    %v4768 = vsel %vm1925, %v4689, -inf
    %v4769 = vmax.f32 %v4767, %v4768
    %4770 = vmax.xlane.f32.xlu0 %v4769
    %v4771 = vpop.xlane.xlu0 %4770
    %v4772 = vmax.f32 %v4690, %v4691
    %v4773 = vmax.f32 %v4772, %v4692
    %v4774 = vmax.f32 %v4773, %v4693
    %v4775 = vmax.f32 %v4774, %v4694
    %v4776 = vmax.f32 %v4775, %v4695
    %v4777 = vmax.f32 %v4776, %v4696
    %v4778 = vmax.f32 %v4777, %v4697
    %v4779 = vmax.f32 %v4778, %v4698
    %v4780 = vmax.f32 %v4779, %v4699
    %v4781 = vmax.f32 %v4780, %v4700
    %v4782 = vmax.f32 %v4781, %v4701
    %v4783 = vmax.f32 %v4782, %v4702
    %v4784 = vmax.f32 %v4783, %v4703
    %v4785 = vmax.f32 %v4784, %v4704
    %v4786 = vmax.f32 %v4785, %v4705
    %v4787 = vmax.f32 %v4786, %v4706
    %v4788 = vmax.f32 %v4787, %v4707
    %v4789 = vsel %vm1925, %v4708, -inf
    %v4790 = vmax.f32 %v4788, %v4789
    %4791 = vmax.xlane.f32.xlu0 %v4790
    %v4792 = vpop.xlane.xlu0 %4791
    %v4793 = vsub.f32 %v4633, %v4729
    %v4794 = vsub.f32 %v4634, %v4729
    %v4795 = vsub.f32 %v4635, %v4729
    %v4796 = vsub.f32 %v4636, %v4729
    %v4797 = vsub.f32 %v4637, %v4729
    %v4798 = vsub.f32 %v4638, %v4729
    %v4799 = vsub.f32 %v4639, %v4729
    %v4800 = vsub.f32 %v4640, %v4729
    %v4801 = vsub.f32 %v4641, %v4729
    %v4802 = vsub.f32 %v4642, %v4729
    %v4803 = vsub.f32 %v4643, %v4729
    %v4804 = vsub.f32 %v4644, %v4729
    %v4805 = vsub.f32 %v4645, %v4729
    %v4806 = vsub.f32 %v4646, %v4729
    %v4807 = vsub.f32 %v4647, %v4729
    %v4808 = vsub.f32 %v4648, %v4729
    %v4809 = vsub.f32 %v4649, %v4729
    %v4810 = vsub.f32 %v4650, %v4729
    %v4811 = vsub.f32 %v4651, %v4729
    %v4812 = vsub.f32 %v4652, %v4750
    %v4813 = vsub.f32 %v4653, %v4750
    %v4814 = vsub.f32 %v4654, %v4750
    %v4815 = vsub.f32 %v4655, %v4750
    %v4816 = vsub.f32 %v4656, %v4750
    %v4817 = vsub.f32 %v4657, %v4750
    %v4818 = vsub.f32 %v4658, %v4750
    %v4819 = vsub.f32 %v4659, %v4750
    %v4820 = vsub.f32 %v4660, %v4750
    %v4821 = vsub.f32 %v4661, %v4750
    %v4822 = vsub.f32 %v4662, %v4750
    %v4823 = vsub.f32 %v4663, %v4750
    %v4824 = vsub.f32 %v4664, %v4750
    %v4825 = vsub.f32 %v4665, %v4750
    %v4826 = vsub.f32 %v4666, %v4750
    %v4827 = vsub.f32 %v4667, %v4750
    %v4828 = vsub.f32 %v4668, %v4750
    %v4829 = vsub.f32 %v4669, %v4750
    %v4830 = vsub.f32 %v4670, %v4750
    %v4831 = vsub.f32 %v4671, %v4771
    %v4832 = vsub.f32 %v4672, %v4771
    %v4833 = vsub.f32 %v4673, %v4771
    %v4834 = vsub.f32 %v4674, %v4771
    %v4835 = vsub.f32 %v4675, %v4771
    %v4836 = vsub.f32 %v4676, %v4771
    %v4837 = vsub.f32 %v4677, %v4771
    %v4838 = vsub.f32 %v4678, %v4771
    %v4839 = vsub.f32 %v4679, %v4771
    %v4840 = vsub.f32 %v4680, %v4771
    %v4841 = vsub.f32 %v4681, %v4771
    %v4842 = vsub.f32 %v4682, %v4771
    %v4843 = vsub.f32 %v4683, %v4771
    %v4844 = vsub.f32 %v4684, %v4771
    %v4845 = vsub.f32 %v4685, %v4771
    %v4846 = vsub.f32 %v4686, %v4771
    %v4847 = vsub.f32 %v4687, %v4771
    %v4848 = vsub.f32 %v4688, %v4771
    %v4849 = vsub.f32 %v4689, %v4771
    %v4850 = vsub.f32 %v4690, %v4792
    %v4851 = vsub.f32 %v4691, %v4792
    %v4852 = vsub.f32 %v4692, %v4792
    %v4853 = vsub.f32 %v4693, %v4792
    %v4854 = vsub.f32 %v4694, %v4792
    %v4855 = vsub.f32 %v4695, %v4792
    %v4856 = vsub.f32 %v4696, %v4792
    %v4857 = vsub.f32 %v4697, %v4792
    %v4858 = vsub.f32 %v4698, %v4792
    %v4859 = vsub.f32 %v4699, %v4792
    %v4860 = vsub.f32 %v4700, %v4792
    %v4861 = vsub.f32 %v4701, %v4792
    %v4862 = vsub.f32 %v4702, %v4792
    %v4863 = vsub.f32 %v4703, %v4792
    %v4864 = vsub.f32 %v4704, %v4792
    %v4865 = vsub.f32 %v4705, %v4792
    %v4866 = vsub.f32 %v4706, %v4792
    %v4867 = vsub.f32 %v4707, %v4792
    %v4868 = vsub.f32 %v4708, %v4792
    %v4869 = vmul.f32 %v4793, 1.442695
    %v4870 = vpow.pop %v4869
    %v4871 = vmul.f32 %v4794, 1.442695
    %v4872 = vpow.pop %v4871
    %v4873 = vmul.f32 %v4795, 1.442695
    %v4874 = vpow.pop %v4873
    %v4875 = vmul.f32 %v4796, 1.442695
    %v4876 = vpow.pop %v4875
    %v4877 = vmul.f32 %v4797, 1.442695
    %v4878 = vpow.pop %v4877
    %v4879 = vmul.f32 %v4798, 1.442695
    %v4880 = vpow.pop %v4879
    %v4881 = vmul.f32 %v4799, 1.442695
    %v4882 = vpow.pop %v4881
    %v4883 = vmul.f32 %v4800, 1.442695
    %v4884 = vpow.pop %v4883
    %v4885 = vmul.f32 %v4801, 1.442695
    %v4886 = vpow.pop %v4885
    %v4887 = vmul.f32 %v4802, 1.442695
    %v4888 = vpow.pop %v4887
    %v4889 = vmul.f32 %v4803, 1.442695
    %v4890 = vpow.pop %v4889
    %v4891 = vmul.f32 %v4804, 1.442695
    %v4892 = vpow.pop %v4891
    %v4893 = vmul.f32 %v4805, 1.442695
    %v4894 = vpow.pop %v4893
    %v4895 = vmul.f32 %v4806, 1.442695
    %v4896 = vpow.pop %v4895
    %v4897 = vmul.f32 %v4807, 1.442695
    %v4898 = vpow.pop %v4897
    %v4899 = vmul.f32 %v4808, 1.442695
    %v4900 = vpow.pop %v4899
    %v4901 = vmul.f32 %v4809, 1.442695
    %v4902 = vpow.pop %v4901
    %v4903 = vmul.f32 %v4810, 1.442695
    %v4904 = vpow.pop %v4903
    %v4905 = vmul.f32 %v4811, 1.442695
    %v4906 = vpow.pop %v4905
    %v4907 = vmul.f32 %v4812, 1.442695
    %v4908 = vpow.pop %v4907
    %v4909 = vmul.f32 %v4813, 1.442695
    %v4910 = vpow.pop %v4909
    %v4911 = vmul.f32 %v4814, 1.442695
    %v4912 = vpow.pop %v4911
    %v4913 = vmul.f32 %v4815, 1.442695
    %v4914 = vpow.pop %v4913
    %v4915 = vmul.f32 %v4816, 1.442695
    %v4916 = vpow.pop %v4915
    %v4917 = vmul.f32 %v4817, 1.442695
    %v4918 = vpow.pop %v4917
    %v4919 = vmul.f32 %v4818, 1.442695
    %v4920 = vpow.pop %v4919
    %v4921 = vmul.f32 %v4819, 1.442695
    %v4922 = vpow.pop %v4921
    %v4923 = vmul.f32 %v4820, 1.442695
    %v4924 = vpow.pop %v4923
    %v4925 = vmul.f32 %v4821, 1.442695
    %v4926 = vpow.pop %v4925
    %v4927 = vmul.f32 %v4822, 1.442695
    %v4928 = vpow.pop %v4927
    %v4929 = vmul.f32 %v4823, 1.442695
    %v4930 = vpow.pop %v4929
    %v4931 = vmul.f32 %v4824, 1.442695
    %v4932 = vpow.pop %v4931
    %v4933 = vmul.f32 %v4825, 1.442695
    %v4934 = vpow.pop %v4933
    %v4935 = vmul.f32 %v4826, 1.442695
    %v4936 = vpow.pop %v4935
    %v4937 = vmul.f32 %v4827, 1.442695
    %v4938 = vpow.pop %v4937
    %v4939 = vmul.f32 %v4828, 1.442695
    %v4940 = vpow.pop %v4939
    %v4941 = vmul.f32 %v4829, 1.442695
    %v4942 = vpow.pop %v4941
    %v4943 = vmul.f32 %v4830, 1.442695
    %v4944 = vpow.pop %v4943
    %v4945 = vmul.f32 %v4831, 1.442695
    %v4946 = vpow.pop %v4945
    %v4947 = vmul.f32 %v4832, 1.442695
    %v4948 = vpow.pop %v4947
    %v4949 = vmul.f32 %v4833, 1.442695
    %v4950 = vpow.pop %v4949
    %v4951 = vmul.f32 %v4834, 1.442695
    %v4952 = vpow.pop %v4951
    %v4953 = vmul.f32 %v4835, 1.442695
    %v4954 = vpow.pop %v4953
    %v4955 = vmul.f32 %v4836, 1.442695
    %v4956 = vpow.pop %v4955
    %v4957 = vmul.f32 %v4837, 1.442695
    %v4958 = vpow.pop %v4957
    %v4959 = vmul.f32 %v4838, 1.442695
    %v4960 = vpow.pop %v4959
    %v4961 = vmul.f32 %v4839, 1.442695
    %v4962 = vpow.pop %v4961
    %v4963 = vmul.f32 %v4840, 1.442695
    %v4964 = vpow.pop %v4963
    %v4965 = vmul.f32 %v4841, 1.442695
    %v4966 = vpow.pop %v4965
    %v4967 = vmul.f32 %v4842, 1.442695
    %v4968 = vpow.pop %v4967
    %v4969 = vmul.f32 %v4843, 1.442695
    %v4970 = vpow.pop %v4969
    %v4971 = vmul.f32 %v4844, 1.442695
    %v4972 = vpow.pop %v4971
    %v4973 = vmul.f32 %v4845, 1.442695
    %v4974 = vpow.pop %v4973
    %v4975 = vmul.f32 %v4846, 1.442695
    %v4976 = vpow.pop %v4975
    %v4977 = vmul.f32 %v4847, 1.442695
    %v4978 = vpow.pop %v4977
    %v4979 = vmul.f32 %v4848, 1.442695
    %v4980 = vpow.pop %v4979
    %v4981 = vmul.f32 %v4849, 1.442695
    %v4982 = vpow.pop %v4981
    %v4983 = vmul.f32 %v4850, 1.442695
    %v4984 = vpow.pop %v4983
    %v4985 = vmul.f32 %v4851, 1.442695
    %v4986 = vpow.pop %v4985
    %v4987 = vmul.f32 %v4852, 1.442695
    %v4988 = vpow.pop %v4987
    %v4989 = vmul.f32 %v4853, 1.442695
    %v4990 = vpow.pop %v4989
    %v4991 = vmul.f32 %v4854, 1.442695
    %v4992 = vpow.pop %v4991
    %v4993 = vmul.f32 %v4855, 1.442695
    %v4994 = vpow.pop %v4993
    %v4995 = vmul.f32 %v4856, 1.442695
    %v4996 = vpow.pop %v4995
    %v4997 = vmul.f32 %v4857, 1.442695
    %v4998 = vpow.pop %v4997
    %v4999 = vmul.f32 %v4858, 1.442695
    %v5000 = vpow.pop %v4999
    %v5001 = vmul.f32 %v4859, 1.442695
    %v5002 = vpow.pop %v5001
    %v5003 = vmul.f32 %v4860, 1.442695
    %v5004 = vpow.pop %v5003
    %v5005 = vmul.f32 %v4861, 1.442695
    %v5006 = vpow.pop %v5005
    %v5007 = vmul.f32 %v4862, 1.442695
    %v5008 = vpow.pop %v5007
    %v5009 = vmul.f32 %v4863, 1.442695
    %v5010 = vpow.pop %v5009
    %v5011 = vmul.f32 %v4864, 1.442695
    %v5012 = vpow.pop %v5011
    %v5013 = vmul.f32 %v4865, 1.442695
    %v5014 = vpow.pop %v5013
    %v5015 = vmul.f32 %v4866, 1.442695
    %v5016 = vpow.pop %v5015
    %v5017 = vmul.f32 %v4867, 1.442695
    %v5018 = vpow.pop %v5017
    %v5019 = vmul.f32 %v4868, 1.442695
    %v5020 = vpow.pop %v5019
    %v5021 = vadd.f32 %v4870, %v4872
    %v5022 = vadd.f32 %v5021, %v4874
    %v5023 = vadd.f32 %v5022, %v4876
    %v5024 = vadd.f32 %v5023, %v4878
    %v5025 = vadd.f32 %v5024, %v4880
    %v5026 = vadd.f32 %v5025, %v4882
    %v5027 = vadd.f32 %v5026, %v4884
    %v5028 = vadd.f32 %v5027, %v4886
    %v5029 = vadd.f32 %v5028, %v4888
    %v5030 = vadd.f32 %v5029, %v4890
    %v5031 = vadd.f32 %v5030, %v4892
    %v5032 = vadd.f32 %v5031, %v4894
    %v5033 = vadd.f32 %v5032, %v4896
    %v5034 = vadd.f32 %v5033, %v4898
    %v5035 = vadd.f32 %v5034, %v4900
    %v5036 = vadd.f32 %v5035, %v4902
    %v5037 = vadd.f32 %v5036, %v4904
    %v5038 = vsel %vm1925, %v4906, 0.0
    %v5039 = vadd.f32 %v5037, %v5038
    %5040 = vadd.xlane.f32.xlu0 %v5039
    %v5041 = vpop.xlane.xlu0 %5040
    %v5042 = vadd.f32 %v4908, %v4910
    %v5043 = vadd.f32 %v5042, %v4912
    %v5044 = vadd.f32 %v5043, %v4914
    %v5045 = vadd.f32 %v5044, %v4916
    %v5046 = vadd.f32 %v5045, %v4918
    %v5047 = vadd.f32 %v5046, %v4920
    %v5048 = vadd.f32 %v5047, %v4922
    %v5049 = vadd.f32 %v5048, %v4924
    %v5050 = vadd.f32 %v5049, %v4926
    %v5051 = vadd.f32 %v5050, %v4928
    %v5052 = vadd.f32 %v5051, %v4930
    %v5053 = vadd.f32 %v5052, %v4932
    %v5054 = vadd.f32 %v5053, %v4934
    %v5055 = vadd.f32 %v5054, %v4936
    %v5056 = vadd.f32 %v5055, %v4938
    %v5057 = vadd.f32 %v5056, %v4940
    %v5058 = vadd.f32 %v5057, %v4942
    %v5059 = vsel %vm1925, %v4944, 0.0
    %v5060 = vadd.f32 %v5058, %v5059
    %5061 = vadd.xlane.f32.xlu0 %v5060
    %v5062 = vpop.xlane.xlu0 %5061
    %v5063 = vadd.f32 %v4946, %v4948
    %v5064 = vadd.f32 %v5063, %v4950
    %v5065 = vadd.f32 %v5064, %v4952
    %v5066 = vadd.f32 %v5065, %v4954
    %v5067 = vadd.f32 %v5066, %v4956
    %v5068 = vadd.f32 %v5067, %v4958
    %v5069 = vadd.f32 %v5068, %v4960
    %v5070 = vadd.f32 %v5069, %v4962
    %v5071 = vadd.f32 %v5070, %v4964
    %v5072 = vadd.f32 %v5071, %v4966
    %v5073 = vadd.f32 %v5072, %v4968
    %v5074 = vadd.f32 %v5073, %v4970
    %v5075 = vadd.f32 %v5074, %v4972
    %v5076 = vadd.f32 %v5075, %v4974
    %v5077 = vadd.f32 %v5076, %v4976
    %v5078 = vadd.f32 %v5077, %v4978
    %v5079 = vadd.f32 %v5078, %v4980
    %v5080 = vsel %vm1925, %v4982, 0.0
    %v5081 = vadd.f32 %v5079, %v5080
    %5082 = vadd.xlane.f32.xlu0 %v5081
    %v5083 = vpop.xlane.xlu0 %5082
    %v5084 = vadd.f32 %v4984, %v4986
    %v5085 = vadd.f32 %v5084, %v4988
    %v5086 = vadd.f32 %v5085, %v4990
    %v5087 = vadd.f32 %v5086, %v4992
    %v5088 = vadd.f32 %v5087, %v4994
    %v5089 = vadd.f32 %v5088, %v4996
    %v5090 = vadd.f32 %v5089, %v4998
    %v5091 = vadd.f32 %v5090, %v5000
    %v5092 = vadd.f32 %v5091, %v5002
    %v5093 = vadd.f32 %v5092, %v5004
    %v5094 = vadd.f32 %v5093, %v5006
    %v5095 = vadd.f32 %v5094, %v5008
    %v5096 = vadd.f32 %v5095, %v5010
    %v5097 = vadd.f32 %v5096, %v5012
    %v5098 = vadd.f32 %v5097, %v5014
    %v5099 = vadd.f32 %v5098, %v5016
    %v5100 = vadd.f32 %v5099, %v5018
    %v5101 = vsel %vm1925, %v5020, 0.0
    %v5102 = vadd.f32 %v5100, %v5101
    %5103 = vadd.xlane.f32.xlu0 %v5102
    %v5104 = vpop.xlane.xlu0 %5103
    %v5105 = vrcp.pop %v5041
    %v5106 = vmul.f32 %v5041, %v5105
    %v5107 = vsub.f32 1.0, %v5106
    %v5108 = vmul.f32 %v5105, %v5107
    %v5109 = vadd.f32 %v5105, %v5108
    %vm5110 = vweird.f32 %v5041
    %vm5111 = vweird.f32 %v5105
    %vm5112 = vmor %vm5110, %vm5111
    %v5113 = vsel %vm5112, %v5105, %v5109
    %v5114 = vand.u32 2147483647, %v5041
    %vm5115 = vcmp.eq.f32.partialorder %v5114, 8.507059e+37
    %v5116 = vand.u32 %v5041, 2147483648
    %v5117 = vor.u32 1.1754944e-38, %v5116
    %v5118 = vsel %vm5115, %v5117, %v5113
    %v5119 = vmul.f32 1.0, %v5118
    %v5120 = vrcp.pop %v5062
    %v5121 = vmul.f32 %v5062, %v5120
    %v5122 = vsub.f32 1.0, %v5121
    %v5123 = vmul.f32 %v5120, %v5122
    %v5124 = vadd.f32 %v5120, %v5123
    %vm5125 = vweird.f32 %v5062
    %vm5126 = vweird.f32 %v5120
    %vm5127 = vmor %vm5125, %vm5126
    %v5128 = vsel %vm5127, %v5120, %v5124
    %v5129 = vand.u32 2147483647, %v5062
    %vm5130 = vcmp.eq.f32.partialorder %v5129, 8.507059e+37
    %v5131 = vand.u32 %v5062, 2147483648
    %v5132 = vor.u32 1.1754944e-38, %v5131
    %v5133 = vsel %vm5130, %v5132, %v5128
    %v5134 = vmul.f32 1.0, %v5133
    %v5135 = vrcp.pop %v5083
    %v5136 = vmul.f32 %v5083, %v5135
    %v5137 = vsub.f32 1.0, %v5136
    %v5138 = vmul.f32 %v5135, %v5137
    %v5139 = vadd.f32 %v5135, %v5138
    %vm5140 = vweird.f32 %v5083
    %vm5141 = vweird.f32 %v5135
    %vm5142 = vmor %vm5140, %vm5141
    %v5143 = vsel %vm5142, %v5135, %v5139
    %v5144 = vand.u32 2147483647, %v5083
    %vm5145 = vcmp.eq.f32.partialorder %v5144, 8.507059e+37
    %v5146 = vand.u32 %v5083, 2147483648
    %v5147 = vor.u32 1.1754944e-38, %v5146
    %v5148 = vsel %vm5145, %v5147, %v5143
    %v5149 = vmul.f32 1.0, %v5148
    %v5150 = vrcp.pop %v5104
    %v5151 = vmul.f32 %v5104, %v5150
    %v5152 = vsub.f32 1.0, %v5151
    %v5153 = vmul.f32 %v5150, %v5152
    %v5154 = vadd.f32 %v5150, %v5153
    %vm5155 = vweird.f32 %v5104
    %vm5156 = vweird.f32 %v5150
    %vm5157 = vmor %vm5155, %vm5156
    %v5158 = vsel %vm5157, %v5150, %v5154
    %v5159 = vand.u32 2147483647, %v5104
    %vm5160 = vcmp.eq.f32.partialorder %v5159, 8.507059e+37
    %v5161 = vand.u32 %v5104, 2147483648
    %v5162 = vor.u32 1.1754944e-38, %v5161
    %v5163 = vsel %vm5160, %v5162, %v5158
    %v5164 = vmul.f32 1.0, %v5163
    %v5165 = vmul.f32 %v4870, %v5119
    %v5166 = vmul.f32 %v4872, %v5119
    %v5167 = vmul.f32 %v4874, %v5119
    %v5168 = vmul.f32 %v4876, %v5119
    %v5169 = vmul.f32 %v4878, %v5119
    %v5170 = vmul.f32 %v4880, %v5119
    %v5171 = vmul.f32 %v4882, %v5119
    %v5172 = vmul.f32 %v4884, %v5119
    %v5173 = vmul.f32 %v4886, %v5119
    %v5174 = vmul.f32 %v4888, %v5119
    %v5175 = vmul.f32 %v4890, %v5119
    %v5176 = vmul.f32 %v4892, %v5119
    %v5177 = vmul.f32 %v4894, %v5119
    %v5178 = vmul.f32 %v4896, %v5119
    %v5179 = vmul.f32 %v4898, %v5119
    %v5180 = vmul.f32 %v4900, %v5119
    %v5181 = vmul.f32 %v4902, %v5119
    %v5182 = vmul.f32 %v4904, %v5119
    %v5183 = vmul.f32 %v4906, %v5119
    %v5184 = vmul.f32 %v4908, %v5134
    %v5185 = vmul.f32 %v4910, %v5134
    %v5186 = vmul.f32 %v4912, %v5134
    %v5187 = vmul.f32 %v4914, %v5134
    %v5188 = vmul.f32 %v4916, %v5134
    %v5189 = vmul.f32 %v4918, %v5134
    %v5190 = vmul.f32 %v4920, %v5134
    %v5191 = vmul.f32 %v4922, %v5134
    %v5192 = vmul.f32 %v4924, %v5134
    %v5193 = vmul.f32 %v4926, %v5134
    %v5194 = vmul.f32 %v4928, %v5134
    %v5195 = vmul.f32 %v4930, %v5134
    %v5196 = vmul.f32 %v4932, %v5134
    %v5197 = vmul.f32 %v4934, %v5134
    %v5198 = vmul.f32 %v4936, %v5134
    %v5199 = vmul.f32 %v4938, %v5134
    %v5200 = vmul.f32 %v4940, %v5134
    %v5201 = vmul.f32 %v4942, %v5134
    %v5202 = vmul.f32 %v4944, %v5134
    %v5203 = vmul.f32 %v4946, %v5149
    %v5204 = vmul.f32 %v4948, %v5149
    %v5205 = vmul.f32 %v4950, %v5149
    %v5206 = vmul.f32 %v4952, %v5149
    %v5207 = vmul.f32 %v4954, %v5149
    %v5208 = vmul.f32 %v4956, %v5149
    %v5209 = vmul.f32 %v4958, %v5149
    %v5210 = vmul.f32 %v4960, %v5149
    %v5211 = vmul.f32 %v4962, %v5149
    %v5212 = vmul.f32 %v4964, %v5149
    %v5213 = vmul.f32 %v4966, %v5149
    %v5214 = vmul.f32 %v4968, %v5149
    %v5215 = vmul.f32 %v4970, %v5149
    %v5216 = vmul.f32 %v4972, %v5149
    %v5217 = vmul.f32 %v4974, %v5149
    %v5218 = vmul.f32 %v4976, %v5149
    %v5219 = vmul.f32 %v4978, %v5149
    %v5220 = vmul.f32 %v4980, %v5149
    %v5221 = vmul.f32 %v4982, %v5149
    %v5222 = vmul.f32 %v4984, %v5164
    %v5223 = vmul.f32 %v4986, %v5164
    %v5224 = vmul.f32 %v4988, %v5164
    %v5225 = vmul.f32 %v4990, %v5164
    %v5226 = vmul.f32 %v4992, %v5164
    %v5227 = vmul.f32 %v4994, %v5164
    %v5228 = vmul.f32 %v4996, %v5164
    %v5229 = vmul.f32 %v4998, %v5164
    %v5230 = vmul.f32 %v5000, %v5164
    %v5231 = vmul.f32 %v5002, %v5164
    %v5232 = vmul.f32 %v5004, %v5164
    %v5233 = vmul.f32 %v5006, %v5164
    %v5234 = vmul.f32 %v5008, %v5164
    %v5235 = vmul.f32 %v5010, %v5164
    %v5236 = vmul.f32 %v5012, %v5164
    %v5237 = vmul.f32 %v5014, %v5164
    %v5238 = vmul.f32 %v5016, %v5164
    %v5239 = vmul.f32 %v5018, %v5164
    %v5240 = vmul.f32 %v5020, %v5164
    %v5241 = vmul.f32 %v5165, %v1756
    %v5242 = vmul.f32 %v5166, %v1757
    %v5243 = vmul.f32 %v5167, %v1758
    %v5244 = vmul.f32 %v5168, %v1759
    %v5245 = vmul.f32 %v5169, %v1760
    %v5246 = vmul.f32 %v5170, %v1761
    %v5247 = vmul.f32 %v5171, %v1762
    %v5248 = vmul.f32 %v5172, %v1763
    %v5249 = vmul.f32 %v5173, %v1764
    %v5250 = vmul.f32 %v5174, %v1765
    %v5251 = vmul.f32 %v5175, %v1766
    %v5252 = vmul.f32 %v5176, %v1767
    %v5253 = vmul.f32 %v5177, %v1768
    %v5254 = vmul.f32 %v5178, %v1769
    %v5255 = vmul.f32 %v5179, %v1770
    %v5256 = vmul.f32 %v5180, %v1771
    %v5257 = vmul.f32 %v5181, %v1772
    %v5258 = vmul.f32 %v5182, %v1773
    %v5259 = vmul.f32 %v5183, %v1774
    %v5260 = vmul.f32 %v5165, %v1775
    %v5261 = vmul.f32 %v5166, %v1776
    %v5262 = vmul.f32 %v5167, %v1777
    %v5263 = vmul.f32 %v5168, %v1778
    %v5264 = vmul.f32 %v5169, %v1779
    %v5265 = vmul.f32 %v5170, %v1780
    %v5266 = vmul.f32 %v5171, %v1781
    %v5267 = vmul.f32 %v5172, %v1782
    %v5268 = vmul.f32 %v5173, %v1783
    %v5269 = vmul.f32 %v5174, %v1784
    %v5270 = vmul.f32 %v5175, %v1785
    %v5271 = vmul.f32 %v5176, %v1786
    %v5272 = vmul.f32 %v5177, %v1787
    %v5273 = vmul.f32 %v5178, %v1788
    %v5274 = vmul.f32 %v5179, %v1789
    %v5275 = vmul.f32 %v5180, %v1790
    %v5276 = vmul.f32 %v5181, %v1791
    %v5277 = vmul.f32 %v5182, %v1792
    %v5278 = vmul.f32 %v5183, %v1793
    %v5279 = vmul.f32 %v5184, %v1794
    %v5280 = vmul.f32 %v5185, %v1795
    %v5281 = vmul.f32 %v5186, %v1796
    %v5282 = vmul.f32 %v5187, %v1797
    %v5283 = vmul.f32 %v5188, %v1798
    %v5284 = vmul.f32 %v5189, %v1799
    %v5285 = vmul.f32 %v5190, %v1800
    %v5286 = vmul.f32 %v5191, %v1801
    %v5287 = vmul.f32 %v5192, %v1802
    %v5288 = vmul.f32 %v5193, %v1803
    %v5289 = vmul.f32 %v5194, %v1804
    %v5290 = vmul.f32 %v5195, %v1805
    %v5291 = vmul.f32 %v5196, %v1806
    %v5292 = vmul.f32 %v5197, %v1807
    %v5293 = vmul.f32 %v5198, %v1808
    %v5294 = vmul.f32 %v5199, %v1809
    %v5295 = vmul.f32 %v5200, %v1810
    %v5296 = vmul.f32 %v5201, %v1811
    %v5297 = vmul.f32 %v5202, %v1812
    %v5298 = vmul.f32 %v5184, %v1813
    %v5299 = vmul.f32 %v5185, %v1814
    %v5300 = vmul.f32 %v5186, %v1815
    %v5301 = vmul.f32 %v5187, %v1816
    %v5302 = vmul.f32 %v5188, %v1817
    %v5303 = vmul.f32 %v5189, %v1818
    %v5304 = vmul.f32 %v5190, %v1819
    %v5305 = vmul.f32 %v5191, %v1820
    %v5306 = vmul.f32 %v5192, %v1821
    %v5307 = vmul.f32 %v5193, %v1822
    %v5308 = vmul.f32 %v5194, %v1823
    %v5309 = vmul.f32 %v5195, %v1824
    %v5310 = vmul.f32 %v5196, %v1825
    %v5311 = vmul.f32 %v5197, %v1826
    %v5312 = vmul.f32 %v5198, %v1827
    %v5313 = vmul.f32 %v5199, %v1828
    %v5314 = vmul.f32 %v5200, %v1829
    %v5315 = vmul.f32 %v5201, %v1830
    %v5316 = vmul.f32 %v5202, %v1831
    %v5317 = vmul.f32 %v5203, %v1832
    %v5318 = vmul.f32 %v5204, %v1833
    %v5319 = vmul.f32 %v5205, %v1834
    %v5320 = vmul.f32 %v5206, %v1835
    %v5321 = vmul.f32 %v5207, %v1836
    %v5322 = vmul.f32 %v5208, %v1837
    %v5323 = vmul.f32 %v5209, %v1838
    %v5324 = vmul.f32 %v5210, %v1839
    %v5325 = vmul.f32 %v5211, %v1840
    %v5326 = vmul.f32 %v5212, %v1841
    %v5327 = vmul.f32 %v5213, %v1842
    %v5328 = vmul.f32 %v5214, %v1843
    %v5329 = vmul.f32 %v5215, %v1844
    %v5330 = vmul.f32 %v5216, %v1845
    %v5331 = vmul.f32 %v5217, %v1846
    %v5332 = vmul.f32 %v5218, %v1847
    %v5333 = vmul.f32 %v5219, %v1848
    %v5334 = vmul.f32 %v5220, %v1849
    %v5335 = vmul.f32 %v5221, %v1850
    %v5336 = vmul.f32 %v5203, %v1851
    %v5337 = vmul.f32 %v5204, %v1852
    %v5338 = vmul.f32 %v5205, %v1853
    %v5339 = vmul.f32 %v5206, %v1854
    %v5340 = vmul.f32 %v5207, %v1855
    %v5341 = vmul.f32 %v5208, %v1856
    %v5342 = vmul.f32 %v5209, %v1857
    %v5343 = vmul.f32 %v5210, %v1858
    %v5344 = vmul.f32 %v5211, %v1859
    %v5345 = vmul.f32 %v5212, %v1860
    %v5346 = vmul.f32 %v5213, %v1861
    %v5347 = vmul.f32 %v5214, %v1862
    %v5348 = vmul.f32 %v5215, %v1863
    %v5349 = vmul.f32 %v5216, %v1864
    %v5350 = vmul.f32 %v5217, %v1865
    %v5351 = vmul.f32 %v5218, %v1866
    %v5352 = vmul.f32 %v5219, %v1867
    %v5353 = vmul.f32 %v5220, %v1868
    %v5354 = vmul.f32 %v5221, %v1869
    %v5355 = vmul.f32 %v5222, %v1870
    %v5356 = vmul.f32 %v5223, %v1871
    %v5357 = vmul.f32 %v5224, %v1872
    %v5358 = vmul.f32 %v5225, %v1873
    %v5359 = vmul.f32 %v5226, %v1874
    %v5360 = vmul.f32 %v5227, %v1875
    %v5361 = vmul.f32 %v5228, %v1876
    %v5362 = vmul.f32 %v5229, %v1877
    %v5363 = vmul.f32 %v5230, %v1878
    %v5364 = vmul.f32 %v5231, %v1879
    %v5365 = vmul.f32 %v5232, %v1880
    %v5366 = vmul.f32 %v5233, %v1881
    %v5367 = vmul.f32 %v5234, %v1882
    %v5368 = vmul.f32 %v5235, %v1883
    %v5369 = vmul.f32 %v5236, %v1884
    %v5370 = vmul.f32 %v5237, %v1885
    %v5371 = vmul.f32 %v5238, %v1886
    %v5372 = vmul.f32 %v5239, %v1887
    %v5373 = vmul.f32 %v5240, %v1888
    %v5374 = vmul.f32 %v5222, %v1889
    %v5375 = vmul.f32 %v5223, %v1890
    %v5376 = vmul.f32 %v5224, %v1891
    %v5377 = vmul.f32 %v5225, %v1892
    %v5378 = vmul.f32 %v5226, %v1893
    %v5379 = vmul.f32 %v5227, %v1894
    %v5380 = vmul.f32 %v5228, %v1895
    %v5381 = vmul.f32 %v5229, %v1896
    %v5382 = vmul.f32 %v5230, %v1897
    %v5383 = vmul.f32 %v5231, %v1898
    %v5384 = vmul.f32 %v5232, %v1899
    %v5385 = vmul.f32 %v5233, %v1900
    %v5386 = vmul.f32 %v5234, %v1901
    %v5387 = vmul.f32 %v5235, %v1902
    %v5388 = vmul.f32 %v5236, %v1903
    %v5389 = vmul.f32 %v5237, %v1904
    %v5390 = vmul.f32 %v5238, %v1905
    %v5391 = vmul.f32 %v5239, %v1906
    %v5392 = vmul.f32 %v5240, %v1907
    %v5393 = vadd.f32 %v5241, %v5242
    %v5394 = vadd.f32 %v5393, %v5243
    %v5395 = vadd.f32 %v5394, %v5244
    %v5396 = vadd.f32 %v5395, %v5245
    %v5397 = vadd.f32 %v5396, %v5246
    %v5398 = vadd.f32 %v5397, %v5247
    %v5399 = vadd.f32 %v5398, %v5248
    %v5400 = vadd.f32 %v5399, %v5249
    %v5401 = vadd.f32 %v5400, %v5250
    %v5402 = vadd.f32 %v5401, %v5251
    %v5403 = vadd.f32 %v5402, %v5252
    %v5404 = vadd.f32 %v5403, %v5253
    %v5405 = vadd.f32 %v5404, %v5254
    %v5406 = vadd.f32 %v5405, %v5255
    %v5407 = vadd.f32 %v5406, %v5256
    %v5408 = vadd.f32 %v5407, %v5257
    %v5409 = vadd.f32 %v5408, %v5258
    %v5410 = vsel %vm1925, %v5259, 0.0
    %v5411 = vadd.f32 %v5409, %v5410
    %5412 = vadd.xlane.f32.xlu0 %v5411
    %v5413 = vpop.xlane.xlu0 %5412
    %v5414 = vadd.f32 %v5260, %v5261
    %v5415 = vadd.f32 %v5414, %v5262
    %v5416 = vadd.f32 %v5415, %v5263
    %v5417 = vadd.f32 %v5416, %v5264
    %v5418 = vadd.f32 %v5417, %v5265
    %v5419 = vadd.f32 %v5418, %v5266
    %v5420 = vadd.f32 %v5419, %v5267
    %v5421 = vadd.f32 %v5420, %v5268
    %v5422 = vadd.f32 %v5421, %v5269
    %v5423 = vadd.f32 %v5422, %v5270
    %v5424 = vadd.f32 %v5423, %v5271
    %v5425 = vadd.f32 %v5424, %v5272
    %v5426 = vadd.f32 %v5425, %v5273
    %v5427 = vadd.f32 %v5426, %v5274
    %v5428 = vadd.f32 %v5427, %v5275
    %v5429 = vadd.f32 %v5428, %v5276
    %v5430 = vadd.f32 %v5429, %v5277
    %v5431 = vsel %vm1925, %v5278, 0.0
    %v5432 = vadd.f32 %v5430, %v5431
    %5433 = vadd.xlane.f32.xlu0 %v5432
    %v5434 = vpop.xlane.xlu0 %5433
    %v5435 = vadd.f32 %v5279, %v5280
    %v5436 = vadd.f32 %v5435, %v5281
    %v5437 = vadd.f32 %v5436, %v5282
    %v5438 = vadd.f32 %v5437, %v5283
    %v5439 = vadd.f32 %v5438, %v5284
    %v5440 = vadd.f32 %v5439, %v5285
    %v5441 = vadd.f32 %v5440, %v5286
    %v5442 = vadd.f32 %v5441, %v5287
    %v5443 = vadd.f32 %v5442, %v5288
    %v5444 = vadd.f32 %v5443, %v5289
    %v5445 = vadd.f32 %v5444, %v5290
    %v5446 = vadd.f32 %v5445, %v5291
    %v5447 = vadd.f32 %v5446, %v5292
    %v5448 = vadd.f32 %v5447, %v5293
    %v5449 = vadd.f32 %v5448, %v5294
    %v5450 = vadd.f32 %v5449, %v5295
    %v5451 = vadd.f32 %v5450, %v5296
    %v5452 = vsel %vm1925, %v5297, 0.0
    %v5453 = vadd.f32 %v5451, %v5452
    %5454 = vadd.xlane.f32.xlu0 %v5453
    %v5455 = vpop.xlane.xlu0 %5454
    %v5456 = vadd.f32 %v5298, %v5299
    %v5457 = vadd.f32 %v5456, %v5300
    %v5458 = vadd.f32 %v5457, %v5301
    %v5459 = vadd.f32 %v5458, %v5302
    %v5460 = vadd.f32 %v5459, %v5303
    %v5461 = vadd.f32 %v5460, %v5304
    %v5462 = vadd.f32 %v5461, %v5305
    %v5463 = vadd.f32 %v5462, %v5306
    %v5464 = vadd.f32 %v5463, %v5307
    %v5465 = vadd.f32 %v5464, %v5308
    %v5466 = vadd.f32 %v5465, %v5309
    %v5467 = vadd.f32 %v5466, %v5310
    %v5468 = vadd.f32 %v5467, %v5311
    %v5469 = vadd.f32 %v5468, %v5312
    %v5470 = vadd.f32 %v5469, %v5313
    %v5471 = vadd.f32 %v5470, %v5314
    %v5472 = vadd.f32 %v5471, %v5315
    %v5473 = vsel %vm1925, %v5316, 0.0
    %v5474 = vadd.f32 %v5472, %v5473
    %5475 = vadd.xlane.f32.xlu0 %v5474
    %v5476 = vpop.xlane.xlu0 %5475
    %v5477 = vadd.f32 %v5317, %v5318
    %v5478 = vadd.f32 %v5477, %v5319
    %v5479 = vadd.f32 %v5478, %v5320
    %v5480 = vadd.f32 %v5479, %v5321
    %v5481 = vadd.f32 %v5480, %v5322
    %v5482 = vadd.f32 %v5481, %v5323
    %v5483 = vadd.f32 %v5482, %v5324
    %v5484 = vadd.f32 %v5483, %v5325
    %v5485 = vadd.f32 %v5484, %v5326
    %v5486 = vadd.f32 %v5485, %v5327
    %v5487 = vadd.f32 %v5486, %v5328
    %v5488 = vadd.f32 %v5487, %v5329
    %v5489 = vadd.f32 %v5488, %v5330
    %v5490 = vadd.f32 %v5489, %v5331
    %v5491 = vadd.f32 %v5490, %v5332
    %v5492 = vadd.f32 %v5491, %v5333
    %v5493 = vadd.f32 %v5492, %v5334
    %v5494 = vsel %vm1925, %v5335, 0.0
    %v5495 = vadd.f32 %v5493, %v5494
    %5496 = vadd.xlane.f32.xlu0 %v5495
    %v5497 = vpop.xlane.xlu0 %5496
    %v5498 = vadd.f32 %v5336, %v5337
    %v5499 = vadd.f32 %v5498, %v5338
    %v5500 = vadd.f32 %v5499, %v5339
    %v5501 = vadd.f32 %v5500, %v5340
    %v5502 = vadd.f32 %v5501, %v5341
    %v5503 = vadd.f32 %v5502, %v5342
    %v5504 = vadd.f32 %v5503, %v5343
    %v5505 = vadd.f32 %v5504, %v5344
    %v5506 = vadd.f32 %v5505, %v5345
    %v5507 = vadd.f32 %v5506, %v5346
    %v5508 = vadd.f32 %v5507, %v5347
    %v5509 = vadd.f32 %v5508, %v5348
    %v5510 = vadd.f32 %v5509, %v5349
    %v5511 = vadd.f32 %v5510, %v5350
    %v5512 = vadd.f32 %v5511, %v5351
    %v5513 = vadd.f32 %v5512, %v5352
    %v5514 = vadd.f32 %v5513, %v5353
    %v5515 = vsel %vm1925, %v5354, 0.0
    %v5516 = vadd.f32 %v5514, %v5515
    %5517 = vadd.xlane.f32.xlu0 %v5516
    %v5518 = vpop.xlane.xlu0 %5517
    %v5519 = vadd.f32 %v5355, %v5356
    %v5520 = vadd.f32 %v5519, %v5357
    %v5521 = vadd.f32 %v5520, %v5358
    %v5522 = vadd.f32 %v5521, %v5359
    %v5523 = vadd.f32 %v5522, %v5360
    %v5524 = vadd.f32 %v5523, %v5361
    %v5525 = vadd.f32 %v5524, %v5362
    %v5526 = vadd.f32 %v5525, %v5363
    %v5527 = vadd.f32 %v5526, %v5364
    %v5528 = vadd.f32 %v5527, %v5365
    %v5529 = vadd.f32 %v5528, %v5366
    %v5530 = vadd.f32 %v5529, %v5367
    %v5531 = vadd.f32 %v5530, %v5368
    %v5532 = vadd.f32 %v5531, %v5369
    %v5533 = vadd.f32 %v5532, %v5370
    %v5534 = vadd.f32 %v5533, %v5371
    %v5535 = vadd.f32 %v5534, %v5372
    %v5536 = vsel %vm1925, %v5373, 0.0
    %v5537 = vadd.f32 %v5535, %v5536
    %5538 = vadd.xlane.f32.xlu0 %v5537
    %v5539 = vpop.xlane.xlu0 %5538
    %v5540 = vadd.f32 %v5374, %v5375
    %v5541 = vadd.f32 %v5540, %v5376
    %v5542 = vadd.f32 %v5541, %v5377
    %v5543 = vadd.f32 %v5542, %v5378
    %v5544 = vadd.f32 %v5543, %v5379
    %v5545 = vadd.f32 %v5544, %v5380
    %v5546 = vadd.f32 %v5545, %v5381
    %v5547 = vadd.f32 %v5546, %v5382
    %v5548 = vadd.f32 %v5547, %v5383
    %v5549 = vadd.f32 %v5548, %v5384
    %v5550 = vadd.f32 %v5549, %v5385
    %v5551 = vadd.f32 %v5550, %v5386
    %v5552 = vadd.f32 %v5551, %v5387
    %v5553 = vadd.f32 %v5552, %v5388
    %v5554 = vadd.f32 %v5553, %v5389
    %v5555 = vadd.f32 %v5554, %v5390
    %v5556 = vadd.f32 %v5555, %v5391
    %v5557 = vsel %vm1925, %v5392, 0.0
    %v5558 = vadd.f32 %v5556, %v5557
    %5559 = vadd.xlane.f32.xlu0 %v5558
    %v5560 = vpop.xlane.xlu0 %5559
    %v5561 = vmul.f32 %v5413, %v5413
    %v5562 = vmul.f32 %v5434, %v5434
    %v5563 = vmul.f32 %v5455, %v5455
    %v5564 = vmul.f32 %v5476, %v5476
    %v5565 = vmul.f32 %v5497, %v5497
    %v5566 = vmul.f32 %v5518, %v5518
    %v5567 = vmul.f32 %v5539, %v5539
    %v5568 = vmul.f32 %v5560, %v5560
    %v5569 = vadd.f32 %v5561, %v5562
    %v5570 = vrot.slane %v5569, 4
    %v5571 = vadd.f32 %v5569, %v5570
    %v5572 = vrot.slane %v5571, 2
    %v5573 = vadd.f32 %v5571, %v5572
    %v5574 = vrot.slane %v5573, 1
    %v5575 = vadd.f32 %v5573, %v5574
    %v5576 = vadd.f32 %v5563, %v5564
    %v5577 = vrot.slane %v5576, 4
    %v5578 = vadd.f32 %v5576, %v5577
    %v5579 = vrot.slane %v5578, 2
    %v5580 = vadd.f32 %v5578, %v5579
    %v5581 = vrot.slane %v5580, 1
    %v5582 = vadd.f32 %v5580, %v5581
    %v5583 = vadd.f32 %v5565, %v5566
    %v5584 = vrot.slane %v5583, 4
    %v5585 = vadd.f32 %v5583, %v5584
    %v5586 = vrot.slane %v5585, 2
    %v5587 = vadd.f32 %v5585, %v5586
    %v5588 = vrot.slane %v5587, 1
    %v5589 = vadd.f32 %v5587, %v5588
    %v5590 = vadd.f32 %v5567, %v5568
    %v5591 = vrot.slane %v5590, 4
    %v5592 = vadd.f32 %v5590, %v5591
    %v5593 = vrot.slane %v5592, 2
    %v5594 = vadd.f32 %v5592, %v5593
    %v5595 = vrot.slane %v5594, 1
    %v5596 = vadd.f32 %v5594, %v5595
    %v5597 = vrsqrt.pop %v5575
    %v5598 = vmul.f32 %v5597, %v5575
    %v5599 = vmul.f32 %v5598, %v5597
    %v5600 = vmul.f32 0.5, %v5599
    %v5601 = vsub.f32 1.5, %v5600
    %v5602 = vmul.f32 %v5597, %v5601
    %v5603 = vmul.f32 %v5575, %v5602
    %vm5604 = vcmp.eq.f32.partialorder %v5575, inf
    %v5605 = vsel %vm5604, %v5575, %v5603
    %vm5606 = vcmp.eq.f32.partialorder %v5575, 0.0
    %v5607 = vand.u32 %v5575, 2147483648
    %v5608 = vsel %vm5606, %v5607, %v5605
    %v5609 = vrsqrt.pop %v5582
    %v5610 = vmul.f32 %v5609, %v5582
    %v5611 = vmul.f32 %v5610, %v5609
    %v5612 = vmul.f32 0.5, %v5611
    %v5613 = vsub.f32 1.5, %v5612
    %v5614 = vmul.f32 %v5609, %v5613
    %v5615 = vmul.f32 %v5582, %v5614
    %vm5616 = vcmp.eq.f32.partialorder %v5582, inf
    %v5617 = vsel %vm5616, %v5582, %v5615
    %vm5618 = vcmp.eq.f32.partialorder %v5582, 0.0
    %v5619 = vand.u32 %v5582, 2147483648
    %v5620 = vsel %vm5618, %v5619, %v5617
    %v5621 = vrsqrt.pop %v5589
    %v5622 = vmul.f32 %v5621, %v5589
    %v5623 = vmul.f32 %v5622, %v5621
    %v5624 = vmul.f32 0.5, %v5623
    %v5625 = vsub.f32 1.5, %v5624
    %v5626 = vmul.f32 %v5621, %v5625
    %v5627 = vmul.f32 %v5589, %v5626
    %vm5628 = vcmp.eq.f32.partialorder %v5589, inf
    %v5629 = vsel %vm5628, %v5589, %v5627
    %vm5630 = vcmp.eq.f32.partialorder %v5589, 0.0
    %v5631 = vand.u32 %v5589, 2147483648
    %v5632 = vsel %vm5630, %v5631, %v5629
    %v5633 = vrsqrt.pop %v5596
    %v5634 = vmul.f32 %v5633, %v5596
    %v5635 = vmul.f32 %v5634, %v5633
    %v5636 = vmul.f32 0.5, %v5635
    %v5637 = vsub.f32 1.5, %v5636
    %v5638 = vmul.f32 %v5633, %v5637
    %v5639 = vmul.f32 %v5596, %v5638
    %vm5640 = vcmp.eq.f32.partialorder %v5596, inf
    %v5641 = vsel %vm5640, %v5596, %v5639
    %vm5642 = vcmp.eq.f32.partialorder %v5596, 0.0
    %v5643 = vand.u32 %v5596, 2147483648
    %v5644 = vsel %vm5642, %v5643, %v5641
    %v5645 = vadd.f32 %v5575, 1.0
    %v5646 = vadd.f32 %v5582, 1.0
    %v5647 = vadd.f32 %v5589, 1.0
    %v5648 = vadd.f32 %v5596, 1.0
    %v5649 = vrcp.pop %v5645
    %v5650 = vmul.f32 %v5645, %v5649
    %v5651 = vsub.f32 1.0, %v5650
    %v5652 = vmul.f32 %v5649, %v5651
    %v5653 = vadd.f32 %v5649, %v5652
    %vm5654 = vweird.f32 %v5645
    %vm5655 = vweird.f32 %v5649
    %vm5656 = vmor %vm5654, %vm5655
    %v5657 = vsel %vm5656, %v5649, %v5653
    %v5658 = vand.u32 2147483647, %v5645
    %vm5659 = vcmp.eq.f32.partialorder %v5658, 8.507059e+37
    %v5660 = vand.u32 %v5645, 2147483648
    %v5661 = vor.u32 1.1754944e-38, %v5660
    %v5662 = vsel %vm5659, %v5661, %v5657
    %v5663 = vmul.f32 %v5608, %v5662
    %v5664 = vrcp.pop %v5646
    %v5665 = vmul.f32 %v5646, %v5664
    %v5666 = vsub.f32 1.0, %v5665
    %v5667 = vmul.f32 %v5664, %v5666
    %v5668 = vadd.f32 %v5664, %v5667
    %vm5669 = vweird.f32 %v5646
    %vm5670 = vweird.f32 %v5664
    %vm5671 = vmor %vm5669, %vm5670
    %v5672 = vsel %vm5671, %v5664, %v5668
    %v5673 = vand.u32 2147483647, %v5646
    %vm5674 = vcmp.eq.f32.partialorder %v5673, 8.507059e+37
    %v5675 = vand.u32 %v5646, 2147483648
    %v5676 = vor.u32 1.1754944e-38, %v5675
    %v5677 = vsel %vm5674, %v5676, %v5672
    %v5678 = vmul.f32 %v5620, %v5677
    %v5679 = vrcp.pop %v5647
    %v5680 = vmul.f32 %v5647, %v5679
    %v5681 = vsub.f32 1.0, %v5680
    %v5682 = vmul.f32 %v5679, %v5681
    %v5683 = vadd.f32 %v5679, %v5682
    %vm5684 = vweird.f32 %v5647
    %vm5685 = vweird.f32 %v5679
    %vm5686 = vmor %vm5684, %vm5685
    %v5687 = vsel %vm5686, %v5679, %v5683
    %v5688 = vand.u32 2147483647, %v5647
    %vm5689 = vcmp.eq.f32.partialorder %v5688, 8.507059e+37
    %v5690 = vand.u32 %v5647, 2147483648
    %v5691 = vor.u32 1.1754944e-38, %v5690
    %v5692 = vsel %vm5689, %v5691, %v5687
    %v5693 = vmul.f32 %v5632, %v5692
    %v5694 = vrcp.pop %v5648
    %v5695 = vmul.f32 %v5648, %v5694
    %v5696 = vsub.f32 1.0, %v5695
    %v5697 = vmul.f32 %v5694, %v5696
    %v5698 = vadd.f32 %v5694, %v5697
    %vm5699 = vweird.f32 %v5648
    %vm5700 = vweird.f32 %v5694
    %vm5701 = vmor %vm5699, %vm5700
    %v5702 = vsel %vm5701, %v5694, %v5698
    %v5703 = vand.u32 2147483647, %v5648
    %vm5704 = vcmp.eq.f32.partialorder %v5703, 8.507059e+37
    %v5705 = vand.u32 %v5648, 2147483648
    %v5706 = vor.u32 1.1754944e-38, %v5705
    %v5707 = vsel %vm5704, %v5706, %v5702
    %v5708 = vmul.f32 %v5644, %v5707
    %v5709 = vmul.f32 %v5413, %v5663
    %v5710 = vmul.f32 %v5434, %v5663
    %v5711 = vmul.f32 %v5455, %v5678
    %v5712 = vmul.f32 %v5476, %v5678
    %v5713 = vmul.f32 %v5497, %v5693
    %v5714 = vmul.f32 %v5518, %v5693
    %v5715 = vmul.f32 %v5539, %v5708
    %v5716 = vmul.f32 %v5560, %v5708
    %v5717 = vmul.f32 %v5709, %v5709
    %v5718 = vmul.f32 %v5710, %v5710
    %v5719 = vmul.f32 %v5711, %v5711
    %v5720 = vmul.f32 %v5712, %v5712
    %v5721 = vmul.f32 %v5713, %v5713
    %v5722 = vmul.f32 %v5714, %v5714
    %v5723 = vmul.f32 %v5715, %v5715
    %v5724 = vmul.f32 %v5716, %v5716
    %v5733 = vlaneseq
    %v5734 = vand.u32 %v5733, 127
    %v5735 = vperm.slane %v5717, %v5734
    %v5736 = vadd.s32 %v5734, 4294967288
    %v5737 = vperm.slane %v5718, %v5736
    %vm5738 = vcmask 130112
    %v5739 = vsel %vm5738, %v5737, %v5735
    %v5740 = vperm.slane %v5719, %v5734
    %v5741 = vperm.slane %v5720, %v5736
    %v5742 = vsel %vm5738, %v5741, %v5740
    %v5743 = vperm.slane %v5721, %v5734
    %v5744 = vperm.slane %v5722, %v5736
    %v5745 = vsel %vm5738, %v5744, %v5743
    %v5746 = vperm.slane %v5723, %v5734
    %v5747 = vperm.slane %v5724, %v5736
    %v5748 = vsel %vm5738, %v5747, %v5746
    %vm5749 = vcmask 1041409
    %v5750 = vsel %vm5749, %v5742, %v5739
    %v5751 = vsel %vm5749, %v5748, %v5745
    %vm5754 = vcmask 123904
    %v5755 = vsel %vm5754, %v5750, 0.0
    %5756 = vadd.xlane.f32.xlu0 %v5755
    %v5757 = vpop.xlane.xlu0 %5756
    %v5758 = vsel %vm5754, %v5751, 0.0
    %5759 = vadd.xlane.f32.xlu0 %v5758
    %v5760 = vpop.xlane.xlu0 %5759
    %v5761 = vrsqrt.pop %v5757
    %v5762 = vmul.f32 %v5761, %v5757
    %v5763 = vmul.f32 %v5762, %v5761
    %v5764 = vmul.f32 0.5, %v5763
    %v5765 = vsub.f32 1.5, %v5764
    %v5766 = vmul.f32 %v5761, %v5765
    %v5767 = vmul.f32 %v5757, %v5766
    %vm5768 = vcmp.eq.f32.partialorder %v5757, inf
    %v5769 = vsel %vm5768, %v5757, %v5767
    %vm5770 = vcmp.eq.f32.partialorder %v5757, 0.0
    %v5771 = vand.u32 %v5757, 2147483648
    %v5772 = vsel %vm5770, %v5771, %v5769
    %v5773 = vrsqrt.pop %v5760
    %v5774 = vmul.f32 %v5773, %v5760
    %v5775 = vmul.f32 %v5774, %v5773
    %v5776 = vmul.f32 0.5, %v5775
    %v5777 = vsub.f32 1.5, %v5776
    %v5778 = vmul.f32 %v5773, %v5777
    %v5779 = vmul.f32 %v5760, %v5778
    %vm5780 = vcmp.eq.f32.partialorder %v5760, inf
    %v5781 = vsel %vm5780, %v5760, %v5779
    %vm5782 = vcmp.eq.f32.partialorder %v5760, 0.0
    %v5783 = vand.u32 %v5760, 2147483648
    %v5784 = vsel %vm5782, %v5783, %v5781
    %v5787 = vperm.slane %v5772, %v5734
    %v5788 = vperm.slane %v5784, %v5734
    %v5789 = vsel %vm5749, %v5788, %v5787
    %vm5791 = vcmask 9216
    %v5792 = vsel %vm5791, %v5789, -inf
    %5793 = vmax.xlane.f32.xlu0 %v5792
    %v5794 = vpop.xlane.xlu0 %5793
    %v5796 = vperm.slane %v5794, 0
    %v5797 = vperm.slane %v5794, 1
    %v5800 = vsub.f32 %v5772, %v5796
    %v5801 = vsub.f32 %v5784, %v5797
    %v5802 = vmul.f32 %v5800, 1.442695
    %v5803 = vpow.pop %v5802
    %v5804 = vmul.f32 %v5801, 1.442695
    %v5805 = vpow.pop %v5804
    %5808 = vset.pattern.permute.xlu0 0
    %5809 = vperm.xlu0 %5808, %v5803
    %v5810 = vpop.permute.xlu0 %5809
    %5811 = vset.pattern.permute.xlu0 0
    %5812 = vperm.xlu0 %5811, %v5805
    %v5813 = vpop.permute.xlu0 %5812
    %v5814 = vperm.slane %v5810, %v5734
    %v5815 = vperm.slane %v5813, %v5734
    %v5816 = vsel %vm5749, %v5815, %v5814
    %v5818 = vsel %vm5791, %v5816, 0.0
    %5819 = vadd.xlane.f32.xlu0 %v5818
    %v5820 = vpop.xlane.xlu0 %5819
    %v5822 = vperm.slane %v5820, 0
    %v5823 = vperm.slane %v5820, 1
    %v5826 = vrcp.pop %v5822
    %v5827 = vmul.f32 %v5822, %v5826
    %v5828 = vsub.f32 1.0, %v5827
    %v5829 = vmul.f32 %v5826, %v5828
    %v5830 = vadd.f32 %v5826, %v5829
    %vm5831 = vweird.f32 %v5822
    %vm5832 = vweird.f32 %v5826
    %vm5833 = vmor %vm5831, %vm5832
    %v5834 = vsel %vm5833, %v5826, %v5830
    %v5835 = vand.u32 2147483647, %v5822
    %vm5836 = vcmp.eq.f32.partialorder %v5835, 8.507059e+37
    %v5837 = vand.u32 %v5822, 2147483648
    %v5838 = vor.u32 1.1754944e-38, %v5837
    %v5839 = vsel %vm5836, %v5838, %v5834
    %v5840 = vmul.f32 %v5803, %v5839
    %v5841 = vrcp.pop %v5823
    %v5842 = vmul.f32 %v5823, %v5841
    %v5843 = vsub.f32 1.0, %v5842
    %v5844 = vmul.f32 %v5841, %v5843
    %v5845 = vadd.f32 %v5841, %v5844
    %vm5846 = vweird.f32 %v5823
    %vm5847 = vweird.f32 %v5841
    %vm5848 = vmor %vm5846, %vm5847
    %v5849 = vsel %vm5848, %v5841, %v5845
    %v5850 = vand.u32 2147483647, %v5823
    %vm5851 = vcmp.eq.f32.partialorder %v5850, 8.507059e+37
    %v5852 = vand.u32 %v5823, 2147483648
    %v5853 = vor.u32 1.1754944e-38, %v5852
    %v5854 = vsel %vm5851, %v5853, %v5849
    %v5855 = vmul.f32 %v5805, %v5854
    %5858 = vset.pattern.permute.xlu0 0
    %5859 = vperm.xlu0 %5858, %v5840
    %v5860 = vpop.permute.xlu0 %5859
    %5861 = vset.pattern.permute.xlu0 0
    %5862 = vperm.xlu0 %5861, %v5855
    %v5863 = vpop.permute.xlu0 %5862
    %v5864 = vperm.slane %v5860, %v5734
    %v5865 = vperm.slane %v5863, %v5734
    %v5866 = vsel %vm5749, %v5865, %v5864
    %5868 = vst.msk [vmem:[#allocation7] sm:$0x3] %vm5791, %v5866
    // Predicated region
    $region18: #{caps1d_forward.1} parent=1 // pred_check
      _
    $region19: #{caps1d_forward.1} parent=1 // pred_check_branch
      %5870 = sbr.rel (0) target = $region21
    $region20: #{caps1d_forward.1} parent=1 // pred_region
      %5872 = vsyncadd [#allocation4], 0
      %s5874 = sshll.u32 [#allocation7], 4
      %s5875 = int_to_ptr.vmem [resolvable:$true] %s5874
      %s5876 = sshll.u32 %s2, 4
      %s5877 = int_to_ptr.hbm [resolvable:$true] %s5876
      %5879 = dma.vmem_to_hbm [thread:$0]  %s5875, 32, %s5877, [#allocation4]
    $region21: #{caps1d_forward.1} parent=1 // pred_fallthru
      _
    // Predicated region
    $region22: #{caps1d_forward.1} parent=1 // pred_check
      _
    $region23: #{caps1d_forward.1} parent=1 // pred_check_branch
      %5881 = sbr.rel (0) target = $region25
    $region24: #{caps1d_forward.1} parent=1 // pred_region
      %5883 = dma.done [#allocation4], 32
    $region25: #{caps1d_forward.1} parent=1 // pred_fallthru
      _
    %5884 = vsyncpa [#allocation3], 1
    %5885 = vsyncpa [#allocation6], 1
    %5886 = vsyncpa [#allocation4], 1

</llo_original>
